<compile_context>
chip_gen: v7x
topology: tpu7x:2x2x1
jax: 0.10.0
libtpu: 0.0.40
codegen_flags: <defaults>
</compile_context>

<pallas_src>
import functools

import jax
import jax.numpy as jnp
from jax import lax
from jax.experimental import pallas as pl
from jax.experimental.pallas import tpu as pltpu

LN_EPS = 1e-5          # PyTorch nn.LayerNorm default
AGG_SCALE = 30.0       # ProteinMPNN / TERMinator neighbor-aggregation scale
LAYER_TILE = 1024      # node rows per grid step for fused MPNN layer kernels
ENERGY_TILE = 256      # node rows per grid step for the W_out energy kernel
LINEAR_TILE = 1024     # rows per grid step for plain linear kernels
VMEM_LIMIT = 32 * 1024 * 1024


# ----------------------------- small helpers -----------------------------


def _round_up(x, m):
    return ((x + m - 1) // m) * m


def _cdiv(a, b):
    return -(-a // b)


def _choose_tile(rows, max_tile):
    """Near-equal row split, rounded to 8, >= 2 grid steps when possible (v7x dual-TC)."""
    r8 = _round_up(max(rows, 1), 8)
    if r8 <= 8:
        return 8
    steps = max(2, _cdiv(r8, max_tile))
    return min(_round_up(_cdiv(r8, steps), 8), max_tile)


def _pad0(x, rows_p):
    pad = rows_p - x.shape[0]
    if pad:
        x = jnp.pad(x, [(0, pad)] + [(0, 0)] * (x.ndim - 1))
    return x


def _full_spec(shape):
    n = len(shape)
    return pl.BlockSpec(shape, lambda i, n=n: (0,) * n)


def _cparams():
    return pltpu.CompilerParams(dimension_semantics=("parallel",),
                                vmem_limit_bytes=VMEM_LIMIT)


def _cost(flops, bytes_accessed, transcendentals=0):
    return pl.CostEstimate(flops=int(flops), transcendentals=int(transcendentals),
                           bytes_accessed=int(bytes_accessed))


# ----------------------------- in-kernel math -----------------------------


def _dot(x, w_bf16):
    # bf16 MXU matmul with f32 accumulation
    return jnp.dot(x.astype(jnp.bfloat16), w_bf16, preferred_element_type=jnp.float32)


def _ln(x, g, b):
    mu = jnp.mean(x, axis=-1, keepdims=True)
    xc = x - mu
    var = jnp.mean(xc * xc, axis=-1, keepdims=True)
    return xc * lax.rsqrt(var + LN_EPS) * g + b


# ----------------------------- Pallas kernels -----------------------------


def _linear_kernel(x_ref, w_ref, b_ref, o_ref):
    o_ref[...] = _dot(x_ref[...], w_ref[...]) + b_ref[...]


def _edge_layer_kernel(he_ref, hi_ref, hj_ref, am_ref, xm_ref,
                       w1e_ref, w1i_ref, w1j_ref, b1_ref,
                       w2_ref, b2_ref, w3_ref, b3_ref,
                       g1_ref, n1_ref, f1_ref, c1_ref, f2_ref, c2_ref,
                       g2_ref, n2_ref, o_ref):
    # Message MLP input is [h_E | h_i | h_j | h_E]; W1 is pre-split per block so the
    # concatenation never materializes (h_i is constant over the K neighbor slots).
    tn, K, H = he_ref.shape
    rows = tn * K
    he = he_ref[...]
    m = (_dot(he.reshape(rows, H), w1e_ref[...])
         + _dot(hj_ref[...].reshape(rows, H), w1j_ref[...])
         + b1_ref[...])
    m = m.reshape(tn, K, H) + _dot(hi_ref[...], w1i_ref[...])[:, None, :]
    m = jnp.maximum(m, 0.0)
    m = jnp.maximum(_dot(m.reshape(rows, H), w2_ref[...]) + b2_ref[...], 0.0)
    m = _dot(m, w3_ref[...]) + b3_ref[...]
    m = m.reshape(tn, K, H) * am_ref[...][:, :, None]            # mask_attend
    h = _ln(he + m, g1_ref[...], n1_ref[...])
    d = jnp.maximum(_dot(h.reshape(rows, H), f1_ref[...]) + c1_ref[...], 0.0)
    d = _dot(d, f2_ref[...]) + c2_ref[...]
    h = _ln(h + d.reshape(tn, K, H), g2_ref[...], n2_ref[...])
    o_ref[...] = h * xm_ref[...][:, :, None]                      # mask_E


def _node_layer_kernel(hv_ref, he_ref, hj_ref, am_ref, xm_ref,
                       w1e_ref, w1i_ref, w1j_ref, b1_ref,
                       w2_ref, b2_ref, w3_ref, b3_ref,
                       g1_ref, n1_ref, f1_ref, c1_ref, f2_ref, c2_ref,
                       g2_ref, n2_ref, o_ref):
    # Message MLP input is [h_i | h_E | h_j]; W1 pre-split per block as above.
    tn, K, H = he_ref.shape
    rows = tn * K
    hv = hv_ref[...]
    m = (_dot(he_ref[...].reshape(rows, H), w1e_ref[...])
         + _dot(hj_ref[...].reshape(rows, H), w1j_ref[...])
         + b1_ref[...])
    m = m.reshape(tn, K, H) + _dot(hv, w1i_ref[...])[:, None, :]
    m = jnp.maximum(m, 0.0)
    m = jnp.maximum(_dot(m.reshape(rows, H), w2_ref[...]) + b2_ref[...], 0.0)
    m = _dot(m, w3_ref[...]) + b3_ref[...]
    m = m.reshape(tn, K, H) * am_ref[...][:, :, None]             # mask_attend
    dh = jnp.sum(m, axis=1) * (1.0 / AGG_SCALE)                   # masked neighbor aggregation
    h = _ln(hv + dh, g1_ref[...], n1_ref[...])
    d = jnp.maximum(_dot(h, f1_ref[...]) + c1_ref[...], 0.0)
    d = _dot(d, f2_ref[...]) + c2_ref[...]
    h = _ln(h + d, g2_ref[...], n2_ref[...])
    o_ref[...] = h * xm_ref[...]                                  # mask_V


def _energies_kernel(u_ref, c_ref, w_ref, b_ref, fac_ref, o_ref):
    # u = merged (mask * h_E), c = merged row mask:
    #   o = u @ W + c*b  ==  merge_dups(x_mask * (h_E @ W + b))   (kNN groups of size <= 2)
    # fac holds the self-edge (neighbor slot 0) 20x20 diagonal mask, ones elsewhere,
    # so the final energies are written once, fully formed.
    tn, K, H = u_ref.shape
    dout = w_ref.shape[1]
    y = jnp.dot(u_ref[...].reshape(tn * K, H), w_ref[...],
                preferred_element_type=jnp.float32)
    y = y.reshape(tn, K, dout) + c_ref[...][:, :, None] * b_ref[...][None, :, :]
    o_ref[...] = y * fac_ref[...][None, :, :]


# ----------------------------- kernel wrappers -----------------------------


def pallas_linear(x, w, b):
    lead = x.shape[:-1]
    din, dout = w.shape
    x2 = x.reshape(-1, din).astype(jnp.float32)
    rows = x2.shape[0]
    t = _choose_tile(rows, LINEAR_TILE)
    rows_p = _round_up(rows, t)
    x2 = _pad0(x2, rows_p)
    out = pl.pallas_call(
        _linear_kernel,
        out_shape=jax.ShapeDtypeStruct((rows_p, dout), jnp.float32),
        grid=(rows_p // t,),
        in_specs=[pl.BlockSpec((t, din), lambda i: (i, 0)),
                  _full_spec((din, dout)),
                  _full_spec((1, dout))],
        out_specs=pl.BlockSpec((t, dout), lambda i: (i, 0)),
        compiler_params=_cparams(),
        cost_estimate=_cost(2 * rows_p * din * dout, rows_p * (din + dout) * 4),
    )(x2, w.astype(jnp.bfloat16), b.reshape(1, dout).astype(jnp.float32))
    if rows_p != rows:
        out = out[:rows]
    return out.reshape(lead + (dout,))


def _layer_weight_args(p, H, order):
    """Split W1 into per-input-block weights so no concat is needed in-kernel."""
    bf = lambda a: a.astype(jnp.bfloat16)
    row = lambda a: a.astype(jnp.float32).reshape(1, -1)
    w1 = p["W1_w"]
    blocks = {}
    for s, name in enumerate(order):
        blk = w1[s * H:(s + 1) * H]
        blocks[name] = blocks[name] + blk if name in blocks else blk
    return [bf(blocks["e"]), bf(blocks["i"]), bf(blocks["j"]), row(p["W1_b"]),
            bf(p["W2_w"]), row(p["W2_b"]), bf(p["W3_w"]), row(p["W3_b"]),
            row(p["norm1_g"]), row(p["norm1_b"]),
            bf(p["ff1_w"]), row(p["ff1_b"]), bf(p["ff2_w"]), row(p["ff2_b"]),
            row(p["norm2_g"]), row(p["norm2_b"])]


# ----------------------------- graph glue (plain JAX) -----------------------------


def gather_nodes(nodes, E_idx):
    B, N, C = nodes.shape
    K = E_idx.shape[-1]
    idx = jnp.broadcast_to(E_idx.reshape(B, N * K, 1), (B, N * K, C))
    return jnp.take_along_axis(nodes, idx, axis=1).reshape(B, N, K, C)


def build_merge_recip(E_idx):
    """Reciprocal-edge index equivalent to get_merge_dups_mask for a kNN graph:
    each unordered endpoint pair {i,j} appears at most twice (row i and row j)."""
    B, N, K = E_idx.shape
    E_nbr = jax.vmap(lambda e: e[e])(E_idx)                       # (B,N,K,K): neighbor list of endpoint j
    match = E_nbr == jnp.arange(N, dtype=E_idx.dtype)[None, :, None, None]
    has = jnp.any(match, axis=-1)                                 # does j also list i?
    k_back = jnp.argmax(match, axis=-1).astype(jnp.int32)         # slot of i in j's list
    recip = E_idx.astype(jnp.int32) * K + k_back                  # flat index into (N*K)
    return recip, has


def merge_dups_recip(h_E, recip_idx, recip_has):
    """scatter_mean over duplicate (unordered) edges == average with the reciprocal
    edge when it exists (kNN groups have size 1 or 2)."""
    B, N, K, C = h_E.shape
    flat = h_E.reshape(B, N * K, C)
    idx = jnp.broadcast_to(recip_idx.reshape(B, N * K, 1), (B, N * K, C))
    partner = jnp.take_along_axis(flat, idx, axis=1)
    merged = jnp.where(recip_has.reshape(B, N * K, 1), 0.5 * (flat + partner), flat)
    return merged.reshape(B, N, K, C)


# ----------------------------- featurizer stand-in -----------------------------


def featurize(X, x_mask, chain_idx, k):
    # TODO(synk): MultiChainProteinFeatures source is not provided; this stand-in builds
    # the kNN graph from CA distances and deterministic geometric raw features
    # (distance RBFs + same-chain flag for edges, intra-residue atom distances for nodes).
    B, N = x_mask.shape
    Ca = X[:, :, 1, :]
    D = jnp.sqrt(jnp.sum((Ca[:, :, None, :] - Ca[:, None, :, :]) ** 2, axis=-1) + 1e-8)
    mask_2d = x_mask[:, :, None] * x_mask[:, None, :]
    D_adj = D + (1.0 - mask_2d) * 1e4
    _, E_idx = lax.top_k(-D_adj, k)
    E_idx = E_idx.astype(jnp.int32)

    D_k = jnp.take_along_axis(D, E_idx, axis=2)                      # (B,N,K)
    n_rbf = 16
    mu = jnp.linspace(0.0, 20.0, n_rbf)
    sigma = 20.0 / n_rbf
    rbf = jnp.exp(-(((D_k[..., None] - mu) / sigma) ** 2))           # (B,N,K,16)
    chain_nb = jnp.take_along_axis(
        jnp.broadcast_to(chain_idx[:, None, :], (B, N, N)), E_idx, axis=2)
    same_chain = (chain_nb == chain_idx[:, :, None]).astype(jnp.float32)[..., None]
    E_raw = jnp.concatenate([rbf, same_chain], axis=-1)              # (B,N,K,17)

    pi, pj = jnp.triu_indices(4, k=1)
    dv = X[:, :, pi, :] - X[:, :, pj, :]
    V_raw = jnp.sqrt(jnp.sum(dv ** 2, axis=-1) + 1e-8)               # (B,N,6)
    return V_raw, E_raw, E_idx


# ----------------------------- fused encoder layers -----------------------------
# TODO(synk): EdgeMPNNLayer / NodeMPNNLayer source is not given with the module; the
# layers follow the TERMinator / ProteinMPNN reference design (3-layer ReLU message MLP,
# masked mean over neighbors for nodes, LayerNorm + FFN, mask_E then duplicate-edge merge).


def edge_mpnn_layer(p, h_E, h_V, E_idx, x_mask, mask_attend, h_j):
    B, N, K, H = h_E.shape
    h_i = gather_nodes(h_V, E_idx[:, :, :1])[:, :, 0]                # self endpoint (slot 0)
    rows = B * N
    t = _choose_tile(rows, LAYER_TILE)
    rows_p = _round_up(rows, t)
    he2 = _pad0(h_E.reshape(rows, K, H).astype(jnp.float32), rows_p)
    hi2 = _pad0(h_i.reshape(rows, H).astype(jnp.float32), rows_p)
    hj2 = _pad0(h_j.reshape(rows, K, H).astype(jnp.float32), rows_p)
    am2 = _pad0(mask_attend.reshape(rows, K).astype(jnp.float32), rows_p)
    xm2 = _pad0(x_mask.reshape(rows, 1).astype(jnp.float32), rows_p)
    wargs = _layer_weight_args(p, H, ("e", "i", "j", "e"))           # [h_E|h_i|h_j|h_E]
    flops = rows_p * K * (2 * H * H * 4 + 2 * H * 4 * H * 2) + rows_p * 2 * H * H
    byt = rows_p * (4 * K * H + H + K + 1) * 4
    out = pl.pallas_call(
        _edge_layer_kernel,
        out_shape=jax.ShapeDtypeStruct((rows_p, K, H), jnp.float32),
        grid=(rows_p // t,),
        in_specs=[pl.BlockSpec((t, K, H), lambda i: (i, 0, 0)),
                  pl.BlockSpec((t, H), lambda i: (i, 0)),
                  pl.BlockSpec((t, K, H), lambda i: (i, 0, 0)),
                  pl.BlockSpec((t, K), lambda i: (i, 0)),
                  pl.BlockSpec((t, 1), lambda i: (i, 0))]
                 + [_full_spec(a.shape) for a in wargs],
        out_specs=pl.BlockSpec((t, K, H), lambda i: (i, 0, 0)),
        compiler_params=_cparams(),
        cost_estimate=_cost(flops, byt),
    )(he2, hi2, hj2, am2, xm2, *wargs)
    if rows_p != rows:
        out = out[:rows]
    return out.reshape(B, N, K, H)


def node_mpnn_layer(p, h_V, h_E, x_mask, mask_attend, h_j):
    B, N, K, H = h_E.shape
    rows = B * N
    t = _choose_tile(rows, LAYER_TILE)
    rows_p = _round_up(rows, t)
    hv2 = _pad0(h_V.reshape(rows, H).astype(jnp.float32), rows_p)
    he2 = _pad0(h_E.reshape(rows, K, H).astype(jnp.float32), rows_p)
    hj2 = _pad0(h_j.reshape(rows, K, H).astype(jnp.float32), rows_p)
    am2 = _pad0(mask_attend.reshape(rows, K).astype(jnp.float32), rows_p)
    xm2 = _pad0(x_mask.reshape(rows, 1).astype(jnp.float32), rows_p)
    wargs = _layer_weight_args(p, H, ("i", "e", "j"))                # [h_i|h_E|h_j]
    flops = rows_p * K * 2 * H * H * 4 + rows_p * (2 * H * H + 2 * H * 4 * H * 2)
    byt = rows_p * (2 * K * H + 2 * H + K + 1) * 4
    out = pl.pallas_call(
        _node_layer_kernel,
        out_shape=jax.ShapeDtypeStruct((rows_p, H), jnp.float32),
        grid=(rows_p // t,),
        in_specs=[pl.BlockSpec((t, H), lambda i: (i, 0)),
                  pl.BlockSpec((t, K, H), lambda i: (i, 0, 0)),
                  pl.BlockSpec((t, K, H), lambda i: (i, 0, 0)),
                  pl.BlockSpec((t, K), lambda i: (i, 0)),
                  pl.BlockSpec((t, 1), lambda i: (i, 0))]
                 + [_full_spec(a.shape) for a in wargs],
        out_specs=pl.BlockSpec((t, H), lambda i: (i, 0)),
        compiler_params=_cparams(),
        cost_estimate=_cost(flops, byt),
    )(hv2, he2, hj2, am2, xm2, *wargs)
    if rows_p != rows:
        out = out[:rows]
    return out.reshape(B, N, H)


def project_energies(w, b, h_E, x_mask, mask_j, recip_idx, recip_has):
    # Reference order: y = W_out(h_E); y *= x_mask; y = merge_dups(y); y[:, :, 0] *= eye(20).
    # The group mean commutes with the affine map, so merge at H=32 columns first, then
    # project once; the self-edge diagonal mask is folded into the same kernel, and the
    # kernel writes the final (B*N, K, 400) f32 energies with no post passes.
    B, N, K, H = h_E.shape
    out_dim = w.shape[1]
    xm = x_mask[:, :, None, None]
    u = merge_dups_recip(h_E * xm, recip_idx, recip_has)             # (B,N,K,H)
    # merged row mask (group is {edge, reciprocal edge} when the latter exists)
    c = jnp.where(recip_has, 0.5 * (x_mask[:, :, None] + mask_j), x_mask[:, :, None])

    side = int(round(out_dim ** 0.5))
    diag0 = (jnp.eye(side, dtype=jnp.float32).reshape(1, out_dim)
             if side * side == out_dim else jnp.ones((1, out_dim), jnp.float32))
    factor = jnp.concatenate([diag0, jnp.ones((K - 1, out_dim), jnp.float32)], axis=0)

    rows = B * N
    t = _choose_tile(rows, ENERGY_TILE)
    rows_p = _round_up(rows, t)
    u2 = _pad0(u.reshape(rows, K, H).astype(jnp.float32), rows_p)
    c2 = _pad0(c.reshape(rows, K).astype(jnp.float32), rows_p)
    wf = w.astype(jnp.float32)
    b2d = b.reshape(1, out_dim).astype(jnp.float32)
    out = pl.pallas_call(
        _energies_kernel,
        out_shape=jax.ShapeDtypeStruct((rows_p, K, out_dim), jnp.float32),
        grid=(rows_p // t,),
        in_specs=[pl.BlockSpec((t, K, H), lambda i: (i, 0, 0)),
                  pl.BlockSpec((t, K), lambda i: (i, 0)),
                  _full_spec((H, out_dim)),
                  _full_spec((1, out_dim)),
                  _full_spec((K, out_dim))],
        out_specs=pl.BlockSpec((t, K, out_dim), lambda i: (i, 0, 0)),
        compiler_params=_cparams(),
        cost_estimate=_cost(2 * rows_p * K * H * out_dim,
                            rows_p * K * (H + out_dim + 1) * 4),
    )(u2, c2, wf, b2d, factor)
    if rows_p != rows:
        out = out[:rows]
    return out.reshape(B, N, K, out_dim)


# ----------------------------- PairEnergies forward -----------------------------


def pair_energies_forward(params, hparams, X, x_mask, chain_idx):
    B, N = x_mask.shape
    K = hparams["k_neighbors"]

    V_raw, E_raw, E_idx = featurize(X, x_mask, chain_idx, K)
    recip_idx, recip_has = build_merge_recip(E_idx)        # get_merge_dups_mask equivalent

    # featurizer embedding fused with W_v / W_e (two affines compose; no nonlinearity between)
    wv = jnp.dot(params["feat_v_w"], params["W_v_w"])
    bv = jnp.dot(params["feat_v_b"], params["W_v_w"]) + params["W_v_b"]
    we = jnp.dot(params["feat_e_w"], params["W_e_w"])
    be = jnp.dot(params["feat_e_b"], params["W_e_w"]) + params["W_e_b"]
    h_V = pallas_linear(V_raw, wv, bv)
    h_E = pallas_linear(E_raw, we, be)

    mask_j = gather_nodes(x_mask[..., None], E_idx)[..., 0]          # neighbor-j mask
    mask_attend = x_mask[..., None] * mask_j

    for lp_e, lp_n in zip(params["edge_layers"], params["node_layers"]):
        h_j = gather_nodes(h_V, E_idx)        # shared by edge + node stages (h_V unchanged)
        h_E = edge_mpnn_layer(lp_e, h_E, h_V, E_idx, x_mask, mask_attend, h_j)
        h_E = merge_dups_recip(h_E, recip_idx, recip_has)            # edge_merge_fn='scatter'
        h_V = node_mpnn_layer(lp_n, h_V, h_E, x_mask, mask_attend, h_j)

    # W_out + x_mask + merge_dups + self-edge diagonal (energy_merge_fn == 'identical')
    etab = project_energies(params["W_out_w"], params["W_out_b"], h_E, x_mask,
                            mask_j, recip_idx, recip_has)
    return etab, h_V, E_idx


# ----------------------------- deterministic params -----------------------------


def xavier_uniform(key, shape):
    limit = (6.0 / (shape[0] + shape[1])) ** 0.5
    return jax.random.uniform(key, shape, jnp.float32, -limit, limit)


def init_params(key, hparams):
    H = hparams["energies_hidden_dim"]
    out_dim = hparams["energies_output_dim"]
    L = hparams["energies_encoder_layers"]
    keys = iter(jax.random.split(key, 256))

    def lin(din, dout):
        return xavier_uniform(next(keys), (din, dout)), jnp.zeros((dout,), jnp.float32)

    params = {}
    params["feat_v_w"], params["feat_v_b"] = lin(6, H)
    params["feat_e_w"], params["feat_e_b"] = lin(17, H)
    params["W_v_w"], params["W_v_b"] = lin(H + hparams["energies_input_dim"], H)
    params["W_e_w"], params["W_e_b"] = lin(H + hparams["energies_input_dim"], H)
    params["W_out_w"], params["W_out_b"] = lin(H, out_dim)

    def mpnn_layer(num_in):
        p = {}
        p["W1_w"], p["W1_b"] = lin(H + num_in, H)
        p["W2_w"], p["W2_b"] = lin(H, H)
        p["W3_w"], p["W3_b"] = lin(H, H)
        p["ff1_w"], p["ff1_b"] = lin(H, 4 * H)
        p["ff2_w"], p["ff2_b"] = lin(4 * H, H)
        p["norm1_g"], p["norm1_b"] = jnp.ones((H,), jnp.float32), jnp.zeros((H,), jnp.float32)
        p["norm2_g"], p["norm2_b"] = jnp.ones((H,), jnp.float32), jnp.zeros((H,), jnp.float32)
        return p

    params["edge_layers"] = [mpnn_layer(3 * H) for _ in range(L)]   # edge_layer(H, 3H)
    params["node_layers"] = [mpnn_layer(2 * H) for _ in range(L)]   # node_layer(H, 2H)
    return params


# ----------------------------- main -----------------------------

if __name__ == "__main__":
    hparams = {
        "energies_hidden_dim": 32,
        "energies_output_dim": 400,     # 20 x 20 Potts pair-energy table
        "energies_input_dim": 0,        # V_embed / E_embed = None
        "energies_dropout": 0.0,
        "energies_encoder_layers": 1,
        "energies_use_mpnn": True,
        "k_neighbors": 8,
        "edge_merge_fn": "scatter",
        "energy_merge_fn": "identical",
        "use_edges_for_nodes": False,
        "ener_finetune_mlp": False,
        "mpnn_decoder": False,
        "side_chain_graph": False,
        "node_self_sub": False,
        "nonlinear_features": False,
        "featurizer": "multichain",
    }
    B, N = 2, 8
    key = jax.random.PRNGKey(0)
    kp, kx = jax.random.split(key)
    params = init_params(kp, hparams)

    # synthetic backbone: 4 atoms per residue, residues spread along an axis
    X = jax.random.normal(kx, (B, N, 4, 3), jnp.float32) + \
        jnp.arange(N, dtype=jnp.float32)[None, :, None, None] * 3.0
    x_mask = jnp.ones((B, N), jnp.float32).at[1, N - 1].set(0.0)
    chain_idx = jnp.concatenate(
        [jnp.zeros((B, N // 2), jnp.int32), jnp.ones((B, N - N // 2), jnp.int32)], axis=1)

    fwd = jax.jit(functools.partial(pair_energies_forward, params, hparams))
    etab, h_V, E_idx = fwd(X, x_mask, chain_idx)
    jax.block_until_ready((etab, h_V, E_idx))

    assert etab.shape == (B, N, hparams["k_neighbors"], hparams["energies_output_dim"])
    assert h_V.shape == (B, N, hparams["energies_hidden_dim"])
    assert E_idx.shape == (B, N, hparams["k_neighbors"])
    assert bool(jnp.all(jnp.isfinite(etab))) and bool(jnp.all(jnp.isfinite(h_V)))
    print("KERNEL_OK")
</pallas_src>

<mosaic_0001>
module attributes {stable_mosaic.version = 11 : i64} {
  func.func private @main(%arg0: i32) attributes {dimension_semantics = [#tpu.dimension_semantics<core_parallel>], iteration_bounds = array<i64: 2>, tpu.core_type = #tpu.core_type<sc_scalar_subcore>, window_params = []} {
    return
  }
}

module attributes {stable_mosaic.version = 11 : i64} {
  func.func private @main(%arg0: i32) attributes {dimension_semantics = [#tpu.dimension_semantics<core_parallel>], iteration_bounds = array<i64: 2>, tpu.core_type = #tpu.core_type<sc_scalar_subcore>, window_params = []} {
    return
  }
}

module attributes {stable_mosaic.version = 11 : i64} {
  func.func @_linear_kernel(%arg0: i32, %arg1: memref<64x17xf32, #tpu.memory_space<vmem>>, %arg2: memref<17x32xbf16, #tpu.memory_space<vmem>>, %arg3: memref<1x32xf32, #tpu.memory_space<vmem>>, %arg4: memref<64x32xf32, #tpu.memory_space<vmem>>) attributes {dimension_semantics = [#tpu.dimension_semantics<parallel>], iteration_bounds = array<i64: 2>, scalar_prefetch = 0 : i64, scratch_operands = 0 : i64, tpu.core_type = #tpu.core_type<tc>, window_params = [{transform_indices = @transform_0, window_bounds = array<i64: 64, 17>}, {pipeline_mode = #tpu.pipeline_mode<synchronous>, transform_indices = @transform_1, window_bounds = array<i64: 17, 32>}, {pipeline_mode = #tpu.pipeline_mode<synchronous>, transform_indices = @transform_2, window_bounds = array<i64: 1, 32>}, {transform_indices = @transform_3, window_bounds = array<i64: 64, 32>}]} {
    %c0 = arith.constant 0 : index
    %c0_0 = arith.constant 0 : index
    %0 = vector.load %arg1[%c0, %c0_0] : memref<64x17xf32, #tpu.memory_space<vmem>>, vector<64x17xf32>
    %c0_1 = arith.constant 0 : index
    %c0_2 = arith.constant 0 : index
    %1 = vector.load %arg2[%c0_1, %c0_2] : memref<17x32xbf16, #tpu.memory_space<vmem>>, vector<17x32xbf16>
    %2 = arith.truncf %0 : vector<64x17xf32> to vector<64x17xbf16>
    %cst = arith.constant dense<0.000000e+00> : vector<64x32xf32>
    %3 = tpu.matmul %2, %1, %cst {dimension_numbers = #tpu.dot_dimension_numbers<[1], [0], [0], [1], [0, 0, 1, 1], [], []>} : vector<64x17xbf16>, vector<17x32xbf16>, vector<64x32xf32> -> vector<64x32xf32>
    %c0_3 = arith.constant 0 : index
    %c0_4 = arith.constant 0 : index
    %4 = vector.load %arg3[%c0_3, %c0_4] : memref<1x32xf32, #tpu.memory_space<vmem>>, vector<1x32xf32>
    %5 = vector.broadcast %4 : vector<1x32xf32> to vector<64x32xf32>
    %6 = arith.addf %3, %5 : vector<64x32xf32>
    %c0_5 = arith.constant 0 : index
    %c0_6 = arith.constant 0 : index
    %7 = vector.load %arg4[%c0_5, %c0_6] : memref<64x32xf32, #tpu.memory_space<vmem>>, vector<64x32xf32>
    tpu.vector_store %arg4[%c0_5, %c0_6], %6 {strides = array<i32>} : memref<64x32xf32, #tpu.memory_space<vmem>>, vector<64x32xf32>,
    return
  }
  func.func @transform_0(%arg0: i32) -> (i32, i32) {
    %c0_i32 = arith.constant 0 : i32
    %c0_i32_0 = arith.constant 0 : i32
    return %arg0, %c0_i32 : i32, i32
  }
  func.func @transform_1(%arg0: i32) -> (i32, i32) {
    %c0_i32 = arith.constant 0 : i32
    %c0_i32_0 = arith.constant 0 : i32
    %c0_i32_1 = arith.constant 0 : i32
    return %c0_i32, %c0_i32_0 : i32, i32
  }
  func.func @transform_2(%arg0: i32) -> (i32, i32) {
    %c0_i32 = arith.constant 0 : i32
    %c0_i32_0 = arith.constant 0 : i32
    %c0_i32_1 = arith.constant 0 : i32
    return %c0_i32, %c0_i32_0 : i32, i32
  }
  func.func @transform_3(%arg0: i32) -> (i32, i32) {
    %c0_i32 = arith.constant 0 : i32
    %c0_i32_0 = arith.constant 0 : i32
    return %arg0, %c0_i32 : i32, i32
  }
}

module attributes {stable_mosaic.version = 11 : i64} {
  func.func @_linear_kernel(%arg0: i32, %arg1: memref<8x6xf32, #tpu.memory_space<vmem>>, %arg2: memref<6x32xbf16, #tpu.memory_space<vmem>>, %arg3: memref<1x32xf32, #tpu.memory_space<vmem>>, %arg4: memref<8x32xf32, #tpu.memory_space<vmem>>) attributes {dimension_semantics = [#tpu.dimension_semantics<parallel>], iteration_bounds = array<i64: 2>, scalar_prefetch = 0 : i64, scratch_operands = 0 : i64, tpu.core_type = #tpu.core_type<tc>, window_params = [{transform_indices = @transform_0, window_bounds = array<i64: 8, 6>}, {pipeline_mode = #tpu.pipeline_mode<synchronous>, transform_indices = @transform_1, window_bounds = array<i64: 6, 32>}, {pipeline_mode = #tpu.pipeline_mode<synchronous>, transform_indices = @transform_2, window_bounds = array<i64: 1, 32>}, {transform_indices = @transform_3, window_bounds = array<i64: 8, 32>}]} {
    %c0 = arith.constant 0 : index
    %c0_0 = arith.constant 0 : index
    %0 = vector.load %arg1[%c0, %c0_0] : memref<8x6xf32, #tpu.memory_space<vmem>>, vector<8x6xf32>
    %c0_1 = arith.constant 0 : index
    %c0_2 = arith.constant 0 : index
    %1 = vector.load %arg2[%c0_1, %c0_2] : memref<6x32xbf16, #tpu.memory_space<vmem>>, vector<6x32xbf16>
    %2 = arith.truncf %0 : vector<8x6xf32> to vector<8x6xbf16>
    %cst = arith.constant dense<0.000000e+00> : vector<8x32xf32>
    %3 = tpu.matmul %2, %1, %cst {dimension_numbers = #tpu.dot_dimension_numbers<[1], [0], [0], [1], [0, 0, 1, 1], [], []>} : vector<8x6xbf16>, vector<6x32xbf16>, vector<8x32xf32> -> vector<8x32xf32>
    %c0_3 = arith.constant 0 : index
    %c0_4 = arith.constant 0 : index
    %4 = vector.load %arg3[%c0_3, %c0_4] : memref<1x32xf32, #tpu.memory_space<vmem>>, vector<1x32xf32>
    %5 = vector.broadcast %4 : vector<1x32xf32> to vector<8x32xf32>
    %6 = arith.addf %3, %5 : vector<8x32xf32>
    %c0_5 = arith.constant 0 : index
    %c0_6 = arith.constant 0 : index
    %7 = vector.load %arg4[%c0_5, %c0_6] : memref<8x32xf32, #tpu.memory_space<vmem>>, vector<8x32xf32>
    tpu.vector_store %arg4[%c0_5, %c0_6], %6 {strides = array<i32>} : memref<8x32xf32, #tpu.memory_space<vmem>>, vector<8x32xf32>,
    return
  }
  func.func @transform_0(%arg0: i32) -> (i32, i32) {
    %c0_i32 = arith.constant 0 : i32
    %c0_i32_0 = arith.constant 0 : i32
    return %arg0, %c0_i32 : i32, i32
  }
  func.func @transform_1(%arg0: i32) -> (i32, i32) {
    %c0_i32 = arith.constant 0 : i32
    %c0_i32_0 = arith.constant 0 : i32
    %c0_i32_1 = arith.constant 0 : i32
    return %c0_i32, %c0_i32_0 : i32, i32
  }
  func.func @transform_2(%arg0: i32) -> (i32, i32) {
    %c0_i32 = arith.constant 0 : i32
    %c0_i32_0 = arith.constant 0 : i32
    %c0_i32_1 = arith.constant 0 : i32
    return %c0_i32, %c0_i32_0 : i32, i32
  }
  func.func @transform_3(%arg0: i32) -> (i32, i32) {
    %c0_i32 = arith.constant 0 : i32
    %c0_i32_0 = arith.constant 0 : i32
    return %arg0, %c0_i32 : i32, i32
  }
}

module attributes {stable_mosaic.version = 11 : i64} {
  func.func @_edge_layer_kernel(%arg0: i32, %arg1: memref<8x8x32xf32, #tpu.memory_space<vmem>>, %arg2: memref<8x32xf32, #tpu.memory_space<vmem>>, %arg3: memref<8x8x32xf32, #tpu.memory_space<vmem>>, %arg4: memref<8x8xf32, #tpu.memory_space<vmem>>, %arg5: memref<8x1xf32, #tpu.memory_space<vmem>>, %arg6: memref<32x32xbf16, #tpu.memory_space<vmem>>, %arg7: memref<32x32xbf16, #tpu.memory_space<vmem>>, %arg8: memref<32x32xbf16, #tpu.memory_space<vmem>>, %arg9: memref<1x32xf32, #tpu.memory_space<vmem>>, %arg10: memref<32x32xbf16, #tpu.memory_space<vmem>>, %arg11: memref<1x32xf32, #tpu.memory_space<vmem>>, %arg12: memref<32x32xbf16, #tpu.memory_space<vmem>>, %arg13: memref<1x32xf32, #tpu.memory_space<vmem>>, %arg14: memref<1x32xf32, #tpu.memory_space<vmem>>, %arg15: memref<1x32xf32, #tpu.memory_space<vmem>>, %arg16: memref<32x128xbf16, #tpu.memory_space<vmem>>, %arg17: memref<1x128xf32, #tpu.memory_space<vmem>>, %arg18: memref<128x32xbf16, #tpu.memory_space<vmem>>, %arg19: memref<1x32xf32, #tpu.memory_space<vmem>>, %arg20: memref<1x32xf32, #tpu.memory_space<vmem>>, %arg21: memref<1x32xf32, #tpu.memory_space<vmem>>, %arg22: memref<8x8x32xf32, #tpu.memory_space<vmem>>) attributes {dimension_semantics = [#tpu.dimension_semantics<parallel>], iteration_bounds = array<i64: 2>, scalar_prefetch = 0 : i64, scratch_operands = 0 : i64, tpu.core_type = #tpu.core_type<tc>, window_params = [{transform_indices = @transform_0, window_bounds = array<i64: 8, 8, 32>}, {transform_indices = @transform_1, window_bounds = array<i64: 8, 32>}, {transform_indices = @transform_2, window_bounds = array<i64: 8, 8, 32>}, {transform_indices = @transform_3, window_bounds = array<i64: 8, 8>}, {transform_indices = @transform_4, window_bounds = array<i64: 8, 1>}, {pipeline_mode = #tpu.pipeline_mode<synchronous>, transform_indices = @transform_5, window_bounds = array<i64: 32, 32>}, {pipeline_mode = #tpu.pipeline_mode<synchronous>, transform_indices = @transform_6, window_bounds = array<i64: 32, 32>}, {pipeline_mode = #tpu.pipeline_mode<synchronous>, transform_indices = @transform_7, window_bounds = array<i64: 32, 32>}, {pipeline_mode = #tpu.pipeline_mode<synchronous>, transform_indices = @transform_8, window_bounds = array<i64: 1, 32>}, {pipeline_mode = #tpu.pipeline_mode<synchronous>, transform_indices = @transform_9, window_bounds = array<i64: 32, 32>}, {pipeline_mode = #tpu.pipeline_mode<synchronous>, transform_indices = @transform_10, window_bounds = array<i64: 1, 32>}, {pipeline_mode = #tpu.pipeline_mode<synchronous>, transform_indices = @transform_11, window_bounds = array<i64: 32, 32>}, {pipeline_mode = #tpu.pipeline_mode<synchronous>, transform_indices = @transform_12, window_bounds = array<i64: 1, 32>}, {pipeline_mode = #tpu.pipeline_mode<synchronous>, transform_indices = @transform_13, window_bounds = array<i64: 1, 32>}, {pipeline_mode = #tpu.pipeline_mode<synchronous>, transform_indices = @transform_14, window_bounds = array<i64: 1, 32>}, {pipeline_mode = #tpu.pipeline_mode<synchronous>, transform_indices = @transform_15, window_bounds = array<i64: 32, 128>}, {pipeline_mode = #tpu.pipeline_mode<synchronous>, transform_indices = @transform_16, window_bounds = array<i64: 1, 128>}, {pipeline_mode = #tpu.pipeline_mode<synchronous>, transform_indices = @transform_17, window_bounds = array<i64: 128, 32>}, {pipeline_mode = #tpu.pipeline_mode<synchronous>, transform_indices = @transform_18, window_bounds = array<i64: 1, 32>}, {pipeline_mode = #tpu.pipeline_mode<synchronous>, transform_indices = @transform_19, window_bounds = array<i64: 1, 32>}, {pipeline_mode = #tpu.pipeline_mode<synchronous>, transform_indices = @transform_20, window_bounds = array<i64: 1, 32>}, {transform_indices = @transform_21, window_bounds = array<i64: 8, 8, 32>}]} {
    %c0 = arith.constant 0 : index
    %c0_0 = arith.constant 0 : index
    %c0_1 = arith.constant 0 : index
    %0 = vector.load %arg1[%c0, %c0_0, %c0_1] : memref<8x8x32xf32, #tpu.memory_space<vmem>>, vector<8x8x32xf32>
    %1 = vector.shape_cast %0 : vector<8x8x32xf32> to vector<64x32xf32>
    %c0_2 = arith.constant 0 : index
    %c0_3 = arith.constant 0 : index
    %2 = vector.load %arg6[%c0_2, %c0_3] : memref<32x32xbf16, #tpu.memory_space<vmem>>, vector<32x32xbf16>
    %3 = arith.truncf %1 : vector<64x32xf32> to vector<64x32xbf16>
    %cst = arith.constant dense<0.000000e+00> : vector<64x32xf32>
    %4 = tpu.matmul %3, %2, %cst {dimension_numbers = #tpu.dot_dimension_numbers<[1], [0], [0], [1], [0, 0, 1, 1], [], []>} : vector<64x32xbf16>, vector<32x32xbf16>, vector<64x32xf32> -> vector<64x32xf32>
    %c0_4 = arith.constant 0 : index
    %c0_5 = arith.constant 0 : index
    %c0_6 = arith.constant 0 : index
    %5 = vector.load %arg3[%c0_4, %c0_5, %c0_6] : memref<8x8x32xf32, #tpu.memory_space<vmem>>, vector<8x8x32xf32>
    %6 = vector.shape_cast %5 : vector<8x8x32xf32> to vector<64x32xf32>
    %c0_7 = arith.constant 0 : index
    %c0_8 = arith.constant 0 : index
    %7 = vector.load %arg8[%c0_7, %c0_8] : memref<32x32xbf16, #tpu.memory_space<vmem>>, vector<32x32xbf16>
    %8 = arith.truncf %6 : vector<64x32xf32> to vector<64x32xbf16>
    %cst_9 = arith.constant dense<0.000000e+00> : vector<64x32xf32>
    %9 = tpu.matmul %8, %7, %cst_9 {dimension_numbers = #tpu.dot_dimension_numbers<[1], [0], [0], [1], [0, 0, 1, 1], [], []>} : vector<64x32xbf16>, vector<32x32xbf16>, vector<64x32xf32> -> vector<64x32xf32>
    %10 = arith.addf %4, %9 : vector<64x32xf32>
    %c0_10 = arith.constant 0 : index
    %c0_11 = arith.constant 0 : index
    %11 = vector.load %arg9[%c0_10, %c0_11] : memref<1x32xf32, #tpu.memory_space<vmem>>, vector<1x32xf32>
    %12 = vector.broadcast %11 : vector<1x32xf32> to vector<64x32xf32>
    %13 = arith.addf %10, %12 : vector<64x32xf32>
    %14 = vector.shape_cast %13 : vector<64x32xf32> to vector<8x8x32xf32>
    %c0_12 = arith.constant 0 : index
    %c0_13 = arith.constant 0 : index
    %15 = vector.load %arg2[%c0_12, %c0_13] : memref<8x32xf32, #tpu.memory_space<vmem>>, vector<8x32xf32>
    %c0_14 = arith.constant 0 : index
    %c0_15 = arith.constant 0 : index
    %16 = vector.load %arg7[%c0_14, %c0_15] : memref<32x32xbf16, #tpu.memory_space<vmem>>, vector<32x32xbf16>
    %17 = arith.truncf %15 : vector<8x32xf32> to vector<8x32xbf16>
    %cst_16 = arith.constant dense<0.000000e+00> : vector<8x32xf32>
    %18 = tpu.matmul %17, %16, %cst_16 {dimension_numbers = #tpu.dot_dimension_numbers<[1], [0], [0], [1], [0, 0, 1, 1], [], []>} : vector<8x32xbf16>, vector<32x32xbf16>, vector<8x32xf32> -> vector<8x32xf32>
    %19 = vector.shape_cast %18 : vector<8x32xf32> to vector<8x1x32xf32>
    %20 = vector.broadcast %19 : vector<8x1x32xf32> to vector<8x8x32xf32>
    %21 = arith.addf %14, %20 : vector<8x8x32xf32>
    %cst_17 = arith.constant 0.000000e+00 : f32
    %22 = vector.broadcast %cst_17 : f32 to vector<8x8x32xf32>
    %23 = arith.maximumf %21, %22 : vector<8x8x32xf32>
    %24 = vector.shape_cast %23 : vector<8x8x32xf32> to vector<64x32xf32>
    %c0_18 = arith.constant 0 : index
    %c0_19 = arith.constant 0 : index
    %25 = vector.load %arg10[%c0_18, %c0_19] : memref<32x32xbf16, #tpu.memory_space<vmem>>, vector<32x32xbf16>
    %26 = arith.truncf %24 : vector<64x32xf32> to vector<64x32xbf16>
    %cst_20 = arith.constant dense<0.000000e+00> : vector<64x32xf32>
    %27 = tpu.matmul %26, %25, %cst_20 {dimension_numbers = #tpu.dot_dimension_numbers<[1], [0], [0], [1], [0, 0, 1, 1], [], []>} : vector<64x32xbf16>, vector<32x32xbf16>, vector<64x32xf32> -> vector<64x32xf32>
    %c0_21 = arith.constant 0 : index
    %c0_22 = arith.constant 0 : index
    %28 = vector.load %arg11[%c0_21, %c0_22] : memref<1x32xf32, #tpu.memory_space<vmem>>, vector<1x32xf32>
    %29 = vector.broadcast %28 : vector<1x32xf32> to vector<64x32xf32>
    %30 = arith.addf %27, %29 : vector<64x32xf32>
    %cst_23 = arith.constant 0.000000e+00 : f32
    %31 = vector.broadcast %cst_23 : f32 to vector<64x32xf32>
    %32 = arith.maximumf %30, %31 : vector<64x32xf32>
    %c0_24 = arith.constant 0 : index
    %c0_25 = arith.constant 0 : index
    %33 = vector.load %arg12[%c0_24, %c0_25] : memref<32x32xbf16, #tpu.memory_space<vmem>>, vector<32x32xbf16>
    %34 = arith.truncf %32 : vector<64x32xf32> to vector<64x32xbf16>
    %cst_26 = arith.constant dense<0.000000e+00> : vector<64x32xf32>
    %35 = tpu.matmul %34, %33, %cst_26 {dimension_numbers = #tpu.dot_dimension_numbers<[1], [0], [0], [1], [0, 0, 1, 1], [], []>} : vector<64x32xbf16>, vector<32x32xbf16>, vector<64x32xf32> -> vector<64x32xf32>
    %c0_27 = arith.constant 0 : index
    %c0_28 = arith.constant 0 : index
    %36 = vector.load %arg13[%c0_27, %c0_28] : memref<1x32xf32, #tpu.memory_space<vmem>>, vector<1x32xf32>
    %37 = vector.broadcast %36 : vector<1x32xf32> to vector<64x32xf32>
    %38 = arith.addf %35, %37 : vector<64x32xf32>
    %39 = vector.shape_cast %38 : vector<64x32xf32> to vector<8x8x32xf32>
    %c0_29 = arith.constant 0 : index
    %c0_30 = arith.constant 0 : index
    %40 = vector.load %arg4[%c0_29, %c0_30] : memref<8x8xf32, #tpu.memory_space<vmem>>, vector<8x8xf32>
    %41 = vector.shape_cast %40 : vector<8x8xf32> to vector<8x8x1xf32>
    %42 = vector.broadcast %41 : vector<8x8x1xf32> to vector<8x8x32xf32>
    %43 = arith.mulf %39, %42 : vector<8x8x32xf32>
    %44 = arith.addf %0, %43 : vector<8x8x32xf32>
    %c0_31 = arith.constant 0 : index
    %c0_32 = arith.constant 0 : index
    %45 = vector.load %arg14[%c0_31, %c0_32] : memref<1x32xf32, #tpu.memory_space<vmem>>, vector<1x32xf32>
    %c0_33 = arith.constant 0 : index
    %c0_34 = arith.constant 0 : index
    %46 = vector.load %arg15[%c0_33, %c0_34] : memref<1x32xf32, #tpu.memory_space<vmem>>, vector<1x32xf32>
    %cst_35 = arith.constant dense<0.000000e+00> : vector<8x8xf32>
    %47 = vector.multi_reduction <add>, %44, %cst_35 [2] : vector<8x8x32xf32> to vector<8x8xf32>
    %48 = vector.shape_cast %47 : vector<8x8xf32> to vector<8x8x1xf32>
    %cst_36 = arith.constant 3.200000e+01 : f32
    %49 = vector.broadcast %cst_36 : f32 to vector<8x8x1xf32>
    %50 = arith.divf %48, %49 : vector<8x8x1xf32>
    %51 = vector.broadcast %50 : vector<8x8x1xf32> to vector<8x8x32xf32>
    %52 = arith.subf %44, %51 : vector<8x8x32xf32>
    %53 = arith.mulf %52, %52 : vector<8x8x32xf32>
    %cst_37 = arith.constant dense<0.000000e+00> : vector<8x8xf32>
    %54 = vector.multi_reduction <add>, %53, %cst_37 [2] : vector<8x8x32xf32> to vector<8x8xf32>
    %55 = vector.shape_cast %54 : vector<8x8xf32> to vector<8x8x1xf32>
    %cst_38 = arith.constant 3.200000e+01 : f32
    %56 = vector.broadcast %cst_38 : f32 to vector<8x8x1xf32>
    %57 = arith.divf %55, %56 : vector<8x8x1xf32>
    %cst_39 = arith.constant 9.99999974E-6 : f32
    %58 = vector.broadcast %cst_39 : f32 to vector<8x8x1xf32>
    %59 = arith.addf %57, %58 : vector<8x8x1xf32>
    %60 = math.rsqrt %59 : vector<8x8x1xf32>
    %61 = vector.broadcast %60 : vector<8x8x1xf32> to vector<8x8x32xf32>
    %62 = arith.mulf %52, %61 : vector<8x8x32xf32>
    %63 = vector.shape_cast %45 : vector<1x32xf32> to vector<1x1x32xf32>
    %64 = vector.broadcast %63 : vector<1x1x32xf32> to vector<8x8x32xf32>
    %65 = arith.mulf %62, %64 : vector<8x8x32xf32>
    %66 = vector.shape_cast %46 : vector<1x32xf32> to vector<1x1x32xf32>
    %67 = vector.broadcast %66 : vector<1x1x32xf32> to vector<8x8x32xf32>
    %68 = arith.addf %65, %67 : vector<8x8x32xf32>
    %69 = vector.shape_cast %68 : vector<8x8x32xf32> to vector<64x32xf32>
    %c0_40 = arith.constant 0 : index
    %c0_41 = arith.constant 0 : index
    %70 = vector.load %arg16[%c0_40, %c0_41] : memref<32x128xbf16, #tpu.memory_space<vmem>>, vector<32x128xbf16>
    %71 = arith.truncf %69 : vector<64x32xf32> to vector<64x32xbf16>
    %cst_42 = arith.constant dense<0.000000e+00> : vector<64x128xf32>
    %72 = tpu.matmul %71, %70, %cst_42 {dimension_numbers = #tpu.dot_dimension_numbers<[1], [0], [0], [1], [0, 0, 1, 1], [], []>} : vector<64x32xbf16>, vector<32x128xbf16>, vector<64x128xf32> -> vector<64x128xf32>
    %c0_43 = arith.constant 0 : index
    %c0_44 = arith.constant 0 : index
    %73 = vector.load %arg17[%c0_43, %c0_44] : memref<1x128xf32, #tpu.memory_space<vmem>>, vector<1x128xf32>
    %74 = vector.broadcast %73 : vector<1x128xf32> to vector<64x128xf32>
    %75 = arith.addf %72, %74 : vector<64x128xf32>
    %cst_45 = arith.constant 0.000000e+00 : f32
    %76 = vector.broadcast %cst_45 : f32 to vector<64x128xf32>
    %77 = arith.maximumf %75, %76 : vector<64x128xf32>
    %c0_46 = arith.constant 0 : index
    %c0_47 = arith.constant 0 : index
    %78 = vector.load %arg18[%c0_46, %c0_47] : memref<128x32xbf16, #tpu.memory_space<vmem>>, vector<128x32xbf16>
    %79 = arith.truncf %77 : vector<64x128xf32> to vector<64x128xbf16>
    %cst_48 = arith.constant dense<0.000000e+00> : vector<64x32xf32>
    %80 = tpu.matmul %79, %78, %cst_48 {dimension_numbers = #tpu.dot_dimension_numbers<[1], [0], [0], [1], [0, 0, 1, 1], [], []>} : vector<64x128xbf16>, vector<128x32xbf16>, vector<64x32xf32> -> vector<64x32xf32>
    %c0_49 = arith.constant 0 : index
    %c0_50 = arith.constant 0 : index
    %81 = vector.load %arg19[%c0_49, %c0_50] : memref<1x32xf32, #tpu.memory_space<vmem>>, vector<1x32xf32>
    %82 = vector.broadcast %81 : vector<1x32xf32> to vector<64x32xf32>
    %83 = arith.addf %80, %82 : vector<64x32xf32>
    %84 = vector.shape_cast %83 : vector<64x32xf32> to vector<8x8x32xf32>
    %85 = arith.addf %68, %84 : vector<8x8x32xf32>
    %c0_51 = arith.constant 0 : index
    %c0_52 = arith.constant 0 : index
    %86 = vector.load %arg20[%c0_51, %c0_52] : memref<1x32xf32, #tpu.memory_space<vmem>>, vector<1x32xf32>
    %c0_53 = arith.constant 0 : index
    %c0_54 = arith.constant 0 : index
    %87 = vector.load %arg21[%c0_53, %c0_54] : memref<1x32xf32, #tpu.memory_space<vmem>>, vector<1x32xf32>
    %cst_55 = arith.constant dense<0.000000e+00> : vector<8x8xf32>
    %88 = vector.multi_reduction <add>, %85, %cst_55 [2] : vector<8x8x32xf32> to vector<8x8xf32>
    %89 = vector.shape_cast %88 : vector<8x8xf32> to vector<8x8x1xf32>
    %cst_56 = arith.constant 3.200000e+01 : f32
    %90 = vector.broadcast %cst_56 : f32 to vector<8x8x1xf32>
    %91 = arith.divf %89, %90 : vector<8x8x1xf32>
    %92 = vector.broadcast %91 : vector<8x8x1xf32> to vector<8x8x32xf32>
    %93 = arith.subf %85, %92 : vector<8x8x32xf32>
    %94 = arith.mulf %93, %93 : vector<8x8x32xf32>
    %cst_57 = arith.constant dense<0.000000e+00> : vector<8x8xf32>
    %95 = vector.multi_reduction <add>, %94, %cst_57 [2] : vector<8x8x32xf32> to vector<8x8xf32>
    %96 = vector.shape_cast %95 : vector<8x8xf32> to vector<8x8x1xf32>
    %cst_58 = arith.constant 3.200000e+01 : f32
    %97 = vector.broadcast %cst_58 : f32 to vector<8x8x1xf32>
    %98 = arith.divf %96, %97 : vector<8x8x1xf32>
    %cst_59 = arith.constant 9.99999974E-6 : f32
    %99 = vector.broadcast %cst_59 : f32 to vector<8x8x1xf32>
    %100 = arith.addf %98, %99 : vector<8x8x1xf32>
    %101 = math.rsqrt %100 : vector<8x8x1xf32>
    %102 = vector.broadcast %101 : vector<8x8x1xf32> to vector<8x8x32xf32>
    %103 = arith.mulf %93, %102 : vector<8x8x32xf32>
    %104 = vector.shape_cast %86 : vector<1x32xf32> to vector<1x1x32xf32>
    %105 = vector.broadcast %104 : vector<1x1x32xf32> to vector<8x8x32xf32>
    %106 = arith.mulf %103, %105 : vector<8x8x32xf32>
    %107 = vector.shape_cast %87 : vector<1x32xf32> to vector<1x1x32xf32>
    %108 = vector.broadcast %107 : vector<1x1x32xf32> to vector<8x8x32xf32>
    %109 = arith.addf %106, %108 : vector<8x8x32xf32>
    %c0_60 = arith.constant 0 : index
    %c0_61 = arith.constant 0 : index
    %110 = vector.load %arg5[%c0_60, %c0_61] : memref<8x1xf32, #tpu.memory_space<vmem>>, vector<8x1xf32>
    %111 = vector.shape_cast %110 : vector<8x1xf32> to vector<8x1x1xf32>
    %112 = vector.broadcast %111 : vector<8x1x1xf32> to vector<8x8x32xf32>
    %113 = arith.mulf %109, %112 : vector<8x8x32xf32>
    %c0_62 = arith.constant 0 : index
    %c0_63 = arith.constant 0 : index
    %c0_64 = arith.constant 0 : index
    %114 = vector.load %arg22[%c0_62, %c0_63, %c0_64] : memref<8x8x32xf32, #tpu.memory_space<vmem>>, vector<8x8x32xf32>
    tpu.vector_store %arg22[%c0_62, %c0_63, %c0_64], %113 {strides = array<i32>} : memref<8x8x32xf32, #tpu.memory_space<vmem>>, vector<8x8x32xf32>,
    return
  }
  func.func @transform_0(%arg0: i32) -> (i32, i32, i32) {
    %c0_i32 = arith.constant 0 : i32
    %c0_i32_0 = arith.constant 0 : i32
    %c0_i32_1 = arith.constant 0 : i32
    return %arg0, %c0_i32, %c0_i32_0 : i32, i32, i32
  }
  func.func @transform_1(%arg0: i32) -> (i32, i32) {
    %c0_i32 = arith.constant 0 : i32
    %c0_i32_0 = arith.constant 0 : i32
    return %arg0, %c0_i32 : i32, i32
  }
  func.func @transform_2(%arg0: i32) -> (i32, i32, i32) {
    %c0_i32 = arith.constant 0 : i32
    %c0_i32_0 = arith.constant 0 : i32
    %c0_i32_1 = arith.constant 0 : i32
    return %arg0, %c0_i32, %c0_i32_0 : i32, i32, i32
  }
  func.func @transform_3(%arg0: i32) -> (i32, i32) {
    %c0_i32 = arith.constant 0 : i32
    %c0_i32_0 = arith.constant 0 : i32
    return %arg0, %c0_i32 : i32, i32
  }
  func.func @transform_4(%arg0: i32) -> (i32, i32) {
    %c0_i32 = arith.constant 0 : i32
    %c0_i32_0 = arith.constant 0 : i32
    return %arg0, %c0_i32 : i32, i32
  }
  func.func @transform_5(%arg0: i32) -> (i32, i32) {
    %c0_i32 = arith.constant 0 : i32
    %c0_i32_0 = arith.constant 0 : i32
    %c0_i32_1 = arith.constant 0 : i32
    return %c0_i32, %c0_i32_0 : i32, i32
  }
  func.func @transform_6(%arg0: i32) -> (i32, i32) {
    %c0_i32 = arith.constant 0 : i32
    %c0_i32_0 = arith.constant 0 : i32
    %c0_i32_1 = arith.constant 0 : i32
    return %c0_i32, %c0_i32_0 : i32, i32
  }
  func.func @transform_7(%arg0: i32) -> (i32, i32) {
    %c0_i32 = arith.constant 0 : i32
    %c0_i32_0 = arith.constant 0 : i32
    %c0_i32_1 = arith.constant 0 : i32
    return %c0_i32, %c0_i32_0 : i32, i32
  }
  func.func @transform_8(%arg0: i32) -> (i32, i32) {
    %c0_i32 = arith.constant 0 : i32
    %c0_i32_0 = arith.constant 0 : i32
    %c0_i32_1 = arith.constant 0 : i32
    return %c0_i32, %c0_i32_0 : i32, i32
  }
  func.func @transform_9(%arg0: i32) -> (i32, i32) {
    %c0_i32 = arith.constant 0 : i32
    %c0_i32_0 = arith.constant 0 : i32
    %c0_i32_1 = arith.constant 0 : i32
    return %c0_i32, %c0_i32_0 : i32, i32
  }
  func.func @transform_10(%arg0: i32) -> (i32, i32) {
    %c0_i32 = arith.constant 0 : i32
    %c0_i32_0 = arith.constant 0 : i32
    %c0_i32_1 = arith.constant 0 : i32
    return %c0_i32, %c0_i32_0 : i32, i32
  }
  func.func @transform_11(%arg0: i32) -> (i32, i32) {
    %c0_i32 = arith.constant 0 : i32
    %c0_i32_0 = arith.constant 0 : i32
    %c0_i32_1 = arith.constant 0 : i32
    return %c0_i32, %c0_i32_0 : i32, i32
  }
  func.func @transform_12(%arg0: i32) -> (i32, i32) {
    %c0_i32 = arith.constant 0 : i32
    %c0_i32_0 = arith.constant 0 : i32
    %c0_i32_1 = arith.constant 0 : i32
    return %c0_i32, %c0_i32_0 : i32, i32
  }
  func.func @transform_13(%arg0: i32) -> (i32, i32) {
    %c0_i32 = arith.constant 0 : i32
    %c0_i32_0 = arith.constant 0 : i32
    %c0_i32_1 = arith.constant 0 : i32
    return %c0_i32, %c0_i32_0 : i32, i32
  }
  func.func @transform_14(%arg0: i32) -> (i32, i32) {
    %c0_i32 = arith.constant 0 : i32
    %c0_i32_0 = arith.constant 0 : i32
    %c0_i32_1 = arith.constant 0 : i32
    return %c0_i32, %c0_i32_0 : i32, i32
  }
  func.func @transform_15(%arg0: i32) -> (i32, i32) {
    %c0_i32 = arith.constant 0 : i32
    %c0_i32_0 = arith.constant 0 : i32
    %c0_i32_1 = arith.constant 0 : i32
    return %c0_i32, %c0_i32_0 : i32, i32
  }
  func.func @transform_16(%arg0: i32) -> (i32, i32) {
    %c0_i32 = arith.constant 0 : i32
    %c0_i32_0 = arith.constant 0 : i32
    %c0_i32_1 = arith.constant 0 : i32
    return %c0_i32, %c0_i32_0 : i32, i32
  }
  func.func @transform_17(%arg0: i32) -> (i32, i32) {
    %c0_i32 = arith.constant 0 : i32
    %c0_i32_0 = arith.constant 0 : i32
    %c0_i32_1 = arith.constant 0 : i32
    return %c0_i32, %c0_i32_0 : i32, i32
  }
  func.func @transform_18(%arg0: i32) -> (i32, i32) {
    %c0_i32 = arith.constant 0 : i32
    %c0_i32_0 = arith.constant 0 : i32
    %c0_i32_1 = arith.constant 0 : i32
    return %c0_i32, %c0_i32_0 : i32, i32
  }
  func.func @transform_19(%arg0: i32) -> (i32, i32) {
    %c0_i32 = arith.constant 0 : i32
    %c0_i32_0 = arith.constant 0 : i32
    %c0_i32_1 = arith.constant 0 : i32
    return %c0_i32, %c0_i32_0 : i32, i32
  }
  func.func @transform_20(%arg0: i32) -> (i32, i32) {
    %c0_i32 = arith.constant 0 : i32
    %c0_i32_0 = arith.constant 0 : i32
    %c0_i32_1 = arith.constant 0 : i32
    return %c0_i32, %c0_i32_0 : i32, i32
  }
  func.func @transform_21(%arg0: i32) -> (i32, i32, i32) {
    %c0_i32 = arith.constant 0 : i32
    %c0_i32_0 = arith.constant 0 : i32
    %c0_i32_1 = arith.constant 0 : i32
    return %arg0, %c0_i32, %c0_i32_0 : i32, i32, i32
  }
}

module attributes {stable_mosaic.version = 11 : i64} {
  func.func @_node_layer_kernel(%arg0: i32, %arg1: memref<8x32xf32, #tpu.memory_space<vmem>>, %arg2: memref<8x8x32xf32, #tpu.memory_space<vmem>>, %arg3: memref<8x8x32xf32, #tpu.memory_space<vmem>>, %arg4: memref<8x8xf32, #tpu.memory_space<vmem>>, %arg5: memref<8x1xf32, #tpu.memory_space<vmem>>, %arg6: memref<32x32xbf16, #tpu.memory_space<vmem>>, %arg7: memref<32x32xbf16, #tpu.memory_space<vmem>>, %arg8: memref<32x32xbf16, #tpu.memory_space<vmem>>, %arg9: memref<1x32xf32, #tpu.memory_space<vmem>>, %arg10: memref<32x32xbf16, #tpu.memory_space<vmem>>, %arg11: memref<1x32xf32, #tpu.memory_space<vmem>>, %arg12: memref<32x32xbf16, #tpu.memory_space<vmem>>, %arg13: memref<1x32xf32, #tpu.memory_space<vmem>>, %arg14: memref<1x32xf32, #tpu.memory_space<vmem>>, %arg15: memref<1x32xf32, #tpu.memory_space<vmem>>, %arg16: memref<32x128xbf16, #tpu.memory_space<vmem>>, %arg17: memref<1x128xf32, #tpu.memory_space<vmem>>, %arg18: memref<128x32xbf16, #tpu.memory_space<vmem>>, %arg19: memref<1x32xf32, #tpu.memory_space<vmem>>, %arg20: memref<1x32xf32, #tpu.memory_space<vmem>>, %arg21: memref<1x32xf32, #tpu.memory_space<vmem>>, %arg22: memref<8x32xf32, #tpu.memory_space<vmem>>) attributes {dimension_semantics = [#tpu.dimension_semantics<parallel>], iteration_bounds = array<i64: 2>, scalar_prefetch = 0 : i64, scratch_operands = 0 : i64, tpu.core_type = #tpu.core_type<tc>, window_params = [{transform_indices = @transform_0, window_bounds = array<i64: 8, 32>}, {transform_indices = @transform_1, window_bounds = array<i64: 8, 8, 32>}, {transform_indices = @transform_2, window_bounds = array<i64: 8, 8, 32>}, {transform_indices = @transform_3, window_bounds = array<i64: 8, 8>}, {transform_indices = @transform_4, window_bounds = array<i64: 8, 1>}, {pipeline_mode = #tpu.pipeline_mode<synchronous>, transform_indices = @transform_5, window_bounds = array<i64: 32, 32>}, {pipeline_mode = #tpu.pipeline_mode<synchronous>, transform_indices = @transform_6, window_bounds = array<i64: 32, 32>}, {pipeline_mode = #tpu.pipeline_mode<synchronous>, transform_indices = @transform_7, window_bounds = array<i64: 32, 32>}, {pipeline_mode = #tpu.pipeline_mode<synchronous>, transform_indices = @transform_8, window_bounds = array<i64: 1, 32>}, {pipeline_mode = #tpu.pipeline_mode<synchronous>, transform_indices = @transform_9, window_bounds = array<i64: 32, 32>}, {pipeline_mode = #tpu.pipeline_mode<synchronous>, transform_indices = @transform_10, window_bounds = array<i64: 1, 32>}, {pipeline_mode = #tpu.pipeline_mode<synchronous>, transform_indices = @transform_11, window_bounds = array<i64: 32, 32>}, {pipeline_mode = #tpu.pipeline_mode<synchronous>, transform_indices = @transform_12, window_bounds = array<i64: 1, 32>}, {pipeline_mode = #tpu.pipeline_mode<synchronous>, transform_indices = @transform_13, window_bounds = array<i64: 1, 32>}, {pipeline_mode = #tpu.pipeline_mode<synchronous>, transform_indices = @transform_14, window_bounds = array<i64: 1, 32>}, {pipeline_mode = #tpu.pipeline_mode<synchronous>, transform_indices = @transform_15, window_bounds = array<i64: 32, 128>}, {pipeline_mode = #tpu.pipeline_mode<synchronous>, transform_indices = @transform_16, window_bounds = array<i64: 1, 128>}, {pipeline_mode = #tpu.pipeline_mode<synchronous>, transform_indices = @transform_17, window_bounds = array<i64: 128, 32>}, {pipeline_mode = #tpu.pipeline_mode<synchronous>, transform_indices = @transform_18, window_bounds = array<i64: 1, 32>}, {pipeline_mode = #tpu.pipeline_mode<synchronous>, transform_indices = @transform_19, window_bounds = array<i64: 1, 32>}, {pipeline_mode = #tpu.pipeline_mode<synchronous>, transform_indices = @transform_20, window_bounds = array<i64: 1, 32>}, {transform_indices = @transform_21, window_bounds = array<i64: 8, 32>}]} {
    %c0 = arith.constant 0 : index
    %c0_0 = arith.constant 0 : index
    %0 = vector.load %arg1[%c0, %c0_0] : memref<8x32xf32, #tpu.memory_space<vmem>>, vector<8x32xf32>
    %c0_1 = arith.constant 0 : index
    %c0_2 = arith.constant 0 : index
    %c0_3 = arith.constant 0 : index
    %1 = vector.load %arg2[%c0_1, %c0_2, %c0_3] : memref<8x8x32xf32, #tpu.memory_space<vmem>>, vector<8x8x32xf32>
    %2 = vector.shape_cast %1 : vector<8x8x32xf32> to vector<64x32xf32>
    %c0_4 = arith.constant 0 : index
    %c0_5 = arith.constant 0 : index
    %3 = vector.load %arg6[%c0_4, %c0_5] : memref<32x32xbf16, #tpu.memory_space<vmem>>, vector<32x32xbf16>
    %4 = arith.truncf %2 : vector<64x32xf32> to vector<64x32xbf16>
    %cst = arith.constant dense<0.000000e+00> : vector<64x32xf32>
    %5 = tpu.matmul %4, %3, %cst {dimension_numbers = #tpu.dot_dimension_numbers<[1], [0], [0], [1], [0, 0, 1, 1], [], []>} : vector<64x32xbf16>, vector<32x32xbf16>, vector<64x32xf32> -> vector<64x32xf32>
    %c0_6 = arith.constant 0 : index
    %c0_7 = arith.constant 0 : index
    %c0_8 = arith.constant 0 : index
    %6 = vector.load %arg3[%c0_6, %c0_7, %c0_8] : memref<8x8x32xf32, #tpu.memory_space<vmem>>, vector<8x8x32xf32>
    %7 = vector.shape_cast %6 : vector<8x8x32xf32> to vector<64x32xf32>
    %c0_9 = arith.constant 0 : index
    %c0_10 = arith.constant 0 : index
    %8 = vector.load %arg8[%c0_9, %c0_10] : memref<32x32xbf16, #tpu.memory_space<vmem>>, vector<32x32xbf16>
    %9 = arith.truncf %7 : vector<64x32xf32> to vector<64x32xbf16>
    %cst_11 = arith.constant dense<0.000000e+00> : vector<64x32xf32>
    %10 = tpu.matmul %9, %8, %cst_11 {dimension_numbers = #tpu.dot_dimension_numbers<[1], [0], [0], [1], [0, 0, 1, 1], [], []>} : vector<64x32xbf16>, vector<32x32xbf16>, vector<64x32xf32> -> vector<64x32xf32>
    %11 = arith.addf %5, %10 : vector<64x32xf32>
    %c0_12 = arith.constant 0 : index
    %c0_13 = arith.constant 0 : index
    %12 = vector.load %arg9[%c0_12, %c0_13] : memref<1x32xf32, #tpu.memory_space<vmem>>, vector<1x32xf32>
    %13 = vector.broadcast %12 : vector<1x32xf32> to vector<64x32xf32>
    %14 = arith.addf %11, %13 : vector<64x32xf32>
    %15 = vector.shape_cast %14 : vector<64x32xf32> to vector<8x8x32xf32>
    %c0_14 = arith.constant 0 : index
    %c0_15 = arith.constant 0 : index
    %16 = vector.load %arg7[%c0_14, %c0_15] : memref<32x32xbf16, #tpu.memory_space<vmem>>, vector<32x32xbf16>
    %17 = arith.truncf %0 : vector<8x32xf32> to vector<8x32xbf16>
    %cst_16 = arith.constant dense<0.000000e+00> : vector<8x32xf32>
    %18 = tpu.matmul %17, %16, %cst_16 {dimension_numbers = #tpu.dot_dimension_numbers<[1], [0], [0], [1], [0, 0, 1, 1], [], []>} : vector<8x32xbf16>, vector<32x32xbf16>, vector<8x32xf32> -> vector<8x32xf32>
    %19 = vector.shape_cast %18 : vector<8x32xf32> to vector<8x1x32xf32>
    %20 = vector.broadcast %19 : vector<8x1x32xf32> to vector<8x8x32xf32>
    %21 = arith.addf %15, %20 : vector<8x8x32xf32>
    %cst_17 = arith.constant 0.000000e+00 : f32
    %22 = vector.broadcast %cst_17 : f32 to vector<8x8x32xf32>
    %23 = arith.maximumf %21, %22 : vector<8x8x32xf32>
    %24 = vector.shape_cast %23 : vector<8x8x32xf32> to vector<64x32xf32>
    %c0_18 = arith.constant 0 : index
    %c0_19 = arith.constant 0 : index
    %25 = vector.load %arg10[%c0_18, %c0_19] : memref<32x32xbf16, #tpu.memory_space<vmem>>, vector<32x32xbf16>
    %26 = arith.truncf %24 : vector<64x32xf32> to vector<64x32xbf16>
    %cst_20 = arith.constant dense<0.000000e+00> : vector<64x32xf32>
    %27 = tpu.matmul %26, %25, %cst_20 {dimension_numbers = #tpu.dot_dimension_numbers<[1], [0], [0], [1], [0, 0, 1, 1], [], []>} : vector<64x32xbf16>, vector<32x32xbf16>, vector<64x32xf32> -> vector<64x32xf32>
    %c0_21 = arith.constant 0 : index
    %c0_22 = arith.constant 0 : index
    %28 = vector.load %arg11[%c0_21, %c0_22] : memref<1x32xf32, #tpu.memory_space<vmem>>, vector<1x32xf32>
    %29 = vector.broadcast %28 : vector<1x32xf32> to vector<64x32xf32>
    %30 = arith.addf %27, %29 : vector<64x32xf32>
    %cst_23 = arith.constant 0.000000e+00 : f32
    %31 = vector.broadcast %cst_23 : f32 to vector<64x32xf32>
    %32 = arith.maximumf %30, %31 : vector<64x32xf32>
    %c0_24 = arith.constant 0 : index
    %c0_25 = arith.constant 0 : index
    %33 = vector.load %arg12[%c0_24, %c0_25] : memref<32x32xbf16, #tpu.memory_space<vmem>>, vector<32x32xbf16>
    %34 = arith.truncf %32 : vector<64x32xf32> to vector<64x32xbf16>
    %cst_26 = arith.constant dense<0.000000e+00> : vector<64x32xf32>
    %35 = tpu.matmul %34, %33, %cst_26 {dimension_numbers = #tpu.dot_dimension_numbers<[1], [0], [0], [1], [0, 0, 1, 1], [], []>} : vector<64x32xbf16>, vector<32x32xbf16>, vector<64x32xf32> -> vector<64x32xf32>
    %c0_27 = arith.constant 0 : index
    %c0_28 = arith.constant 0 : index
    %36 = vector.load %arg13[%c0_27, %c0_28] : memref<1x32xf32, #tpu.memory_space<vmem>>, vector<1x32xf32>
    %37 = vector.broadcast %36 : vector<1x32xf32> to vector<64x32xf32>
    %38 = arith.addf %35, %37 : vector<64x32xf32>
    %39 = vector.shape_cast %38 : vector<64x32xf32> to vector<8x8x32xf32>
    %c0_29 = arith.constant 0 : index
    %c0_30 = arith.constant 0 : index
    %40 = vector.load %arg4[%c0_29, %c0_30] : memref<8x8xf32, #tpu.memory_space<vmem>>, vector<8x8xf32>
    %41 = vector.shape_cast %40 : vector<8x8xf32> to vector<8x8x1xf32>
    %42 = vector.broadcast %41 : vector<8x8x1xf32> to vector<8x8x32xf32>
    %43 = arith.mulf %39, %42 : vector<8x8x32xf32>
    %cst_31 = arith.constant dense<0.000000e+00> : vector<8x32xf32>
    %44 = vector.multi_reduction <add>, %43, %cst_31 [1] : vector<8x8x32xf32> to vector<8x32xf32>
    %cst_32 = arith.constant 0.0333333351 : f32
    %45 = vector.broadcast %cst_32 : f32 to vector<8x32xf32>
    %46 = arith.mulf %44, %45 : vector<8x32xf32>
    %47 = arith.addf %0, %46 : vector<8x32xf32>
    %c0_33 = arith.constant 0 : index
    %c0_34 = arith.constant 0 : index
    %48 = vector.load %arg14[%c0_33, %c0_34] : memref<1x32xf32, #tpu.memory_space<vmem>>, vector<1x32xf32>
    %c0_35 = arith.constant 0 : index
    %c0_36 = arith.constant 0 : index
    %49 = vector.load %arg15[%c0_35, %c0_36] : memref<1x32xf32, #tpu.memory_space<vmem>>, vector<1x32xf32>
    %cst_37 = arith.constant dense<0.000000e+00> : vector<8xf32>
    %50 = vector.multi_reduction <add>, %47, %cst_37 [1] : vector<8x32xf32> to vector<8xf32>
    %51 = vector.shape_cast %50 : vector<8xf32> to vector<8x1xf32>
    %cst_38 = arith.constant 3.200000e+01 : f32
    %52 = vector.broadcast %cst_38 : f32 to vector<8x1xf32>
    %53 = arith.divf %51, %52 : vector<8x1xf32>
    %54 = vector.broadcast %53 : vector<8x1xf32> to vector<8x32xf32>
    %55 = arith.subf %47, %54 : vector<8x32xf32>
    %56 = arith.mulf %55, %55 : vector<8x32xf32>
    %cst_39 = arith.constant dense<0.000000e+00> : vector<8xf32>
    %57 = vector.multi_reduction <add>, %56, %cst_39 [1] : vector<8x32xf32> to vector<8xf32>
    %58 = vector.shape_cast %57 : vector<8xf32> to vector<8x1xf32>
    %cst_40 = arith.constant 3.200000e+01 : f32
    %59 = vector.broadcast %cst_40 : f32 to vector<8x1xf32>
    %60 = arith.divf %58, %59 : vector<8x1xf32>
    %cst_41 = arith.constant 9.99999974E-6 : f32
    %61 = vector.broadcast %cst_41 : f32 to vector<8x1xf32>
    %62 = arith.addf %60, %61 : vector<8x1xf32>
    %63 = math.rsqrt %62 : vector<8x1xf32>
    %64 = vector.broadcast %63 : vector<8x1xf32> to vector<8x32xf32>
    %65 = arith.mulf %55, %64 : vector<8x32xf32>
    %66 = vector.broadcast %48 : vector<1x32xf32> to vector<8x32xf32>
    %67 = arith.mulf %65, %66 : vector<8x32xf32>
    %68 = vector.broadcast %49 : vector<1x32xf32> to vector<8x32xf32>
    %69 = arith.addf %67, %68 : vector<8x32xf32>
    %c0_42 = arith.constant 0 : index
    %c0_43 = arith.constant 0 : index
    %70 = vector.load %arg16[%c0_42, %c0_43] : memref<32x128xbf16, #tpu.memory_space<vmem>>, vector<32x128xbf16>
    %71 = arith.truncf %69 : vector<8x32xf32> to vector<8x32xbf16>
    %cst_44 = arith.constant dense<0.000000e+00> : vector<8x128xf32>
    %72 = tpu.matmul %71, %70, %cst_44 {dimension_numbers = #tpu.dot_dimension_numbers<[1], [0], [0], [1], [0, 0, 1, 1], [], []>} : vector<8x32xbf16>, vector<32x128xbf16>, vector<8x128xf32> -> vector<8x128xf32>
    %c0_45 = arith.constant 0 : index
    %c0_46 = arith.constant 0 : index
    %73 = vector.load %arg17[%c0_45, %c0_46] : memref<1x128xf32, #tpu.memory_space<vmem>>, vector<1x128xf32>
    %74 = vector.broadcast %73 : vector<1x128xf32> to vector<8x128xf32>
    %75 = arith.addf %72, %74 : vector<8x128xf32>
    %cst_47 = arith.constant 0.000000e+00 : f32
    %76 = vector.broadcast %cst_47 : f32 to vector<8x128xf32>
    %77 = arith.maximumf %75, %76 : vector<8x128xf32>
    %c0_48 = arith.constant 0 : index
    %c0_49 = arith.constant 0 : index
    %78 = vector.load %arg18[%c0_48, %c0_49] : memref<128x32xbf16, #tpu.memory_space<vmem>>, vector<128x32xbf16>
    %79 = arith.truncf %77 : vector<8x128xf32> to vector<8x128xbf16>
    %cst_50 = arith.constant dense<0.000000e+00> : vector<8x32xf32>
    %80 = tpu.matmul %79, %78, %cst_50 {dimension_numbers = #tpu.dot_dimension_numbers<[1], [0], [0], [1], [0, 0, 1, 1], [], []>} : vector<8x128xbf16>, vector<128x32xbf16>, vector<8x32xf32> -> vector<8x32xf32>
    %c0_51 = arith.constant 0 : index
    %c0_52 = arith.constant 0 : index
    %81 = vector.load %arg19[%c0_51, %c0_52] : memref<1x32xf32, #tpu.memory_space<vmem>>, vector<1x32xf32>
    %82 = vector.broadcast %81 : vector<1x32xf32> to vector<8x32xf32>
    %83 = arith.addf %80, %82 : vector<8x32xf32>
    %84 = arith.addf %69, %83 : vector<8x32xf32>
    %c0_53 = arith.constant 0 : index
    %c0_54 = arith.constant 0 : index
    %85 = vector.load %arg20[%c0_53, %c0_54] : memref<1x32xf32, #tpu.memory_space<vmem>>, vector<1x32xf32>
    %c0_55 = arith.constant 0 : index
    %c0_56 = arith.constant 0 : index
    %86 = vector.load %arg21[%c0_55, %c0_56] : memref<1x32xf32, #tpu.memory_space<vmem>>, vector<1x32xf32>
    %cst_57 = arith.constant dense<0.000000e+00> : vector<8xf32>
    %87 = vector.multi_reduction <add>, %84, %cst_57 [1] : vector<8x32xf32> to vector<8xf32>
    %88 = vector.shape_cast %87 : vector<8xf32> to vector<8x1xf32>
    %cst_58 = arith.constant 3.200000e+01 : f32
    %89 = vector.broadcast %cst_58 : f32 to vector<8x1xf32>
    %90 = arith.divf %88, %89 : vector<8x1xf32>
    %91 = vector.broadcast %90 : vector<8x1xf32> to vector<8x32xf32>
    %92 = arith.subf %84, %91 : vector<8x32xf32>
    %93 = arith.mulf %92, %92 : vector<8x32xf32>
    %cst_59 = arith.constant dense<0.000000e+00> : vector<8xf32>
    %94 = vector.multi_reduction <add>, %93, %cst_59 [1] : vector<8x32xf32> to vector<8xf32>
    %95 = vector.shape_cast %94 : vector<8xf32> to vector<8x1xf32>
    %cst_60 = arith.constant 3.200000e+01 : f32
    %96 = vector.broadcast %cst_60 : f32 to vector<8x1xf32>
    %97 = arith.divf %95, %96 : vector<8x1xf32>
    %cst_61 = arith.constant 9.99999974E-6 : f32
    %98 = vector.broadcast %cst_61 : f32 to vector<8x1xf32>
    %99 = arith.addf %97, %98 : vector<8x1xf32>
    %100 = math.rsqrt %99 : vector<8x1xf32>
    %101 = vector.broadcast %100 : vector<8x1xf32> to vector<8x32xf32>
    %102 = arith.mulf %92, %101 : vector<8x32xf32>
    %103 = vector.broadcast %85 : vector<1x32xf32> to vector<8x32xf32>
    %104 = arith.mulf %102, %103 : vector<8x32xf32>
    %105 = vector.broadcast %86 : vector<1x32xf32> to vector<8x32xf32>
    %106 = arith.addf %104, %105 : vector<8x32xf32>
    %c0_62 = arith.constant 0 : index
    %c0_63 = arith.constant 0 : index
    %107 = vector.load %arg5[%c0_62, %c0_63] : memref<8x1xf32, #tpu.memory_space<vmem>>, vector<8x1xf32>
    %108 = vector.broadcast %107 : vector<8x1xf32> to vector<8x32xf32>
    %109 = arith.mulf %106, %108 : vector<8x32xf32>
    %c0_64 = arith.constant 0 : index
    %c0_65 = arith.constant 0 : index
    %110 = vector.load %arg22[%c0_64, %c0_65] : memref<8x32xf32, #tpu.memory_space<vmem>>, vector<8x32xf32>
    tpu.vector_store %arg22[%c0_64, %c0_65], %109 {strides = array<i32>} : memref<8x32xf32, #tpu.memory_space<vmem>>, vector<8x32xf32>,
    return
  }
  func.func @transform_0(%arg0: i32) -> (i32, i32) {
    %c0_i32 = arith.constant 0 : i32
    %c0_i32_0 = arith.constant 0 : i32
    return %arg0, %c0_i32 : i32, i32
  }
  func.func @transform_1(%arg0: i32) -> (i32, i32, i32) {
    %c0_i32 = arith.constant 0 : i32
    %c0_i32_0 = arith.constant 0 : i32
    %c0_i32_1 = arith.constant 0 : i32
    return %arg0, %c0_i32, %c0_i32_0 : i32, i32, i32
  }
  func.func @transform_2(%arg0: i32) -> (i32, i32, i32) {
    %c0_i32 = arith.constant 0 : i32
    %c0_i32_0 = arith.constant 0 : i32
    %c0_i32_1 = arith.constant 0 : i32
    return %arg0, %c0_i32, %c0_i32_0 : i32, i32, i32
  }
  func.func @transform_3(%arg0: i32) -> (i32, i32) {
    %c0_i32 = arith.constant 0 : i32
    %c0_i32_0 = arith.constant 0 : i32
    return %arg0, %c0_i32 : i32, i32
  }
  func.func @transform_4(%arg0: i32) -> (i32, i32) {
    %c0_i32 = arith.constant 0 : i32
    %c0_i32_0 = arith.constant 0 : i32
    return %arg0, %c0_i32 : i32, i32
  }
  func.func @transform_5(%arg0: i32) -> (i32, i32) {
    %c0_i32 = arith.constant 0 : i32
    %c0_i32_0 = arith.constant 0 : i32
    %c0_i32_1 = arith.constant 0 : i32
    return %c0_i32, %c0_i32_0 : i32, i32
  }
  func.func @transform_6(%arg0: i32) -> (i32, i32) {
    %c0_i32 = arith.constant 0 : i32
    %c0_i32_0 = arith.constant 0 : i32
    %c0_i32_1 = arith.constant 0 : i32
    return %c0_i32, %c0_i32_0 : i32, i32
  }
  func.func @transform_7(%arg0: i32) -> (i32, i32) {
    %c0_i32 = arith.constant 0 : i32
    %c0_i32_0 = arith.constant 0 : i32
    %c0_i32_1 = arith.constant 0 : i32
    return %c0_i32, %c0_i32_0 : i32, i32
  }
  func.func @transform_8(%arg0: i32) -> (i32, i32) {
    %c0_i32 = arith.constant 0 : i32
    %c0_i32_0 = arith.constant 0 : i32
    %c0_i32_1 = arith.constant 0 : i32
    return %c0_i32, %c0_i32_0 : i32, i32
  }
  func.func @transform_9(%arg0: i32) -> (i32, i32) {
    %c0_i32 = arith.constant 0 : i32
    %c0_i32_0 = arith.constant 0 : i32
    %c0_i32_1 = arith.constant 0 : i32
    return %c0_i32, %c0_i32_0 : i32, i32
  }
  func.func @transform_10(%arg0: i32) -> (i32, i32) {
    %c0_i32 = arith.constant 0 : i32
    %c0_i32_0 = arith.constant 0 : i32
    %c0_i32_1 = arith.constant 0 : i32
    return %c0_i32, %c0_i32_0 : i32, i32
  }
  func.func @transform_11(%arg0: i32) -> (i32, i32) {
    %c0_i32 = arith.constant 0 : i32
    %c0_i32_0 = arith.constant 0 : i32
    %c0_i32_1 = arith.constant 0 : i32
    return %c0_i32, %c0_i32_0 : i32, i32
  }
  func.func @transform_12(%arg0: i32) -> (i32, i32) {
    %c0_i32 = arith.constant 0 : i32
    %c0_i32_0 = arith.constant 0 : i32
    %c0_i32_1 = arith.constant 0 : i32
    return %c0_i32, %c0_i32_0 : i32, i32
  }
  func.func @transform_13(%arg0: i32) -> (i32, i32) {
    %c0_i32 = arith.constant 0 : i32
    %c0_i32_0 = arith.constant 0 : i32
    %c0_i32_1 = arith.constant 0 : i32
    return %c0_i32, %c0_i32_0 : i32, i32
  }
  func.func @transform_14(%arg0: i32) -> (i32, i32) {
    %c0_i32 = arith.constant 0 : i32
    %c0_i32_0 = arith.constant 0 : i32
    %c0_i32_1 = arith.constant 0 : i32
    return %c0_i32, %c0_i32_0 : i32, i32
  }
  func.func @transform_15(%arg0: i32) -> (i32, i32) {
    %c0_i32 = arith.constant 0 : i32
    %c0_i32_0 = arith.constant 0 : i32
    %c0_i32_1 = arith.constant 0 : i32
    return %c0_i32, %c0_i32_0 : i32, i32
  }
  func.func @transform_16(%arg0: i32) -> (i32, i32) {
    %c0_i32 = arith.constant 0 : i32
    %c0_i32_0 = arith.constant 0 : i32
    %c0_i32_1 = arith.constant 0 : i32
    return %c0_i32, %c0_i32_0 : i32, i32
  }
  func.func @transform_17(%arg0: i32) -> (i32, i32) {
    %c0_i32 = arith.constant 0 : i32
    %c0_i32_0 = arith.constant 0 : i32
    %c0_i32_1 = arith.constant 0 : i32
    return %c0_i32, %c0_i32_0 : i32, i32
  }
  func.func @transform_18(%arg0: i32) -> (i32, i32) {
    %c0_i32 = arith.constant 0 : i32
    %c0_i32_0 = arith.constant 0 : i32
    %c0_i32_1 = arith.constant 0 : i32
    return %c0_i32, %c0_i32_0 : i32, i32
  }
  func.func @transform_19(%arg0: i32) -> (i32, i32) {
    %c0_i32 = arith.constant 0 : i32
    %c0_i32_0 = arith.constant 0 : i32
    %c0_i32_1 = arith.constant 0 : i32
    return %c0_i32, %c0_i32_0 : i32, i32
  }
  func.func @transform_20(%arg0: i32) -> (i32, i32) {
    %c0_i32 = arith.constant 0 : i32
    %c0_i32_0 = arith.constant 0 : i32
    %c0_i32_1 = arith.constant 0 : i32
    return %c0_i32, %c0_i32_0 : i32, i32
  }
  func.func @transform_21(%arg0: i32) -> (i32, i32) {
    %c0_i32 = arith.constant 0 : i32
    %c0_i32_0 = arith.constant 0 : i32
    return %arg0, %c0_i32 : i32, i32
  }
}

module attributes {stable_mosaic.version = 11 : i64} {
  func.func @_energies_kernel(%arg0: i32, %arg1: memref<8x8x32xf32, #tpu.memory_space<vmem>>, %arg2: memref<8x8xf32, #tpu.memory_space<vmem>>, %arg3: memref<32x400xf32, #tpu.memory_space<vmem>>, %arg4: memref<1x400xf32, #tpu.memory_space<vmem>>, %arg5: memref<8x400xf32, #tpu.memory_space<vmem>>, %arg6: memref<8x8x400xf32, #tpu.memory_space<vmem>>) attributes {dimension_semantics = [#tpu.dimension_semantics<parallel>], iteration_bounds = array<i64: 2>, scalar_prefetch = 0 : i64, scratch_operands = 0 : i64, tpu.core_type = #tpu.core_type<tc>, window_params = [{transform_indices = @transform_0, window_bounds = array<i64: 8, 8, 32>}, {transform_indices = @transform_1, window_bounds = array<i64: 8, 8>}, {pipeline_mode = #tpu.pipeline_mode<synchronous>, transform_indices = @transform_2, window_bounds = array<i64: 32, 400>}, {pipeline_mode = #tpu.pipeline_mode<synchronous>, transform_indices = @transform_3, window_bounds = array<i64: 1, 400>}, {pipeline_mode = #tpu.pipeline_mode<synchronous>, transform_indices = @transform_4, window_bounds = array<i64: 8, 400>}, {transform_indices = @transform_5, window_bounds = array<i64: 8, 8, 400>}]} {
    %c0 = arith.constant 0 : index
    %c0_0 = arith.constant 0 : index
    %c0_1 = arith.constant 0 : index
    %0 = vector.load %arg1[%c0, %c0_0, %c0_1] : memref<8x8x32xf32, #tpu.memory_space<vmem>>, vector<8x8x32xf32>
    %1 = vector.shape_cast %0 : vector<8x8x32xf32> to vector<64x32xf32>
    %c0_2 = arith.constant 0 : index
    %c0_3 = arith.constant 0 : index
    %2 = vector.load %arg3[%c0_2, %c0_3] : memref<32x400xf32, #tpu.memory_space<vmem>>, vector<32x400xf32>
    %cst = arith.constant dense<0.000000e+00> : vector<64x400xf32>
    %3 = tpu.matmul %1, %2, %cst {dimension_numbers = #tpu.dot_dimension_numbers<[1], [0], [0], [1], [0, 0, 1, 1], [], []>} : vector<64x32xf32>, vector<32x400xf32>, vector<64x400xf32> -> vector<64x400xf32>
    %4 = vector.shape_cast %3 : vector<64x400xf32> to vector<8x8x400xf32>
    %c0_4 = arith.constant 0 : index
    %c0_5 = arith.constant 0 : index
    %5 = vector.load %arg2[%c0_4, %c0_5] : memref<8x8xf32, #tpu.memory_space<vmem>>, vector<8x8xf32>
    %6 = vector.shape_cast %5 : vector<8x8xf32> to vector<8x8x1xf32>
    %c0_6 = arith.constant 0 : index
    %c0_7 = arith.constant 0 : index
    %7 = vector.load %arg4[%c0_6, %c0_7] : memref<1x400xf32, #tpu.memory_space<vmem>>, vector<1x400xf32>
    %8 = vector.shape_cast %7 : vector<1x400xf32> to vector<1x1x400xf32>
    %9 = vector.broadcast %6 : vector<8x8x1xf32> to vector<8x8x400xf32>
    %10 = vector.broadcast %8 : vector<1x1x400xf32> to vector<8x8x400xf32>
    %11 = arith.mulf %9, %10 : vector<8x8x400xf32>
    %12 = arith.addf %4, %11 : vector<8x8x400xf32>
    %c0_8 = arith.constant 0 : index
    %c0_9 = arith.constant 0 : index
    %13 = vector.load %arg5[%c0_8, %c0_9] : memref<8x400xf32, #tpu.memory_space<vmem>>, vector<8x400xf32>
    %14 = vector.shape_cast %13 : vector<8x400xf32> to vector<1x8x400xf32>
    %15 = vector.broadcast %14 : vector<1x8x400xf32> to vector<8x8x400xf32>
    %16 = arith.mulf %12, %15 : vector<8x8x400xf32>
    %c0_10 = arith.constant 0 : index
    %c0_11 = arith.constant 0 : index
    %c0_12 = arith.constant 0 : index
    %17 = vector.load %arg6[%c0_10, %c0_11, %c0_12] : memref<8x8x400xf32, #tpu.memory_space<vmem>>, vector<8x8x400xf32>
    tpu.vector_store %arg6[%c0_10, %c0_11, %c0_12], %16 {strides = array<i32>} : memref<8x8x400xf32, #tpu.memory_space<vmem>>, vector<8x8x400xf32>,
    return
  }
  func.func @transform_0(%arg0: i32) -> (i32, i32, i32) {
    %c0_i32 = arith.constant 0 : i32
    %c0_i32_0 = arith.constant 0 : i32
    %c0_i32_1 = arith.constant 0 : i32
    return %arg0, %c0_i32, %c0_i32_0 : i32, i32, i32
  }
  func.func @transform_1(%arg0: i32) -> (i32, i32) {
    %c0_i32 = arith.constant 0 : i32
    %c0_i32_0 = arith.constant 0 : i32
    return %arg0, %c0_i32 : i32, i32
  }
  func.func @transform_2(%arg0: i32) -> (i32, i32) {
    %c0_i32 = arith.constant 0 : i32
    %c0_i32_0 = arith.constant 0 : i32
    %c0_i32_1 = arith.constant 0 : i32
    return %c0_i32, %c0_i32_0 : i32, i32
  }
  func.func @transform_3(%arg0: i32) -> (i32, i32) {
    %c0_i32 = arith.constant 0 : i32
    %c0_i32_0 = arith.constant 0 : i32
    %c0_i32_1 = arith.constant 0 : i32
    return %c0_i32, %c0_i32_0 : i32, i32
  }
  func.func @transform_4(%arg0: i32) -> (i32, i32) {
    %c0_i32 = arith.constant 0 : i32
    %c0_i32_0 = arith.constant 0 : i32
    %c0_i32_1 = arith.constant 0 : i32
    return %c0_i32, %c0_i32_0 : i32, i32
  }
  func.func @transform_5(%arg0: i32) -> (i32, i32, i32) {
    %c0_i32 = arith.constant 0 : i32
    %c0_i32_0 = arith.constant 0 : i32
    %c0_i32_1 = arith.constant 0 : i32
    return %arg0, %c0_i32, %c0_i32_0 : i32, i32, i32
  }
}

</mosaic_0001>

<llo_original>
// kernel: mul.42
$region0: #{mul.42}
  #allocation0 [shape = 's32[1]{0}', space=sflag, size = 0x4, scoped, tag = 'scoped memory for mul.42']
  %s0 = inlined_call_operand.vmem [shape: f32[2,8], index: 0, kind: input, shape index: {}]
  %s1 = inlined_call_operand.vmem [shape: f32[2,8,8], index: 1, kind: output, shape index: {}]
  // Predicated region
  $region2: #{mul.42} parent=0 // pred_check
    _
  $region3: #{mul.42} parent=0 // pred_check_branch
    %3 = sbr.rel (0) target = $region5
  $region4: #{mul.42} parent=0 // pred_region
    _
  $region5: #{mul.42} parent=0 // pred_fallthru
    _
  %v4 = vld [vmem:[%s0] ss:$0 sm:$0xff]
  %6 = vbcast.lane.b32.xlu0 %v4, 256
  %v7 = vpop.permute.xlu0 %6
  %8 = vst [vmem:[%s1] sm:$0xff] %v7
  %s9 = scalar_lea.vmem %s0, 1
  %v10 = vld [vmem:[%s9] ss:$0 sm:$0xff]
  %12 = vbcast.lane.b32.xlu0 %v10, 256
  %v13 = vpop.permute.xlu0 %12
  %s14 = scalar_lea.vmem %s1, 8
  %15 = vst [vmem:[%s14] sm:$0xff] %v13

// kernel: pair_energies_forward.6
$region0: #{pair_energies_forward.6}
  #allocation0 [shape = 'u32[]', space=smem, size = 0x4, offset = 0x4, fixed_abs, tag = 'smem constant byte address 0x4 - core index']
  #allocation1 [shape = 'u32[144,128]{1,0:T(1,128)}', space=vmem, size = 0x12000, scoped, tag = 'internal scratch']
  %s0 = inlined_call_operand.vmem [shape: f32[128,17], index: 0, kind: input, shape index: {}]
  %s1 = inlined_call_operand.vmem [shape: bf16[17,32], index: 1, kind: input, shape index: {}]
  %s2 = inlined_call_operand.vmem [shape: f32[1,32], index: 2, kind: input, shape index: {}]
  %s3 = inlined_call_operand.vmem [shape: f32[128,32], index: 3, kind: output, shape index: {}]
  %s4 = sld [smem:[#allocation0]]
  $region45: #{pair_energies_forward.6} parent=0
    _
  %s6 = ssub.s32 1, %s4
  %s7 = scalar_select 0, %s6, %s4
  loop: start=0, step=1, limit=4
  $region2: #{pair_energies_forward.6} parent=0 // loop_pre_header
    _
  $region3: #{pair_energies_forward.6} parent=0 // loop_header
    %s9 = sphi 0, %s13
    %p10 = scmp.ge.s32.totalorder %s9, 4
    %s19 = sphi 0, %s21
    %s22 = sphi 0, %s19
    %s23 = sphi 0, %s22
    %s39 = sphi 0, %s23
    %s43 = sphi 0, %s43
    %s45 = sphi 0, %s43
    %s46 = sphi 0, %s45
    %s60 = sphi 0, %s46
    %s64 = sphi 0, %s64
    %s66 = sphi 0, %s64
    %s67 = sphi 0, %s66
    %s81 = sphi 0, %s67
    %s87 = sphi 0, %s89
    %s90 = sphi 0, %s87
    %s91 = sphi 0, %s90
    %s107 = sphi 0, %s91
  $region4: #{pair_energies_forward.6} parent=0 // loop_header_branch
    %12 = sbr.rel (%p10) target = $region8
  $region5: #{pair_energies_forward.6} parent=0 // loop_body
    %s14 = ssub.s32 %s9, 1
    %s15 = ssub.s32 %s9, 2
    %s16 = sadd.s32 %s9, 1
    %s17 = ssub.s32 %s9, %s16
    %p18 = scmp.eq.s32.totalorder %s17, 0
    %s20 = sadd.s32 %s19, 1
    %s21 = scalar_select %p18, %s19, %s20
    %p24 = pneg %p18
    %p25 = scmp.eq.s32.totalorder %s9, 1
    %p26 = por %p24, %p25
    %p27 = scmp.ne.s32.totalorder %s19, %s22
    %p28 = scmp.eq.s32.totalorder %s9, 0
    %p29 = por %p27, %p28
    %p30 = scmp.ne.s32.totalorder %s19, %s22
    %p31 = scmp.eq.s32.totalorder %s14, 1
    %p32 = por %p30, %p31
    %p33 = scmp.ne.s32.totalorder %s22, %s23
    %p34 = scmp.eq.s32.totalorder %s14, 0
    %p35 = por %p33, %p34
    %p36 = scmp.ne.s32.totalorder %s22, %s23
    %p37 = scmp.eq.s32.totalorder %s15, 1
    %p38 = por %p36, %p37
    %p40 = scmp.ne.s32.totalorder %s23, %s39
    %p41 = scmp.eq.s32.totalorder %s15, 0
    %p42 = por %p40, %p41
    %s44 = sadd.s32 %s43, 1
    %p47 = scmp.eq.s32.totalorder %s9, 1
    %p48 = scmp.ne.s32.totalorder %s43, %s45
    %p49 = scmp.eq.s32.totalorder %s9, 0
    %p50 = por %p48, %p49
    %p51 = scmp.ne.s32.totalorder %s43, %s45
    %p52 = scmp.eq.s32.totalorder %s14, 1
    %p53 = por %p51, %p52
    %p54 = scmp.ne.s32.totalorder %s45, %s46
    %p55 = scmp.eq.s32.totalorder %s14, 0
    %p56 = por %p54, %p55
    %p57 = scmp.ne.s32.totalorder %s45, %s46
    %p58 = scmp.eq.s32.totalorder %s15, 1
    %p59 = por %p57, %p58
    %p61 = scmp.ne.s32.totalorder %s46, %s60
    %p62 = scmp.eq.s32.totalorder %s15, 0
    %p63 = por %p61, %p62
    %s65 = sadd.s32 %s64, 1
    %p68 = scmp.eq.s32.totalorder %s9, 1
    %p69 = scmp.ne.s32.totalorder %s64, %s66
    %p70 = scmp.eq.s32.totalorder %s9, 0
    %p71 = por %p69, %p70
    %p72 = scmp.ne.s32.totalorder %s64, %s66
    %p73 = scmp.eq.s32.totalorder %s14, 1
    %p74 = por %p72, %p73
    %p75 = scmp.ne.s32.totalorder %s66, %s67
    %p76 = scmp.eq.s32.totalorder %s14, 0
    %p77 = por %p75, %p76
    %p78 = scmp.ne.s32.totalorder %s66, %s67
    %p79 = scmp.eq.s32.totalorder %s15, 1
    %p80 = por %p78, %p79
    %p82 = scmp.ne.s32.totalorder %s67, %s81
    %p83 = scmp.eq.s32.totalorder %s15, 0
    %p84 = por %p82, %p83
    %s85 = ssub.s32 %s9, %s16
    %p86 = scmp.eq.s32.totalorder %s85, 0
    %s88 = sadd.s32 %s87, 1
    %s89 = scalar_select %p86, %s87, %s88
    %p92 = pneg %p86
    %p93 = scmp.eq.s32.totalorder %s9, 1
    %p94 = por %p92, %p93
    %p95 = scmp.ne.s32.totalorder %s87, %s90
    %p96 = scmp.eq.s32.totalorder %s9, 0
    %p97 = por %p95, %p96
    %p98 = scmp.ne.s32.totalorder %s87, %s90
    %p99 = scmp.eq.s32.totalorder %s14, 1
    %p100 = por %p98, %p99
    %p101 = scmp.ne.s32.totalorder %s90, %s91
    %p102 = scmp.eq.s32.totalorder %s14, 0
    %p103 = por %p101, %p102
    %p104 = scmp.ne.s32.totalorder %s90, %s91
    %p105 = scmp.eq.s32.totalorder %s15, 1
    %p106 = por %p104, %p105
    %p108 = scmp.ne.s32.totalorder %s91, %s107
    %p109 = scmp.eq.s32.totalorder %s15, 0
    %p110 = por %p108, %p109
    %p111 = scmp.le.s32.totalorder 1, %s9
    %p112 = scmp.lt.s32.totalorder %s9, 3
    %p113 = pnand %p111, %p112
    %p114 = pneg %p113
    // Predicated region
    $region9: #{pair_energies_forward.6} parent=5 // pred_check
      _
    $region10: #{pair_energies_forward.6} parent=5 // pred_check_branch
      %116 = sbr.rel (%p113) target = $region12
    $region11: #{pair_energies_forward.6} parent=5 // pred_region
      %s117 = ssub.s32 %s9, 1
      // Predicated region
      $region13: #{pair_energies_forward.6} parent=11 // pred_check
        %p118 = pneg %p56
      $region14: #{pair_energies_forward.6} parent=11 // pred_check_branch
        %120 = sbr.rel (%p118) target = $region16
      $region15: #{pair_energies_forward.6} parent=11 // pred_region
        _
      $region16: #{pair_energies_forward.6} parent=11 // pred_fallthru
        _
      // Predicated region
      $region17: #{pair_energies_forward.6} parent=11 // pred_check
        %p121 = pneg %p77
      $region18: #{pair_energies_forward.6} parent=11 // pred_check_branch
        %123 = sbr.rel (%p121) target = $region20
      $region19: #{pair_energies_forward.6} parent=11 // pred_region
        _
      $region20: #{pair_energies_forward.6} parent=11 // pred_fallthru
        _
    $region12: #{pair_energies_forward.6} parent=5 // pred_fallthru
      _
    %p124 = scmp.lt.s32.totalorder %s9, 2
    // Predicated region
    $region21: #{pair_energies_forward.6} parent=5 // pred_check
      %p125 = pneg %p124
    $region22: #{pair_energies_forward.6} parent=5 // pred_check_branch
      %127 = sbr.rel (%p125) target = $region24
    $region23: #{pair_energies_forward.6} parent=5 // pred_region
      // Predicated region
      $region25: #{pair_energies_forward.6} parent=23 // pred_check
        %p128 = pneg %p29
      $region26: #{pair_energies_forward.6} parent=23 // pred_check_branch
        %130 = sbr.rel (%p128) target = $region28
      $region27: #{pair_energies_forward.6} parent=23 // pred_region
        %s131 = smul.u32 8, %s9
        %p132 = scmp.lt.s32.totalorder %s131, 15
        %s133 = scalar_select %p132, %s131, 15
        %s134 = smul.addr %s133, 8
        %s135 = scalar_lea.vmem %s0, %s134
        %s136 = smul.u32 8, %s9
      $region28: #{pair_energies_forward.6} parent=23 // pred_fallthru
        _
    $region24: #{pair_energies_forward.6} parent=5 // pred_fallthru
      _
    %p137 = scmp.le.s32.totalorder 1, %s9
    %p138 = scmp.lt.s32.totalorder %s9, 3
    %p139 = pnand %p137, %p138
    %p140 = pneg %p139
    // Predicated region
    $region29: #{pair_energies_forward.6} parent=5 // pred_check
      _
    $region30: #{pair_energies_forward.6} parent=5 // pred_check_branch
      %142 = sbr.rel (%p139) target = $region32
    $region31: #{pair_energies_forward.6} parent=5 // pred_region
      %s143 = ssub.s32 %s9, 1
      %s144 = smul.u32 8, %s14
      %p145 = scmp.lt.s32.totalorder %s144, 15
      %s146 = scalar_select %p145, %s144, 15
      %s147 = smul.addr %s146, 8
      %s148 = scalar_lea.vmem %s0, %s147
      %p149 = pneg %p35
      %p150 = pneg %p32
      %p151 = pneg %p56
      %p152 = pneg %p53
      %p153 = pneg %p77
      %p154 = pneg %p74
      %p155 = pneg %p103
      %p156 = pneg %p100
      %s157 = smul.u32 8, %s14
      %p158 = scmp.lt.s32.totalorder %s157, 15
      %s159 = scalar_select %p158, %s157, 15
      %s160 = smul.addr %s159, 8
      %s161 = scalar_lea.vmem %s3, %s160
      %s162 = smul.u32 8, %s14
      %p163 = scmp.lt.s32.totalorder %s162, 15
      %s164 = scalar_select %p163, %s162, 15
      %s165 = smul.addr %s164, 8
      %s166 = scalar_lea.vmem %s0, %s165
      %s167 = smul.u32 8, %s14
      %s168 = smul.u32 8, %s14
      %p169 = scmp.lt.s32.totalorder %s168, 15
      %s170 = scalar_select %p169, %s168, 15
      %s171 = smul.addr %s170, 8
      %s172 = scalar_lea.vmem %s3, %s171
      %s173 = smul.u32 8, %s14
      %v175 = vld [vmem:[%s166] sm:$0xff]
      %v176 = vld [vmem:[%s166 + $0x8] sm:$0xff]
      %v177 = vld [vmem:[%s166 + $0x10] sm:$0xff]
      %v178 = vld [vmem:[%s166 + $0x18] sm:$0xff]
      %v179 = vld [vmem:[%s166 + $0x20] sm:$0xff]
      %v180 = vld [vmem:[%s166 + $0x28] sm:$0xff]
      %v181 = vld [vmem:[%s166 + $0x30] sm:$0xff]
      %v182 = vld [vmem:[%s166 + $0x38] sm:$0xff]
      %v183 = vld [vmem:[%s1] sm:$0xf]
      %v184 = vld [vmem:[%s1 + $0x4] sm:$0xf]
      %v185 = vld [vmem:[%s1 + $0x8] sm:$0x1]
      %v186 = vpack.c.bf16 %v176, %v175
      %v187 = vpack.c.bf16 %v178, %v177
      %v188 = vpack.c.bf16 %v180, %v179
      %v189 = vpack.c.bf16 %v182, %v181
      %v190 = vld [vmem:[%s2] sm:$0x1]
      %v192 = vlaneseq
      %v193 = vshrl.u32 %v192, 7
      %v194 = vsub.s32 0, %v193
      %v195 = vrot.slane %v190, %v194
      %v200 = vunpack.c.l.b16 %v183
      %v201 = vunpack.c.l.b16 %v184
      %v202 = vunpack.c.l.b16 %v185
      %v203 = vpack.c.b16 %v201, %v200
      %v204 = vpack.c.b16 %v202, %v202
      %vm206 = vcmask 138240
      %v208 = vsel %vm206, %v186, 0
      %v211 = vsel %vm206, %v187, 0
      %v214 = vsel %vm206, %v188, 0
      %v217 = vsel %vm206, %v189, 0
      %vm219 = vcmask 1040384
      %v220 = vsel 0, 4294967295, 65535
      %v221 = vsel %vm219, %v220, 0
      %v223 = vand.u32 %v204, %v221
      %225 = vmatprep.subr.bf16.mxu0 0
      %226 = vmatpush1.bf16.msra.mxu0 %v203
      %227 = vmatprep.subr.bf16.mxu0 0
      %228 = vmatpush1.bf16.msra.mxu0 %v223
      %229 = vmatprep.subr.bf16.mxu0 0
      %230 = vmatpush1.bf16.msra.mxu0 0
      %231 = vmatprep.subr.bf16.mxu0 0
      %232 = vmatpush1.bf16.msra.mxu0 0
      %233 = vmatprep.subr.bf16.mxu0 0
      %234 = vmatpush1.bf16.msra.mxu0 0
      %235 = vmatprep.subr.bf16.mxu0 0
      %236 = vmatpush1.bf16.msra.mxu0 0
      %237 = vmatprep.subr.bf16.mxu0 0
      %238 = vmatpush1.bf16.msra.mxu0 0
      %239 = vmatprep.subr.bf16.mxu0 0
      %240 = vmatpush1.bf16.msra.mxu0 0
      %241 = vmatprep.subr.bf16.mxu0 0
      %242 = vmatpush1.bf16.msra.mxu0 0
      %243 = vmatprep.subr.bf16.mxu0 0
      %244 = vmatpush1.bf16.msra.mxu0 0
      %245 = vmatprep.subr.bf16.mxu0 0
      %246 = vmatpush1.bf16.msra.mxu0 0
      %247 = vmatprep.subr.bf16.mxu0 0
      %248 = vmatpush1.bf16.msra.mxu0 0
      %249 = vmatprep.subr.bf16.mxu0 0
      %250 = vmatpush1.bf16.msra.mxu0 0
      %251 = vmatprep.subr.bf16.mxu0 0
      %252 = vmatpush1.bf16.msra.mxu0 0
      %253 = vmatprep.subr.bf16.mxu0 0
      %254 = vmatpush1.bf16.msra.mxu0 0
      %255 = vmatprep.subr.bf16.mxu0 0
      %256 = vmatpush1.bf16.msra.mxu0 0
      %257 = vmatprep.mubr.bf16.mxu0 0
      %258 = vmatmul.mubr.bf16.gmra.mrb[0].mxu0 %v208
      %v259 = vpop.f32.mrb[0].mxu0
      %v260 = vadd.f32 %v195, %v259
      %v261 = vpop.f32.mrb[0].mxu0
      %v262 = vpop.f32.mrb[0].mxu0
      %v263 = vadd.f32 %v195, %v262
      %v264 = vpop.f32.mrb[0].mxu0
      %265 = vmatprep.mubr.bf16.mxu0 0
      %266 = vmatmul.mubr.bf16.gmra.mrb[0].mxu0 %v211
      %v267 = vpop.f32.mrb[0].mxu0
      %v268 = vadd.f32 %v195, %v267
      %v269 = vpop.f32.mrb[0].mxu0
      %v270 = vpop.f32.mrb[0].mxu0
      %v271 = vadd.f32 %v195, %v270
      %v272 = vpop.f32.mrb[0].mxu0
      %273 = vmatprep.mubr.bf16.mxu0 0
      %274 = vmatmul.mubr.bf16.gmra.mrb[0].mxu0 %v214
      %v275 = vpop.f32.mrb[0].mxu0
      %v276 = vadd.f32 %v195, %v275
      %v277 = vpop.f32.mrb[0].mxu0
      %v278 = vpop.f32.mrb[0].mxu0
      %v279 = vadd.f32 %v195, %v278
      %v280 = vpop.f32.mrb[0].mxu0
      %281 = vmatprep.mubr.bf16.mxu0 0
      %282 = vmatmul.mubr.bf16.gmra.mrb[0].mxu0 %v217
      %v283 = vpop.f32.mrb[0].mxu0
      %v284 = vadd.f32 %v195, %v283
      %v285 = vpop.f32.mrb[0].mxu0
      %v286 = vpop.f32.mrb[0].mxu0
      %v287 = vadd.f32 %v195, %v286
      %v288 = vpop.f32.mrb[0].mxu0
      %289 = vdwg.mxu0
      %vm290 = vcmask 261120
      %291 = vst.msk [vmem:[%s172] sm:$0xff] %vm290, %v260
      %292 = vst.msk [vmem:[%s172 + $0x8] sm:$0xff] %vm290, %v263
      %293 = vst.msk [vmem:[%s172 + $0x10] sm:$0xff] %vm290, %v268
      %294 = vst.msk [vmem:[%s172 + $0x18] sm:$0xff] %vm290, %v271
      %295 = vst.msk [vmem:[%s172 + $0x20] sm:$0xff] %vm290, %v276
      %296 = vst.msk [vmem:[%s172 + $0x28] sm:$0xff] %vm290, %v279
      %297 = vst.msk [vmem:[%s172 + $0x30] sm:$0xff] %vm290, %v284
      %298 = vst.msk [vmem:[%s172 + $0x38] sm:$0xff] %vm290, %v287
      %s299 = smul.u32 8, %s14
      %p300 = scmp.lt.s32.totalorder %s299, 15
      %s301 = scalar_select %p300, %s299, 15
      %s302 = smul.addr %s301, 8
      %s303 = scalar_lea.vmem %s3, %s302
      // Predicated region
      $region33: #{pair_energies_forward.6} parent=31 // pred_check
        %p304 = pneg %p100
      $region34: #{pair_energies_forward.6} parent=31 // pred_check_branch
        %306 = sbr.rel (%p304) target = $region36
      $region35: #{pair_energies_forward.6} parent=31 // pred_region
        %s307 = smul.u32 8, %s14
      $region36: #{pair_energies_forward.6} parent=31 // pred_fallthru
        _
    $region32: #{pair_energies_forward.6} parent=5 // pred_fallthru
      _
    %p308 = scmp.le.s32.totalorder 2, %s9
    // Predicated region
    $region37: #{pair_energies_forward.6} parent=5 // pred_check
      %p309 = pneg %p308
    $region38: #{pair_energies_forward.6} parent=5 // pred_check_branch
      %311 = sbr.rel (%p309) target = $region40
    $region39: #{pair_energies_forward.6} parent=5 // pred_region
      %s312 = ssub.s32 %s9, 2
      // Predicated region
      $region41: #{pair_energies_forward.6} parent=39 // pred_check
        %p313 = pneg %p106
      $region42: #{pair_energies_forward.6} parent=39 // pred_check_branch
        %315 = sbr.rel (%p313) target = $region44
      $region43: #{pair_energies_forward.6} parent=39 // pred_region
        %s316 = smul.u32 8, %s15
        %p317 = scmp.lt.s32.totalorder %s316, 15
        %s318 = scalar_select %p317, %s316, 15
        %s319 = smul.addr %s318, 8
        %s320 = scalar_lea.vmem %s3, %s319
      $region44: #{pair_energies_forward.6} parent=39 // pred_fallthru
        _
    $region40: #{pair_energies_forward.6} parent=5 // pred_fallthru
      _
  $region6: #{pair_energies_forward.6} parent=0 // loop_footer
    %s13 = sadd.s32 1, %s9
  $region7: #{pair_energies_forward.6} parent=0 // loop_footer_branch
    %8 = sbr.rel target = $region3
  $region8: #{pair_energies_forward.6} parent=0 // loop_exit
    _

// kernel: pair_energies_forward.5
$region0: #{pair_energies_forward.5}
  #allocation0 [shape = 'u32[]', space=smem, size = 0x4, offset = 0x4, fixed_abs, tag = 'smem constant byte address 0x4 - core index']
  #allocation1 [shape = 'u32[144,128]{1,0:T(1,128)}', space=vmem, size = 0x12000, scoped, tag = 'internal scratch']
  %s0 = inlined_call_operand.vmem [shape: f32[16,6], index: 0, kind: input, shape index: {}]
  %s1 = inlined_call_operand.vmem [shape: bf16[6,32], index: 1, kind: input, shape index: {}]
  %s2 = inlined_call_operand.vmem [shape: f32[1,32], index: 2, kind: input, shape index: {}]
  %s3 = inlined_call_operand.vmem [shape: f32[16,32], index: 3, kind: output, shape index: {}]
  %s4 = sld [smem:[#allocation0]]
  $region45: #{pair_energies_forward.5} parent=0
    _
  %s6 = ssub.s32 1, %s4
  %s7 = scalar_select 0, %s6, %s4
  loop: start=0, step=1, limit=4
  $region2: #{pair_energies_forward.5} parent=0 // loop_pre_header
    _
  $region3: #{pair_energies_forward.5} parent=0 // loop_header
    %s9 = sphi 0, %s13
    %p10 = scmp.ge.s32.totalorder %s9, 4
    %s19 = sphi 0, %s21
    %s22 = sphi 0, %s19
    %s23 = sphi 0, %s22
    %s39 = sphi 0, %s23
    %s43 = sphi 0, %s43
    %s45 = sphi 0, %s43
    %s46 = sphi 0, %s45
    %s60 = sphi 0, %s46
    %s64 = sphi 0, %s64
    %s66 = sphi 0, %s64
    %s67 = sphi 0, %s66
    %s81 = sphi 0, %s67
    %s87 = sphi 0, %s89
    %s90 = sphi 0, %s87
    %s91 = sphi 0, %s90
    %s107 = sphi 0, %s91
  $region4: #{pair_energies_forward.5} parent=0 // loop_header_branch
    %12 = sbr.rel (%p10) target = $region8
  $region5: #{pair_energies_forward.5} parent=0 // loop_body
    %s14 = ssub.s32 %s9, 1
    %s15 = ssub.s32 %s9, 2
    %s16 = sadd.s32 %s9, 1
    %s17 = ssub.s32 %s9, %s16
    %p18 = scmp.eq.s32.totalorder %s17, 0
    %s20 = sadd.s32 %s19, 1
    %s21 = scalar_select %p18, %s19, %s20
    %p24 = pneg %p18
    %p25 = scmp.eq.s32.totalorder %s9, 1
    %p26 = por %p24, %p25
    %p27 = scmp.ne.s32.totalorder %s19, %s22
    %p28 = scmp.eq.s32.totalorder %s9, 0
    %p29 = por %p27, %p28
    %p30 = scmp.ne.s32.totalorder %s19, %s22
    %p31 = scmp.eq.s32.totalorder %s14, 1
    %p32 = por %p30, %p31
    %p33 = scmp.ne.s32.totalorder %s22, %s23
    %p34 = scmp.eq.s32.totalorder %s14, 0
    %p35 = por %p33, %p34
    %p36 = scmp.ne.s32.totalorder %s22, %s23
    %p37 = scmp.eq.s32.totalorder %s15, 1
    %p38 = por %p36, %p37
    %p40 = scmp.ne.s32.totalorder %s23, %s39
    %p41 = scmp.eq.s32.totalorder %s15, 0
    %p42 = por %p40, %p41
    %s44 = sadd.s32 %s43, 1
    %p47 = scmp.eq.s32.totalorder %s9, 1
    %p48 = scmp.ne.s32.totalorder %s43, %s45
    %p49 = scmp.eq.s32.totalorder %s9, 0
    %p50 = por %p48, %p49
    %p51 = scmp.ne.s32.totalorder %s43, %s45
    %p52 = scmp.eq.s32.totalorder %s14, 1
    %p53 = por %p51, %p52
    %p54 = scmp.ne.s32.totalorder %s45, %s46
    %p55 = scmp.eq.s32.totalorder %s14, 0
    %p56 = por %p54, %p55
    %p57 = scmp.ne.s32.totalorder %s45, %s46
    %p58 = scmp.eq.s32.totalorder %s15, 1
    %p59 = por %p57, %p58
    %p61 = scmp.ne.s32.totalorder %s46, %s60
    %p62 = scmp.eq.s32.totalorder %s15, 0
    %p63 = por %p61, %p62
    %s65 = sadd.s32 %s64, 1
    %p68 = scmp.eq.s32.totalorder %s9, 1
    %p69 = scmp.ne.s32.totalorder %s64, %s66
    %p70 = scmp.eq.s32.totalorder %s9, 0
    %p71 = por %p69, %p70
    %p72 = scmp.ne.s32.totalorder %s64, %s66
    %p73 = scmp.eq.s32.totalorder %s14, 1
    %p74 = por %p72, %p73
    %p75 = scmp.ne.s32.totalorder %s66, %s67
    %p76 = scmp.eq.s32.totalorder %s14, 0
    %p77 = por %p75, %p76
    %p78 = scmp.ne.s32.totalorder %s66, %s67
    %p79 = scmp.eq.s32.totalorder %s15, 1
    %p80 = por %p78, %p79
    %p82 = scmp.ne.s32.totalorder %s67, %s81
    %p83 = scmp.eq.s32.totalorder %s15, 0
    %p84 = por %p82, %p83
    %s85 = ssub.s32 %s9, %s16
    %p86 = scmp.eq.s32.totalorder %s85, 0
    %s88 = sadd.s32 %s87, 1
    %s89 = scalar_select %p86, %s87, %s88
    %p92 = pneg %p86
    %p93 = scmp.eq.s32.totalorder %s9, 1
    %p94 = por %p92, %p93
    %p95 = scmp.ne.s32.totalorder %s87, %s90
    %p96 = scmp.eq.s32.totalorder %s9, 0
    %p97 = por %p95, %p96
    %p98 = scmp.ne.s32.totalorder %s87, %s90
    %p99 = scmp.eq.s32.totalorder %s14, 1
    %p100 = por %p98, %p99
    %p101 = scmp.ne.s32.totalorder %s90, %s91
    %p102 = scmp.eq.s32.totalorder %s14, 0
    %p103 = por %p101, %p102
    %p104 = scmp.ne.s32.totalorder %s90, %s91
    %p105 = scmp.eq.s32.totalorder %s15, 1
    %p106 = por %p104, %p105
    %p108 = scmp.ne.s32.totalorder %s91, %s107
    %p109 = scmp.eq.s32.totalorder %s15, 0
    %p110 = por %p108, %p109
    %p111 = scmp.le.s32.totalorder 1, %s9
    %p112 = scmp.lt.s32.totalorder %s9, 3
    %p113 = pnand %p111, %p112
    %p114 = pneg %p113
    // Predicated region
    $region9: #{pair_energies_forward.5} parent=5 // pred_check
      _
    $region10: #{pair_energies_forward.5} parent=5 // pred_check_branch
      %116 = sbr.rel (%p113) target = $region12
    $region11: #{pair_energies_forward.5} parent=5 // pred_region
      %s117 = ssub.s32 %s9, 1
      // Predicated region
      $region13: #{pair_energies_forward.5} parent=11 // pred_check
        %p118 = pneg %p56
      $region14: #{pair_energies_forward.5} parent=11 // pred_check_branch
        %120 = sbr.rel (%p118) target = $region16
      $region15: #{pair_energies_forward.5} parent=11 // pred_region
        _
      $region16: #{pair_energies_forward.5} parent=11 // pred_fallthru
        _
      // Predicated region
      $region17: #{pair_energies_forward.5} parent=11 // pred_check
        %p121 = pneg %p77
      $region18: #{pair_energies_forward.5} parent=11 // pred_check_branch
        %123 = sbr.rel (%p121) target = $region20
      $region19: #{pair_energies_forward.5} parent=11 // pred_region
        _
      $region20: #{pair_energies_forward.5} parent=11 // pred_fallthru
        _
    $region12: #{pair_energies_forward.5} parent=5 // pred_fallthru
      _
    %p124 = scmp.lt.s32.totalorder %s9, 2
    // Predicated region
    $region21: #{pair_energies_forward.5} parent=5 // pred_check
      %p125 = pneg %p124
    $region22: #{pair_energies_forward.5} parent=5 // pred_check_branch
      %127 = sbr.rel (%p125) target = $region24
    $region23: #{pair_energies_forward.5} parent=5 // pred_region
      // Predicated region
      $region25: #{pair_energies_forward.5} parent=23 // pred_check
        %p128 = pneg %p29
      $region26: #{pair_energies_forward.5} parent=23 // pred_check_branch
        %130 = sbr.rel (%p128) target = $region28
      $region27: #{pair_energies_forward.5} parent=23 // pred_region
        %p131 = scmp.lt.s32.totalorder %s9, 1
        %s132 = scalar_select %p131, %s9, 1
        %s133 = smul.addr %s132, 8
        %s134 = scalar_lea.vmem %s0, %s133
      $region28: #{pair_energies_forward.5} parent=23 // pred_fallthru
        _
    $region24: #{pair_energies_forward.5} parent=5 // pred_fallthru
      _
    %p135 = scmp.le.s32.totalorder 1, %s9
    %p136 = scmp.lt.s32.totalorder %s9, 3
    %p137 = pnand %p135, %p136
    %p138 = pneg %p137
    // Predicated region
    $region29: #{pair_energies_forward.5} parent=5 // pred_check
      _
    $region30: #{pair_energies_forward.5} parent=5 // pred_check_branch
      %140 = sbr.rel (%p137) target = $region32
    $region31: #{pair_energies_forward.5} parent=5 // pred_region
      %s141 = ssub.s32 %s9, 1
      %p142 = scmp.lt.s32.totalorder %s14, 1
      %s143 = scalar_select %p142, %s14, 1
      %s144 = smul.addr %s143, 8
      %s145 = scalar_lea.vmem %s0, %s144
      %p146 = pneg %p35
      %p147 = pneg %p32
      %p148 = pneg %p56
      %p149 = pneg %p53
      %p150 = pneg %p77
      %p151 = pneg %p74
      %p152 = pneg %p103
      %p153 = pneg %p100
      %p154 = scmp.lt.s32.totalorder %s14, 1
      %s155 = scalar_select %p154, %s14, 1
      %s156 = smul.addr %s155, 8
      %s157 = scalar_lea.vmem %s3, %s156
      %p158 = scmp.lt.s32.totalorder %s14, 1
      %s159 = scalar_select %p158, %s14, 1
      %s160 = smul.addr %s159, 8
      %s161 = scalar_lea.vmem %s0, %s160
      %p162 = scmp.lt.s32.totalorder %s14, 1
      %s163 = scalar_select %p162, %s14, 1
      %s164 = smul.addr %s163, 8
      %s165 = scalar_lea.vmem %s3, %s164
      %v167 = vld [vmem:[%s161] sm:$0xff]
      %v168 = vld [vmem:[%s1] sm:$0x7]
      %v169 = vpack.c.bf16 %v167, %v167
      %v170 = vld [vmem:[%s2] sm:$0x1]
      %v172 = vlaneseq
      %v173 = vshrl.u32 %v172, 7
      %v174 = vsub.s32 0, %v173
      %v175 = vrot.slane %v170, %v174
      %vm177 = vcmask 48128
      %v179 = vsel %vm177, %v169, 0
      %vm181 = vcmask 1042432
      %v183 = vsel %vm181, %v168, 0
      %185 = vmatprep.subr.bf16.mxu0 0
      %186 = vmatpush1.bf16.msra.mxu0 %v183
      %187 = vmatprep.subr.bf16.mxu0 0
      %188 = vmatpush1.bf16.msra.mxu0 0
      %189 = vmatprep.subr.bf16.mxu0 0
      %190 = vmatpush1.bf16.msra.mxu0 0
      %191 = vmatprep.subr.bf16.mxu0 0
      %192 = vmatpush1.bf16.msra.mxu0 0
      %193 = vmatprep.subr.bf16.mxu0 0
      %194 = vmatpush1.bf16.msra.mxu0 0
      %195 = vmatprep.subr.bf16.mxu0 0
      %196 = vmatpush1.bf16.msra.mxu0 0
      %197 = vmatprep.subr.bf16.mxu0 0
      %198 = vmatpush1.bf16.msra.mxu0 0
      %199 = vmatprep.subr.bf16.mxu0 0
      %200 = vmatpush1.bf16.msra.mxu0 0
      %201 = vmatprep.subr.bf16.mxu0 0
      %202 = vmatpush1.bf16.msra.mxu0 0
      %203 = vmatprep.subr.bf16.mxu0 0
      %204 = vmatpush1.bf16.msra.mxu0 0
      %205 = vmatprep.subr.bf16.mxu0 0
      %206 = vmatpush1.bf16.msra.mxu0 0
      %207 = vmatprep.subr.bf16.mxu0 0
      %208 = vmatpush1.bf16.msra.mxu0 0
      %209 = vmatprep.subr.bf16.mxu0 0
      %210 = vmatpush1.bf16.msra.mxu0 0
      %211 = vmatprep.subr.bf16.mxu0 0
      %212 = vmatpush1.bf16.msra.mxu0 0
      %213 = vmatprep.subr.bf16.mxu0 0
      %214 = vmatpush1.bf16.msra.mxu0 0
      %215 = vmatprep.subr.bf16.mxu0 0
      %216 = vmatpush1.bf16.msra.mxu0 0
      %217 = vmatprep.mubr.bf16.mxu0 0
      %218 = vmatmul.mubr.bf16.gmra.mrb[0].mxu0 %v179
      %v219 = vpop.f32.mrb[0].mxu0
      %v220 = vadd.f32 %v175, %v219
      %v221 = vpop.f32.mrb[0].mxu0
      %v222 = vpop.f32.mrb[0].mxu0
      %v223 = vpop.f32.mrb[0].mxu0
      %224 = vdwg.mxu0
      %vm225 = vcmask 261120
      %226 = vst.msk [vmem:[%s165] sm:$0xff] %vm225, %v220
      %p227 = scmp.lt.s32.totalorder %s14, 1
      %s228 = scalar_select %p227, %s14, 1
      %s229 = smul.addr %s228, 8
      %s230 = scalar_lea.vmem %s3, %s229
      // Predicated region
      $region33: #{pair_energies_forward.5} parent=31 // pred_check
        %p231 = pneg %p100
      $region34: #{pair_energies_forward.5} parent=31 // pred_check_branch
        %233 = sbr.rel (%p231) target = $region36
      $region35: #{pair_energies_forward.5} parent=31 // pred_region
        _
      $region36: #{pair_energies_forward.5} parent=31 // pred_fallthru
        _
    $region32: #{pair_energies_forward.5} parent=5 // pred_fallthru
      _
    %p234 = scmp.le.s32.totalorder 2, %s9
    // Predicated region
    $region37: #{pair_energies_forward.5} parent=5 // pred_check
      %p235 = pneg %p234
    $region38: #{pair_energies_forward.5} parent=5 // pred_check_branch
      %237 = sbr.rel (%p235) target = $region40
    $region39: #{pair_energies_forward.5} parent=5 // pred_region
      %s238 = ssub.s32 %s9, 2
      // Predicated region
      $region41: #{pair_energies_forward.5} parent=39 // pred_check
        %p239 = pneg %p106
      $region42: #{pair_energies_forward.5} parent=39 // pred_check_branch
        %241 = sbr.rel (%p239) target = $region44
      $region43: #{pair_energies_forward.5} parent=39 // pred_region
        %p242 = scmp.lt.s32.totalorder %s15, 1
        %s243 = scalar_select %p242, %s15, 1
        %s244 = smul.addr %s243, 8
        %s245 = scalar_lea.vmem %s3, %s244
      $region44: #{pair_energies_forward.5} parent=39 // pred_fallthru
        _
    $region40: #{pair_energies_forward.5} parent=5 // pred_fallthru
      _
  $region6: #{pair_energies_forward.5} parent=0 // loop_footer
    %s13 = sadd.s32 1, %s9
  $region7: #{pair_energies_forward.5} parent=0 // loop_footer_branch
    %8 = sbr.rel target = $region3
  $region8: #{pair_energies_forward.5} parent=0 // loop_exit
    _

// kernel: pair_energies_forward.7
$region0: #{pair_energies_forward.7}
  #allocation0 [shape = 'u32[]', space=smem, size = 0x4, offset = 0x4, fixed_abs, tag = 'smem constant byte address 0x4 - core index']
  #allocation1 [shape = 'u32[144,128]{1,0:T(1,128)}', space=vmem, size = 0x12000, scoped, tag = 'internal scratch']
  %s0 = inlined_call_operand.vmem [shape: f32[16,8,32], index: 0, kind: input, shape index: {}]
  %s1 = inlined_call_operand.vmem [shape: f32[16,32], index: 1, kind: input, shape index: {}]
  %s2 = inlined_call_operand.vmem [shape: f32[16,8,32], index: 2, kind: input, shape index: {}]
  %s3 = inlined_call_operand.vmem [shape: f32[16,8], index: 3, kind: input, shape index: {}]
  %s4 = inlined_call_operand.vmem [shape: f32[16,1], index: 4, kind: input, shape index: {}]
  %s5 = inlined_call_operand.vmem [shape: bf16[32,32], index: 5, kind: input, shape index: {}]
  %s6 = inlined_call_operand.vmem [shape: bf16[32,32], index: 6, kind: input, shape index: {}]
  %s7 = inlined_call_operand.vmem [shape: bf16[32,32], index: 7, kind: input, shape index: {}]
  %s8 = inlined_call_operand.vmem [shape: f32[1,32], index: 8, kind: input, shape index: {}, may-alias: {8,10,12,14,18,20}]
  %s9 = inlined_call_operand.vmem [shape: bf16[32,32], index: 9, kind: input, shape index: {}]
  %s10 = inlined_call_operand.vmem [shape: f32[1,32], index: 10, kind: input, shape index: {}, may-alias: {8,10,12,14,18,20}]
  %s11 = inlined_call_operand.vmem [shape: bf16[32,32], index: 11, kind: input, shape index: {}]
  %s12 = inlined_call_operand.vmem [shape: f32[1,32], index: 12, kind: input, shape index: {}, may-alias: {8,10,12,14,18,20}]
  %s13 = inlined_call_operand.vmem [shape: f32[1,32], index: 13, kind: input, shape index: {}, may-alias: {13,19}]
  %s14 = inlined_call_operand.vmem [shape: f32[1,32], index: 14, kind: input, shape index: {}, may-alias: {8,10,12,14,18,20}]
  %s15 = inlined_call_operand.vmem [shape: bf16[32,128], index: 15, kind: input, shape index: {}]
  %s16 = inlined_call_operand.vmem [shape: f32[1,128], index: 16, kind: input, shape index: {}]
  %s17 = inlined_call_operand.vmem [shape: bf16[128,32], index: 17, kind: input, shape index: {}]
  %s18 = inlined_call_operand.vmem [shape: f32[1,32], index: 18, kind: input, shape index: {}, may-alias: {8,10,12,14,18,20}]
  %s19 = inlined_call_operand.vmem [shape: f32[1,32], index: 19, kind: input, shape index: {}, may-alias: {13,19}]
  %s20 = inlined_call_operand.vmem [shape: f32[1,32], index: 20, kind: input, shape index: {}, may-alias: {8,10,12,14,18,20}]
  %s21 = inlined_call_operand.hbm [shape: f32[16,8,32], index: 21, kind: output, shape index: {}]
  %s22 = sld [smem:[#allocation0]]
  $region117: #{pair_energies_forward.7} parent=0
    _
  %s24 = ssub.s32 1, %s22
  %s25 = scalar_select 0, %s24, %s22
  $region1: #{pair_energies_forward.7} parent=0
    #allocation2 [shape = 'u8[65536]{0}', space=vmem, size = 0x10000, scoped, tag = 'output window, operand 0']
    #allocation3 [shape = 's32[2]{0}', space=sflag, size = 0x8, scoped, tag = 'scoped memory for pair_energies_forward.7']
    %26 = vsyncpa [#allocation3], 0
    %s27 = scalar_lea.sflag [#allocation3], 1
    %28 = vsyncpa %s27, 0
    loop: start=0, step=1, limit=4
    $region2: #{pair_energies_forward.7} parent=1 // loop_pre_header
      _
    $region3: #{pair_energies_forward.7} parent=1 // loop_header
      %s30 = sphi 0, %s34
      %p31 = scmp.ge.s32.totalorder %s30, 4
      %s40 = sphi 0, %s42
      %s43 = sphi 0, %s40
      %s44 = sphi 0, %s43
      %s60 = sphi 0, %s44
      %s66 = sphi 0, %s68
      %s69 = sphi 0, %s66
      %s70 = sphi 0, %s69
      %s86 = sphi 0, %s70
      %s92 = sphi 0, %s94
      %s95 = sphi 0, %s92
      %s96 = sphi 0, %s95
      %s112 = sphi 0, %s96
      %s118 = sphi 0, %s120
      %s121 = sphi 0, %s118
      %s122 = sphi 0, %s121
      %s138 = sphi 0, %s122
      %s144 = sphi 0, %s146
      %s147 = sphi 0, %s144
      %s148 = sphi 0, %s147
      %s164 = sphi 0, %s148
      %s168 = sphi 0, %s168
      %s170 = sphi 0, %s168
      %s171 = sphi 0, %s170
      %s185 = sphi 0, %s171
      %s189 = sphi 0, %s189
      %s191 = sphi 0, %s189
      %s192 = sphi 0, %s191
      %s206 = sphi 0, %s192
      %s210 = sphi 0, %s210
      %s212 = sphi 0, %s210
      %s213 = sphi 0, %s212
      %s227 = sphi 0, %s213
      %s231 = sphi 0, %s231
      %s233 = sphi 0, %s231
      %s234 = sphi 0, %s233
      %s248 = sphi 0, %s234
      %s252 = sphi 0, %s252
      %s254 = sphi 0, %s252
      %s255 = sphi 0, %s254
      %s269 = sphi 0, %s255
      %s273 = sphi 0, %s273
      %s275 = sphi 0, %s273
      %s276 = sphi 0, %s275
      %s290 = sphi 0, %s276
      %s294 = sphi 0, %s294
      %s296 = sphi 0, %s294
      %s297 = sphi 0, %s296
      %s311 = sphi 0, %s297
      %s315 = sphi 0, %s315
      %s317 = sphi 0, %s315
      %s318 = sphi 0, %s317
      %s332 = sphi 0, %s318
      %s336 = sphi 0, %s336
      %s338 = sphi 0, %s336
      %s339 = sphi 0, %s338
      %s353 = sphi 0, %s339
      %s357 = sphi 0, %s357
      %s359 = sphi 0, %s357
      %s360 = sphi 0, %s359
      %s374 = sphi 0, %s360
      %s378 = sphi 0, %s378
      %s380 = sphi 0, %s378
      %s381 = sphi 0, %s380
      %s395 = sphi 0, %s381
      %s399 = sphi 0, %s399
      %s401 = sphi 0, %s399
      %s402 = sphi 0, %s401
      %s416 = sphi 0, %s402
      %s420 = sphi 0, %s420
      %s422 = sphi 0, %s420
      %s423 = sphi 0, %s422
      %s437 = sphi 0, %s423
      %s441 = sphi 0, %s441
      %s443 = sphi 0, %s441
      %s444 = sphi 0, %s443
      %s458 = sphi 0, %s444
      %s462 = sphi 0, %s462
      %s464 = sphi 0, %s462
      %s465 = sphi 0, %s464
      %s479 = sphi 0, %s465
      %s483 = sphi 0, %s483
      %s485 = sphi 0, %s483
      %s486 = sphi 0, %s485
      %s500 = sphi 0, %s486
      %s506 = sphi 0, %s508
      %s509 = sphi 0, %s506
      %s510 = sphi 0, %s509
      %s526 = sphi 0, %s510
    $region4: #{pair_energies_forward.7} parent=1 // loop_header_branch
      %33 = sbr.rel (%p31) target = $region8
    $region5: #{pair_energies_forward.7} parent=1 // loop_body
      %s35 = ssub.s32 %s30, 1
      %s36 = ssub.s32 %s30, 2
      %s37 = sadd.s32 %s30, 1
      %s38 = ssub.s32 %s30, %s37
      %p39 = scmp.eq.s32.totalorder %s38, 0
      %s41 = sadd.s32 %s40, 1
      %s42 = scalar_select %p39, %s40, %s41
      %p45 = pneg %p39
      %p46 = scmp.eq.s32.totalorder %s30, 1
      %p47 = por %p45, %p46
      %p48 = scmp.ne.s32.totalorder %s40, %s43
      %p49 = scmp.eq.s32.totalorder %s30, 0
      %p50 = por %p48, %p49
      %p51 = scmp.ne.s32.totalorder %s40, %s43
      %p52 = scmp.eq.s32.totalorder %s35, 1
      %p53 = por %p51, %p52
      %p54 = scmp.ne.s32.totalorder %s43, %s44
      %p55 = scmp.eq.s32.totalorder %s35, 0
      %p56 = por %p54, %p55
      %p57 = scmp.ne.s32.totalorder %s43, %s44
      %p58 = scmp.eq.s32.totalorder %s36, 1
      %p59 = por %p57, %p58
      %p61 = scmp.ne.s32.totalorder %s44, %s60
      %p62 = scmp.eq.s32.totalorder %s36, 0
      %p63 = por %p61, %p62
      %s64 = ssub.s32 %s30, %s37
      %p65 = scmp.eq.s32.totalorder %s64, 0
      %s67 = sadd.s32 %s66, 1
      %s68 = scalar_select %p65, %s66, %s67
      %p71 = pneg %p65
      %p72 = scmp.eq.s32.totalorder %s30, 1
      %p73 = por %p71, %p72
      %p74 = scmp.ne.s32.totalorder %s66, %s69
      %p75 = scmp.eq.s32.totalorder %s30, 0
      %p76 = por %p74, %p75
      %p77 = scmp.ne.s32.totalorder %s66, %s69
      %p78 = scmp.eq.s32.totalorder %s35, 1
      %p79 = por %p77, %p78
      %p80 = scmp.ne.s32.totalorder %s69, %s70
      %p81 = scmp.eq.s32.totalorder %s35, 0
      %p82 = por %p80, %p81
      %p83 = scmp.ne.s32.totalorder %s69, %s70
      %p84 = scmp.eq.s32.totalorder %s36, 1
      %p85 = por %p83, %p84
      %p87 = scmp.ne.s32.totalorder %s70, %s86
      %p88 = scmp.eq.s32.totalorder %s36, 0
      %p89 = por %p87, %p88
      %s90 = ssub.s32 %s30, %s37
      %p91 = scmp.eq.s32.totalorder %s90, 0
      %s93 = sadd.s32 %s92, 1
      %s94 = scalar_select %p91, %s92, %s93
      %p97 = pneg %p91
      %p98 = scmp.eq.s32.totalorder %s30, 1
      %p99 = por %p97, %p98
      %p100 = scmp.ne.s32.totalorder %s92, %s95
      %p101 = scmp.eq.s32.totalorder %s30, 0
      %p102 = por %p100, %p101
      %p103 = scmp.ne.s32.totalorder %s92, %s95
      %p104 = scmp.eq.s32.totalorder %s35, 1
      %p105 = por %p103, %p104
      %p106 = scmp.ne.s32.totalorder %s95, %s96
      %p107 = scmp.eq.s32.totalorder %s35, 0
      %p108 = por %p106, %p107
      %p109 = scmp.ne.s32.totalorder %s95, %s96
      %p110 = scmp.eq.s32.totalorder %s36, 1
      %p111 = por %p109, %p110
      %p113 = scmp.ne.s32.totalorder %s96, %s112
      %p114 = scmp.eq.s32.totalorder %s36, 0
      %p115 = por %p113, %p114
      %s116 = ssub.s32 %s30, %s37
      %p117 = scmp.eq.s32.totalorder %s116, 0
      %s119 = sadd.s32 %s118, 1
      %s120 = scalar_select %p117, %s118, %s119
      %p123 = pneg %p117
      %p124 = scmp.eq.s32.totalorder %s30, 1
      %p125 = por %p123, %p124
      %p126 = scmp.ne.s32.totalorder %s118, %s121
      %p127 = scmp.eq.s32.totalorder %s30, 0
      %p128 = por %p126, %p127
      %p129 = scmp.ne.s32.totalorder %s118, %s121
      %p130 = scmp.eq.s32.totalorder %s35, 1
      %p131 = por %p129, %p130
      %p132 = scmp.ne.s32.totalorder %s121, %s122
      %p133 = scmp.eq.s32.totalorder %s35, 0
      %p134 = por %p132, %p133
      %p135 = scmp.ne.s32.totalorder %s121, %s122
      %p136 = scmp.eq.s32.totalorder %s36, 1
      %p137 = por %p135, %p136
      %p139 = scmp.ne.s32.totalorder %s122, %s138
      %p140 = scmp.eq.s32.totalorder %s36, 0
      %p141 = por %p139, %p140
      %s142 = ssub.s32 %s30, %s37
      %p143 = scmp.eq.s32.totalorder %s142, 0
      %s145 = sadd.s32 %s144, 1
      %s146 = scalar_select %p143, %s144, %s145
      %p149 = pneg %p143
      %p150 = scmp.eq.s32.totalorder %s30, 1
      %p151 = por %p149, %p150
      %p152 = scmp.ne.s32.totalorder %s144, %s147
      %p153 = scmp.eq.s32.totalorder %s30, 0
      %p154 = por %p152, %p153
      %p155 = scmp.ne.s32.totalorder %s144, %s147
      %p156 = scmp.eq.s32.totalorder %s35, 1
      %p157 = por %p155, %p156
      %p158 = scmp.ne.s32.totalorder %s147, %s148
      %p159 = scmp.eq.s32.totalorder %s35, 0
      %p160 = por %p158, %p159
      %p161 = scmp.ne.s32.totalorder %s147, %s148
      %p162 = scmp.eq.s32.totalorder %s36, 1
      %p163 = por %p161, %p162
      %p165 = scmp.ne.s32.totalorder %s148, %s164
      %p166 = scmp.eq.s32.totalorder %s36, 0
      %p167 = por %p165, %p166
      %s169 = sadd.s32 %s168, 1
      %p172 = scmp.eq.s32.totalorder %s30, 1
      %p173 = scmp.ne.s32.totalorder %s168, %s170
      %p174 = scmp.eq.s32.totalorder %s30, 0
      %p175 = por %p173, %p174
      %p176 = scmp.ne.s32.totalorder %s168, %s170
      %p177 = scmp.eq.s32.totalorder %s35, 1
      %p178 = por %p176, %p177
      %p179 = scmp.ne.s32.totalorder %s170, %s171
      %p180 = scmp.eq.s32.totalorder %s35, 0
      %p181 = por %p179, %p180
      %p182 = scmp.ne.s32.totalorder %s170, %s171
      %p183 = scmp.eq.s32.totalorder %s36, 1
      %p184 = por %p182, %p183
      %p186 = scmp.ne.s32.totalorder %s171, %s185
      %p187 = scmp.eq.s32.totalorder %s36, 0
      %p188 = por %p186, %p187
      %s190 = sadd.s32 %s189, 1
      %p193 = scmp.eq.s32.totalorder %s30, 1
      %p194 = scmp.ne.s32.totalorder %s189, %s191
      %p195 = scmp.eq.s32.totalorder %s30, 0
      %p196 = por %p194, %p195
      %p197 = scmp.ne.s32.totalorder %s189, %s191
      %p198 = scmp.eq.s32.totalorder %s35, 1
      %p199 = por %p197, %p198
      %p200 = scmp.ne.s32.totalorder %s191, %s192
      %p201 = scmp.eq.s32.totalorder %s35, 0
      %p202 = por %p200, %p201
      %p203 = scmp.ne.s32.totalorder %s191, %s192
      %p204 = scmp.eq.s32.totalorder %s36, 1
      %p205 = por %p203, %p204
      %p207 = scmp.ne.s32.totalorder %s192, %s206
      %p208 = scmp.eq.s32.totalorder %s36, 0
      %p209 = por %p207, %p208
      %s211 = sadd.s32 %s210, 1
      %p214 = scmp.eq.s32.totalorder %s30, 1
      %p215 = scmp.ne.s32.totalorder %s210, %s212
      %p216 = scmp.eq.s32.totalorder %s30, 0
      %p217 = por %p215, %p216
      %p218 = scmp.ne.s32.totalorder %s210, %s212
      %p219 = scmp.eq.s32.totalorder %s35, 1
      %p220 = por %p218, %p219
      %p221 = scmp.ne.s32.totalorder %s212, %s213
      %p222 = scmp.eq.s32.totalorder %s35, 0
      %p223 = por %p221, %p222
      %p224 = scmp.ne.s32.totalorder %s212, %s213
      %p225 = scmp.eq.s32.totalorder %s36, 1
      %p226 = por %p224, %p225
      %p228 = scmp.ne.s32.totalorder %s213, %s227
      %p229 = scmp.eq.s32.totalorder %s36, 0
      %p230 = por %p228, %p229
      %s232 = sadd.s32 %s231, 1
      %p235 = scmp.eq.s32.totalorder %s30, 1
      %p236 = scmp.ne.s32.totalorder %s231, %s233
      %p237 = scmp.eq.s32.totalorder %s30, 0
      %p238 = por %p236, %p237
      %p239 = scmp.ne.s32.totalorder %s231, %s233
      %p240 = scmp.eq.s32.totalorder %s35, 1
      %p241 = por %p239, %p240
      %p242 = scmp.ne.s32.totalorder %s233, %s234
      %p243 = scmp.eq.s32.totalorder %s35, 0
      %p244 = por %p242, %p243
      %p245 = scmp.ne.s32.totalorder %s233, %s234
      %p246 = scmp.eq.s32.totalorder %s36, 1
      %p247 = por %p245, %p246
      %p249 = scmp.ne.s32.totalorder %s234, %s248
      %p250 = scmp.eq.s32.totalorder %s36, 0
      %p251 = por %p249, %p250
      %s253 = sadd.s32 %s252, 1
      %p256 = scmp.eq.s32.totalorder %s30, 1
      %p257 = scmp.ne.s32.totalorder %s252, %s254
      %p258 = scmp.eq.s32.totalorder %s30, 0
      %p259 = por %p257, %p258
      %p260 = scmp.ne.s32.totalorder %s252, %s254
      %p261 = scmp.eq.s32.totalorder %s35, 1
      %p262 = por %p260, %p261
      %p263 = scmp.ne.s32.totalorder %s254, %s255
      %p264 = scmp.eq.s32.totalorder %s35, 0
      %p265 = por %p263, %p264
      %p266 = scmp.ne.s32.totalorder %s254, %s255
      %p267 = scmp.eq.s32.totalorder %s36, 1
      %p268 = por %p266, %p267
      %p270 = scmp.ne.s32.totalorder %s255, %s269
      %p271 = scmp.eq.s32.totalorder %s36, 0
      %p272 = por %p270, %p271
      %s274 = sadd.s32 %s273, 1
      %p277 = scmp.eq.s32.totalorder %s30, 1
      %p278 = scmp.ne.s32.totalorder %s273, %s275
      %p279 = scmp.eq.s32.totalorder %s30, 0
      %p280 = por %p278, %p279
      %p281 = scmp.ne.s32.totalorder %s273, %s275
      %p282 = scmp.eq.s32.totalorder %s35, 1
      %p283 = por %p281, %p282
      %p284 = scmp.ne.s32.totalorder %s275, %s276
      %p285 = scmp.eq.s32.totalorder %s35, 0
      %p286 = por %p284, %p285
      %p287 = scmp.ne.s32.totalorder %s275, %s276
      %p288 = scmp.eq.s32.totalorder %s36, 1
      %p289 = por %p287, %p288
      %p291 = scmp.ne.s32.totalorder %s276, %s290
      %p292 = scmp.eq.s32.totalorder %s36, 0
      %p293 = por %p291, %p292
      %s295 = sadd.s32 %s294, 1
      %p298 = scmp.eq.s32.totalorder %s30, 1
      %p299 = scmp.ne.s32.totalorder %s294, %s296
      %p300 = scmp.eq.s32.totalorder %s30, 0
      %p301 = por %p299, %p300
      %p302 = scmp.ne.s32.totalorder %s294, %s296
      %p303 = scmp.eq.s32.totalorder %s35, 1
      %p304 = por %p302, %p303
      %p305 = scmp.ne.s32.totalorder %s296, %s297
      %p306 = scmp.eq.s32.totalorder %s35, 0
      %p307 = por %p305, %p306
      %p308 = scmp.ne.s32.totalorder %s296, %s297
      %p309 = scmp.eq.s32.totalorder %s36, 1
      %p310 = por %p308, %p309
      %p312 = scmp.ne.s32.totalorder %s297, %s311
      %p313 = scmp.eq.s32.totalorder %s36, 0
      %p314 = por %p312, %p313
      %s316 = sadd.s32 %s315, 1
      %p319 = scmp.eq.s32.totalorder %s30, 1
      %p320 = scmp.ne.s32.totalorder %s315, %s317
      %p321 = scmp.eq.s32.totalorder %s30, 0
      %p322 = por %p320, %p321
      %p323 = scmp.ne.s32.totalorder %s315, %s317
      %p324 = scmp.eq.s32.totalorder %s35, 1
      %p325 = por %p323, %p324
      %p326 = scmp.ne.s32.totalorder %s317, %s318
      %p327 = scmp.eq.s32.totalorder %s35, 0
      %p328 = por %p326, %p327
      %p329 = scmp.ne.s32.totalorder %s317, %s318
      %p330 = scmp.eq.s32.totalorder %s36, 1
      %p331 = por %p329, %p330
      %p333 = scmp.ne.s32.totalorder %s318, %s332
      %p334 = scmp.eq.s32.totalorder %s36, 0
      %p335 = por %p333, %p334
      %s337 = sadd.s32 %s336, 1
      %p340 = scmp.eq.s32.totalorder %s30, 1
      %p341 = scmp.ne.s32.totalorder %s336, %s338
      %p342 = scmp.eq.s32.totalorder %s30, 0
      %p343 = por %p341, %p342
      %p344 = scmp.ne.s32.totalorder %s336, %s338
      %p345 = scmp.eq.s32.totalorder %s35, 1
      %p346 = por %p344, %p345
      %p347 = scmp.ne.s32.totalorder %s338, %s339
      %p348 = scmp.eq.s32.totalorder %s35, 0
      %p349 = por %p347, %p348
      %p350 = scmp.ne.s32.totalorder %s338, %s339
      %p351 = scmp.eq.s32.totalorder %s36, 1
      %p352 = por %p350, %p351
      %p354 = scmp.ne.s32.totalorder %s339, %s353
      %p355 = scmp.eq.s32.totalorder %s36, 0
      %p356 = por %p354, %p355
      %s358 = sadd.s32 %s357, 1
      %p361 = scmp.eq.s32.totalorder %s30, 1
      %p362 = scmp.ne.s32.totalorder %s357, %s359
      %p363 = scmp.eq.s32.totalorder %s30, 0
      %p364 = por %p362, %p363
      %p365 = scmp.ne.s32.totalorder %s357, %s359
      %p366 = scmp.eq.s32.totalorder %s35, 1
      %p367 = por %p365, %p366
      %p368 = scmp.ne.s32.totalorder %s359, %s360
      %p369 = scmp.eq.s32.totalorder %s35, 0
      %p370 = por %p368, %p369
      %p371 = scmp.ne.s32.totalorder %s359, %s360
      %p372 = scmp.eq.s32.totalorder %s36, 1
      %p373 = por %p371, %p372
      %p375 = scmp.ne.s32.totalorder %s360, %s374
      %p376 = scmp.eq.s32.totalorder %s36, 0
      %p377 = por %p375, %p376
      %s379 = sadd.s32 %s378, 1
      %p382 = scmp.eq.s32.totalorder %s30, 1
      %p383 = scmp.ne.s32.totalorder %s378, %s380
      %p384 = scmp.eq.s32.totalorder %s30, 0
      %p385 = por %p383, %p384
      %p386 = scmp.ne.s32.totalorder %s378, %s380
      %p387 = scmp.eq.s32.totalorder %s35, 1
      %p388 = por %p386, %p387
      %p389 = scmp.ne.s32.totalorder %s380, %s381
      %p390 = scmp.eq.s32.totalorder %s35, 0
      %p391 = por %p389, %p390
      %p392 = scmp.ne.s32.totalorder %s380, %s381
      %p393 = scmp.eq.s32.totalorder %s36, 1
      %p394 = por %p392, %p393
      %p396 = scmp.ne.s32.totalorder %s381, %s395
      %p397 = scmp.eq.s32.totalorder %s36, 0
      %p398 = por %p396, %p397
      %s400 = sadd.s32 %s399, 1
      %p403 = scmp.eq.s32.totalorder %s30, 1
      %p404 = scmp.ne.s32.totalorder %s399, %s401
      %p405 = scmp.eq.s32.totalorder %s30, 0
      %p406 = por %p404, %p405
      %p407 = scmp.ne.s32.totalorder %s399, %s401
      %p408 = scmp.eq.s32.totalorder %s35, 1
      %p409 = por %p407, %p408
      %p410 = scmp.ne.s32.totalorder %s401, %s402
      %p411 = scmp.eq.s32.totalorder %s35, 0
      %p412 = por %p410, %p411
      %p413 = scmp.ne.s32.totalorder %s401, %s402
      %p414 = scmp.eq.s32.totalorder %s36, 1
      %p415 = por %p413, %p414
      %p417 = scmp.ne.s32.totalorder %s402, %s416
      %p418 = scmp.eq.s32.totalorder %s36, 0
      %p419 = por %p417, %p418
      %s421 = sadd.s32 %s420, 1
      %p424 = scmp.eq.s32.totalorder %s30, 1
      %p425 = scmp.ne.s32.totalorder %s420, %s422
      %p426 = scmp.eq.s32.totalorder %s30, 0
      %p427 = por %p425, %p426
      %p428 = scmp.ne.s32.totalorder %s420, %s422
      %p429 = scmp.eq.s32.totalorder %s35, 1
      %p430 = por %p428, %p429
      %p431 = scmp.ne.s32.totalorder %s422, %s423
      %p432 = scmp.eq.s32.totalorder %s35, 0
      %p433 = por %p431, %p432
      %p434 = scmp.ne.s32.totalorder %s422, %s423
      %p435 = scmp.eq.s32.totalorder %s36, 1
      %p436 = por %p434, %p435
      %p438 = scmp.ne.s32.totalorder %s423, %s437
      %p439 = scmp.eq.s32.totalorder %s36, 0
      %p440 = por %p438, %p439
      %s442 = sadd.s32 %s441, 1
      %p445 = scmp.eq.s32.totalorder %s30, 1
      %p446 = scmp.ne.s32.totalorder %s441, %s443
      %p447 = scmp.eq.s32.totalorder %s30, 0
      %p448 = por %p446, %p447
      %p449 = scmp.ne.s32.totalorder %s441, %s443
      %p450 = scmp.eq.s32.totalorder %s35, 1
      %p451 = por %p449, %p450
      %p452 = scmp.ne.s32.totalorder %s443, %s444
      %p453 = scmp.eq.s32.totalorder %s35, 0
      %p454 = por %p452, %p453
      %p455 = scmp.ne.s32.totalorder %s443, %s444
      %p456 = scmp.eq.s32.totalorder %s36, 1
      %p457 = por %p455, %p456
      %p459 = scmp.ne.s32.totalorder %s444, %s458
      %p460 = scmp.eq.s32.totalorder %s36, 0
      %p461 = por %p459, %p460
      %s463 = sadd.s32 %s462, 1
      %p466 = scmp.eq.s32.totalorder %s30, 1
      %p467 = scmp.ne.s32.totalorder %s462, %s464
      %p468 = scmp.eq.s32.totalorder %s30, 0
      %p469 = por %p467, %p468
      %p470 = scmp.ne.s32.totalorder %s462, %s464
      %p471 = scmp.eq.s32.totalorder %s35, 1
      %p472 = por %p470, %p471
      %p473 = scmp.ne.s32.totalorder %s464, %s465
      %p474 = scmp.eq.s32.totalorder %s35, 0
      %p475 = por %p473, %p474
      %p476 = scmp.ne.s32.totalorder %s464, %s465
      %p477 = scmp.eq.s32.totalorder %s36, 1
      %p478 = por %p476, %p477
      %p480 = scmp.ne.s32.totalorder %s465, %s479
      %p481 = scmp.eq.s32.totalorder %s36, 0
      %p482 = por %p480, %p481
      %s484 = sadd.s32 %s483, 1
      %p487 = scmp.eq.s32.totalorder %s30, 1
      %p488 = scmp.ne.s32.totalorder %s483, %s485
      %p489 = scmp.eq.s32.totalorder %s30, 0
      %p490 = por %p488, %p489
      %p491 = scmp.ne.s32.totalorder %s483, %s485
      %p492 = scmp.eq.s32.totalorder %s35, 1
      %p493 = por %p491, %p492
      %p494 = scmp.ne.s32.totalorder %s485, %s486
      %p495 = scmp.eq.s32.totalorder %s35, 0
      %p496 = por %p494, %p495
      %p497 = scmp.ne.s32.totalorder %s485, %s486
      %p498 = scmp.eq.s32.totalorder %s36, 1
      %p499 = por %p497, %p498
      %p501 = scmp.ne.s32.totalorder %s486, %s500
      %p502 = scmp.eq.s32.totalorder %s36, 0
      %p503 = por %p501, %p502
      %s504 = ssub.s32 %s30, %s37
      %p505 = scmp.eq.s32.totalorder %s504, 0
      %s507 = sadd.s32 %s506, 1
      %s508 = scalar_select %p505, %s506, %s507
      %p511 = pneg %p505
      %p512 = scmp.eq.s32.totalorder %s30, 1
      %p513 = por %p511, %p512
      %p514 = scmp.ne.s32.totalorder %s506, %s509
      %p515 = scmp.eq.s32.totalorder %s30, 0
      %p516 = por %p514, %p515
      %p517 = scmp.ne.s32.totalorder %s506, %s509
      %p518 = scmp.eq.s32.totalorder %s35, 1
      %p519 = por %p517, %p518
      %p520 = scmp.ne.s32.totalorder %s509, %s510
      %p521 = scmp.eq.s32.totalorder %s35, 0
      %p522 = por %p520, %p521
      %p523 = scmp.ne.s32.totalorder %s509, %s510
      %p524 = scmp.eq.s32.totalorder %s36, 1
      %p525 = por %p523, %p524
      %p527 = scmp.ne.s32.totalorder %s510, %s526
      %p528 = scmp.eq.s32.totalorder %s36, 0
      %p529 = por %p527, %p528
      %p530 = scmp.le.s32.totalorder 1, %s30
      %p531 = scmp.lt.s32.totalorder %s30, 3
      %p532 = pnand %p530, %p531
      %p533 = pneg %p532
      // Predicated region
      $region9: #{pair_energies_forward.7} parent=5 // pred_check
        _
      $region10: #{pair_energies_forward.7} parent=5 // pred_check_branch
        %535 = sbr.rel (%p532) target = $region12
      $region11: #{pair_energies_forward.7} parent=5 // pred_region
        %s536 = ssub.s32 %s30, 1
        // Predicated region
        $region13: #{pair_energies_forward.7} parent=11 // pred_check
          %p537 = pneg %p181
        $region14: #{pair_energies_forward.7} parent=11 // pred_check_branch
          %539 = sbr.rel (%p537) target = $region16
        $region15: #{pair_energies_forward.7} parent=11 // pred_region
          _
        $region16: #{pair_energies_forward.7} parent=11 // pred_fallthru
          _
        // Predicated region
        $region17: #{pair_energies_forward.7} parent=11 // pred_check
          %p540 = pneg %p202
        $region18: #{pair_energies_forward.7} parent=11 // pred_check_branch
          %542 = sbr.rel (%p540) target = $region20
        $region19: #{pair_energies_forward.7} parent=11 // pred_region
          _
        $region20: #{pair_energies_forward.7} parent=11 // pred_fallthru
          _
        // Predicated region
        $region21: #{pair_energies_forward.7} parent=11 // pred_check
          %p543 = pneg %p223
        $region22: #{pair_energies_forward.7} parent=11 // pred_check_branch
          %545 = sbr.rel (%p543) target = $region24
        $region23: #{pair_energies_forward.7} parent=11 // pred_region
          _
        $region24: #{pair_energies_forward.7} parent=11 // pred_fallthru
          _
        // Predicated region
        $region25: #{pair_energies_forward.7} parent=11 // pred_check
          %p546 = pneg %p244
        $region26: #{pair_energies_forward.7} parent=11 // pred_check_branch
          %548 = sbr.rel (%p546) target = $region28
        $region27: #{pair_energies_forward.7} parent=11 // pred_region
          _
        $region28: #{pair_energies_forward.7} parent=11 // pred_fallthru
          _
        // Predicated region
        $region29: #{pair_energies_forward.7} parent=11 // pred_check
          %p549 = pneg %p265
        $region30: #{pair_energies_forward.7} parent=11 // pred_check_branch
          %551 = sbr.rel (%p549) target = $region32
        $region31: #{pair_energies_forward.7} parent=11 // pred_region
          _
        $region32: #{pair_energies_forward.7} parent=11 // pred_fallthru
          _
        // Predicated region
        $region33: #{pair_energies_forward.7} parent=11 // pred_check
          %p552 = pneg %p286
        $region34: #{pair_energies_forward.7} parent=11 // pred_check_branch
          %554 = sbr.rel (%p552) target = $region36
        $region35: #{pair_energies_forward.7} parent=11 // pred_region
          _
        $region36: #{pair_energies_forward.7} parent=11 // pred_fallthru
          _
        // Predicated region
        $region37: #{pair_energies_forward.7} parent=11 // pred_check
          %p555 = pneg %p307
        $region38: #{pair_energies_forward.7} parent=11 // pred_check_branch
          %557 = sbr.rel (%p555) target = $region40
        $region39: #{pair_energies_forward.7} parent=11 // pred_region
          _
        $region40: #{pair_energies_forward.7} parent=11 // pred_fallthru
          _
        // Predicated region
        $region41: #{pair_energies_forward.7} parent=11 // pred_check
          %p558 = pneg %p328
        $region42: #{pair_energies_forward.7} parent=11 // pred_check_branch
          %560 = sbr.rel (%p558) target = $region44
        $region43: #{pair_energies_forward.7} parent=11 // pred_region
          _
        $region44: #{pair_energies_forward.7} parent=11 // pred_fallthru
          _
        // Predicated region
        $region45: #{pair_energies_forward.7} parent=11 // pred_check
          %p561 = pneg %p349
        $region46: #{pair_energies_forward.7} parent=11 // pred_check_branch
          %563 = sbr.rel (%p561) target = $region48
        $region47: #{pair_energies_forward.7} parent=11 // pred_region
          _
        $region48: #{pair_energies_forward.7} parent=11 // pred_fallthru
          _
        // Predicated region
        $region49: #{pair_energies_forward.7} parent=11 // pred_check
          %p564 = pneg %p370
        $region50: #{pair_energies_forward.7} parent=11 // pred_check_branch
          %566 = sbr.rel (%p564) target = $region52
        $region51: #{pair_energies_forward.7} parent=11 // pred_region
          _
        $region52: #{pair_energies_forward.7} parent=11 // pred_fallthru
          _
        // Predicated region
        $region53: #{pair_energies_forward.7} parent=11 // pred_check
          %p567 = pneg %p391
        $region54: #{pair_energies_forward.7} parent=11 // pred_check_branch
          %569 = sbr.rel (%p567) target = $region56
        $region55: #{pair_energies_forward.7} parent=11 // pred_region
          _
        $region56: #{pair_energies_forward.7} parent=11 // pred_fallthru
          _
        // Predicated region
        $region57: #{pair_energies_forward.7} parent=11 // pred_check
          %p570 = pneg %p412
        $region58: #{pair_energies_forward.7} parent=11 // pred_check_branch
          %572 = sbr.rel (%p570) target = $region60
        $region59: #{pair_energies_forward.7} parent=11 // pred_region
          _
        $region60: #{pair_energies_forward.7} parent=11 // pred_fallthru
          _
        // Predicated region
        $region61: #{pair_energies_forward.7} parent=11 // pred_check
          %p573 = pneg %p433
        $region62: #{pair_energies_forward.7} parent=11 // pred_check_branch
          %575 = sbr.rel (%p573) target = $region64
        $region63: #{pair_energies_forward.7} parent=11 // pred_region
          _
        $region64: #{pair_energies_forward.7} parent=11 // pred_fallthru
          _
        // Predicated region
        $region65: #{pair_energies_forward.7} parent=11 // pred_check
          %p576 = pneg %p454
        $region66: #{pair_energies_forward.7} parent=11 // pred_check_branch
          %578 = sbr.rel (%p576) target = $region68
        $region67: #{pair_energies_forward.7} parent=11 // pred_region
          _
        $region68: #{pair_energies_forward.7} parent=11 // pred_fallthru
          _
        // Predicated region
        $region69: #{pair_energies_forward.7} parent=11 // pred_check
          %p579 = pneg %p475
        $region70: #{pair_energies_forward.7} parent=11 // pred_check_branch
          %581 = sbr.rel (%p579) target = $region72
        $region71: #{pair_energies_forward.7} parent=11 // pred_region
          _
        $region72: #{pair_energies_forward.7} parent=11 // pred_fallthru
          _
        // Predicated region
        $region73: #{pair_energies_forward.7} parent=11 // pred_check
          %p582 = pneg %p496
        $region74: #{pair_energies_forward.7} parent=11 // pred_check_branch
          %584 = sbr.rel (%p582) target = $region76
        $region75: #{pair_energies_forward.7} parent=11 // pred_region
          _
        $region76: #{pair_energies_forward.7} parent=11 // pred_fallthru
          _
      $region12: #{pair_energies_forward.7} parent=5 // pred_fallthru
        _
      %p585 = scmp.lt.s32.totalorder %s30, 2
      // Predicated region
      $region77: #{pair_energies_forward.7} parent=5 // pred_check
        %p586 = pneg %p585
      $region78: #{pair_energies_forward.7} parent=5 // pred_check_branch
        %588 = sbr.rel (%p586) target = $region80
      $region79: #{pair_energies_forward.7} parent=5 // pred_region
        // Predicated region
        $region81: #{pair_energies_forward.7} parent=79 // pred_check
          %p589 = pneg %p50
        $region82: #{pair_energies_forward.7} parent=79 // pred_check_branch
          %591 = sbr.rel (%p589) target = $region84
        $region83: #{pair_energies_forward.7} parent=79 // pred_region
          %s592 = smul.u32 8, %s30
          %p593 = scmp.lt.s32.totalorder %s592, 15
          %s594 = scalar_select %p593, %s592, 15
          %s595 = smul.addr %s594, 8
          %s596 = scalar_lea.vmem %s0, %s595
          %s597 = smul.u32 8, %s30
        $region84: #{pair_energies_forward.7} parent=79 // pred_fallthru
          _
        // Predicated region
        $region85: #{pair_energies_forward.7} parent=79 // pred_check
          %p598 = pneg %p76
        $region86: #{pair_energies_forward.7} parent=79 // pred_check_branch
          %600 = sbr.rel (%p598) target = $region88
        $region87: #{pair_energies_forward.7} parent=79 // pred_region
          %p601 = scmp.lt.s32.totalorder %s30, 1
          %s602 = scalar_select %p601, %s30, 1
          %s603 = smul.addr %s602, 8
          %s604 = scalar_lea.vmem %s1, %s603
        $region88: #{pair_energies_forward.7} parent=79 // pred_fallthru
          _
        // Predicated region
        $region89: #{pair_energies_forward.7} parent=79 // pred_check
          %p605 = pneg %p102
        $region90: #{pair_energies_forward.7} parent=79 // pred_check_branch
          %607 = sbr.rel (%p605) target = $region92
        $region91: #{pair_energies_forward.7} parent=79 // pred_region
          %s608 = smul.u32 8, %s30
          %p609 = scmp.lt.s32.totalorder %s608, 15
          %s610 = scalar_select %p609, %s608, 15
          %s611 = smul.addr %s610, 8
          %s612 = scalar_lea.vmem %s2, %s611
          %s613 = smul.u32 8, %s30
        $region92: #{pair_energies_forward.7} parent=79 // pred_fallthru
          _
        // Predicated region
        $region93: #{pair_energies_forward.7} parent=79 // pred_check
          %p614 = pneg %p128
        $region94: #{pair_energies_forward.7} parent=79 // pred_check_branch
          %616 = sbr.rel (%p614) target = $region96
        $region95: #{pair_energies_forward.7} parent=79 // pred_region
          %p617 = scmp.lt.s32.totalorder %s30, 1
          %s618 = scalar_select %p617, %s30, 1
          %s619 = smul.addr %s618, 8
          %s620 = scalar_lea.vmem %s3, %s619
        $region96: #{pair_energies_forward.7} parent=79 // pred_fallthru
          _
        // Predicated region
        $region97: #{pair_energies_forward.7} parent=79 // pred_check
          %p621 = pneg %p154
        $region98: #{pair_energies_forward.7} parent=79 // pred_check_branch
          %623 = sbr.rel (%p621) target = $region100
        $region99: #{pair_energies_forward.7} parent=79 // pred_region
          %p624 = scmp.lt.s32.totalorder %s30, 1
          %s625 = scalar_select %p624, %s30, 1
          %s626 = smul.addr %s625, 8
          %s627 = scalar_lea.vmem %s4, %s626
        $region100: #{pair_energies_forward.7} parent=79 // pred_fallthru
          _
      $region80: #{pair_energies_forward.7} parent=5 // pred_fallthru
        _
      %p628 = scmp.le.s32.totalorder 1, %s30
      %p629 = scmp.lt.s32.totalorder %s30, 3
      %p630 = pnand %p628, %p629
      %p631 = pneg %p630
      // Predicated region
      $region101: #{pair_energies_forward.7} parent=5 // pred_check
        _
      $region102: #{pair_energies_forward.7} parent=5 // pred_check_branch
        %633 = sbr.rel (%p630) target = $region104
      $region103: #{pair_energies_forward.7} parent=5 // pred_region
        %s634 = ssub.s32 %s30, 1
        %s635 = smul.u32 8, %s35
        %p636 = scmp.lt.s32.totalorder %s635, 15
        %s637 = scalar_select %p636, %s635, 15
        %s638 = smul.addr %s637, 8
        %s639 = scalar_lea.vmem %s0, %s638
        %p640 = pneg %p56
        %p641 = pneg %p53
        %p642 = scmp.lt.s32.totalorder %s35, 1
        %s643 = scalar_select %p642, %s35, 1
        %s644 = smul.addr %s643, 8
        %s645 = scalar_lea.vmem %s1, %s644
        %p646 = pneg %p82
        %p647 = pneg %p79
        %s648 = smul.u32 8, %s35
        %p649 = scmp.lt.s32.totalorder %s648, 15
        %s650 = scalar_select %p649, %s648, 15
        %s651 = smul.addr %s650, 8
        %s652 = scalar_lea.vmem %s2, %s651
        %p653 = pneg %p108
        %p654 = pneg %p105
        %p655 = scmp.lt.s32.totalorder %s35, 1
        %s656 = scalar_select %p655, %s35, 1
        %s657 = smul.addr %s656, 8
        %s658 = scalar_lea.vmem %s3, %s657
        %p659 = pneg %p134
        %p660 = pneg %p131
        %p661 = scmp.lt.s32.totalorder %s35, 1
        %s662 = scalar_select %p661, %s35, 1
        %s663 = smul.addr %s662, 8
        %s664 = scalar_lea.vmem %s4, %s663
        %p665 = pneg %p160
        %p666 = pneg %p157
        %p667 = pneg %p181
        %p668 = pneg %p178
        %p669 = pneg %p202
        %p670 = pneg %p199
        %p671 = pneg %p223
        %p672 = pneg %p220
        %p673 = pneg %p244
        %p674 = pneg %p241
        %p675 = pneg %p265
        %p676 = pneg %p262
        %p677 = pneg %p286
        %p678 = pneg %p283
        %p679 = pneg %p307
        %p680 = pneg %p304
        %p681 = pneg %p328
        %p682 = pneg %p325
        %p683 = pneg %p349
        %p684 = pneg %p346
        %p685 = pneg %p370
        %p686 = pneg %p367
        %p687 = pneg %p391
        %p688 = pneg %p388
        %p689 = pneg %p412
        %p690 = pneg %p409
        %p691 = pneg %p433
        %p692 = pneg %p430
        %p693 = pneg %p454
        %p694 = pneg %p451
        %p695 = pneg %p475
        %p696 = pneg %p472
        %p697 = pneg %p496
        %p698 = pneg %p493
        %p699 = pneg %p522
        %p700 = pneg %p519
        %s701 = sand.u32 %s509, 1
        %s702 = scalar_lea.sflag [#allocation3], %s701
        %s703 = sand.u32 %s509, 1
        %s704 = smul.addr %s703, 64
        %s705 = scalar_lea.vmem [#allocation2], %s704
        %s706 = smul.u32 8, %s35
        %p707 = scmp.lt.s32.totalorder %s706, 15
        %s708 = scalar_select %p707, %s706, 15
        %s709 = smul.addr %s708, 8
        %s710 = scalar_lea.vmem %s0, %s709
        %s711 = smul.u32 8, %s35
        %p712 = scmp.lt.s32.totalorder %s35, 1
        %s713 = scalar_select %p712, %s35, 1
        %s714 = smul.addr %s713, 8
        %s715 = scalar_lea.vmem %s1, %s714
        %s716 = smul.u32 8, %s35
        %p717 = scmp.lt.s32.totalorder %s716, 15
        %s718 = scalar_select %p717, %s716, 15
        %s719 = smul.addr %s718, 8
        %s720 = scalar_lea.vmem %s2, %s719
        %s721 = smul.u32 8, %s35
        %p722 = scmp.lt.s32.totalorder %s35, 1
        %s723 = scalar_select %p722, %s35, 1
        %s724 = smul.addr %s723, 8
        %s725 = scalar_lea.vmem %s3, %s724
        %p726 = scmp.lt.s32.totalorder %s35, 1
        %s727 = scalar_select %p726, %s35, 1
        %s728 = smul.addr %s727, 8
        %s729 = scalar_lea.vmem %s4, %s728
        %s730 = smul.u32 8, %s35
        %v732 = vld [vmem:[%s710] sm:$0xff]
        %v733 = vld [vmem:[%s710 + $0x8] sm:$0xff]
        %v734 = vld [vmem:[%s710 + $0x10] sm:$0xff]
        %v735 = vld [vmem:[%s710 + $0x18] sm:$0xff]
        %v736 = vld [vmem:[%s710 + $0x20] sm:$0xff]
        %v737 = vld [vmem:[%s710 + $0x28] sm:$0xff]
        %v738 = vld [vmem:[%s710 + $0x30] sm:$0xff]
        %v739 = vld [vmem:[%s710 + $0x38] sm:$0xff]
        %v740 = vld [vmem:[%s5] sm:$0xf]
        %v741 = vld [vmem:[%s5 + $0x4] sm:$0xf]
        %v742 = vld [vmem:[%s5 + $0x8] sm:$0xf]
        %v743 = vld [vmem:[%s5 + $0xc] sm:$0xf]
        %v744 = vpack.c.bf16 %v733, %v732
        %v745 = vpack.c.bf16 %v735, %v734
        %v746 = vpack.c.bf16 %v737, %v736
        %v747 = vpack.c.bf16 %v739, %v738
        %v748 = vld [vmem:[%s720] sm:$0xff]
        %v749 = vld [vmem:[%s720 + $0x8] sm:$0xff]
        %v750 = vld [vmem:[%s720 + $0x10] sm:$0xff]
        %v751 = vld [vmem:[%s720 + $0x18] sm:$0xff]
        %v752 = vld [vmem:[%s720 + $0x20] sm:$0xff]
        %v753 = vld [vmem:[%s720 + $0x28] sm:$0xff]
        %v754 = vld [vmem:[%s720 + $0x30] sm:$0xff]
        %v755 = vld [vmem:[%s720 + $0x38] sm:$0xff]
        %v756 = vld [vmem:[%s7] sm:$0xf]
        %v757 = vld [vmem:[%s7 + $0x4] sm:$0xf]
        %v758 = vld [vmem:[%s7 + $0x8] sm:$0xf]
        %v759 = vld [vmem:[%s7 + $0xc] sm:$0xf]
        %v760 = vpack.c.bf16 %v749, %v748
        %v761 = vpack.c.bf16 %v751, %v750
        %v762 = vpack.c.bf16 %v753, %v752
        %v763 = vpack.c.bf16 %v755, %v754
        %v768 = vunpack.c.l.b16 %v756
        %v769 = vunpack.c.l.b16 %v757
        %v770 = vunpack.c.l.b16 %v758
        %v771 = vunpack.c.l.b16 %v759
        %v772 = vpack.c.b16 %v769, %v768
        %v773 = vpack.c.b16 %v771, %v770
        %vm776 = vcmask 261120
        %v778 = vsel %vm776, %v760, 0
        %v781 = vsel %vm776, %v761, 0
        %v784 = vsel %vm776, %v762, 0
        %v787 = vsel %vm776, %v763, 0
        %789 = vmatprep.subr.bf16.mxu0 0
        %790 = vmatpush1.bf16.msra.mxu0 %v772
        %791 = vmatprep.subr.bf16.mxu0 0
        %792 = vmatpush1.bf16.msra.mxu0 %v773
        %793 = vmatprep.subr.bf16.mxu0 0
        %794 = vmatpush1.bf16.msra.mxu0 0
        %795 = vmatprep.subr.bf16.mxu0 0
        %796 = vmatpush1.bf16.msra.mxu0 0
        %797 = vmatprep.subr.bf16.mxu0 0
        %798 = vmatpush1.bf16.msra.mxu0 0
        %799 = vmatprep.subr.bf16.mxu0 0
        %800 = vmatpush1.bf16.msra.mxu0 0
        %801 = vmatprep.subr.bf16.mxu0 0
        %802 = vmatpush1.bf16.msra.mxu0 0
        %803 = vmatprep.subr.bf16.mxu0 0
        %804 = vmatpush1.bf16.msra.mxu0 0
        %805 = vmatprep.subr.bf16.mxu0 0
        %806 = vmatpush1.bf16.msra.mxu0 0
        %807 = vmatprep.subr.bf16.mxu0 0
        %808 = vmatpush1.bf16.msra.mxu0 0
        %809 = vmatprep.subr.bf16.mxu0 0
        %810 = vmatpush1.bf16.msra.mxu0 0
        %811 = vmatprep.subr.bf16.mxu0 0
        %812 = vmatpush1.bf16.msra.mxu0 0
        %813 = vmatprep.subr.bf16.mxu0 0
        %814 = vmatpush1.bf16.msra.mxu0 0
        %815 = vmatprep.subr.bf16.mxu0 0
        %816 = vmatpush1.bf16.msra.mxu0 0
        %817 = vmatprep.subr.bf16.mxu0 0
        %818 = vmatpush1.bf16.msra.mxu0 0
        %819 = vmatprep.subr.bf16.mxu0 0
        %820 = vmatpush1.bf16.msra.mxu0 0
        %821 = vmatprep.mubr.bf16.mxu0 0
        %822 = vmatmul.mubr.bf16.gmra.mrb[0].mxu0 %v778
        %v823 = vpop.f32.mrb[0].mxu0
        %v824 = vadd.f32 0.0, %v823
        %v825 = vpop.f32.mrb[0].mxu0
        %v826 = vpop.f32.mrb[0].mxu0
        %v827 = vadd.f32 0.0, %v826
        %v828 = vpop.f32.mrb[0].mxu0
        %829 = vmatprep.mubr.bf16.mxu0 0
        %830 = vmatmul.mubr.bf16.gmra.mrb[0].mxu0 %v781
        %v831 = vpop.f32.mrb[0].mxu0
        %v832 = vadd.f32 0.0, %v831
        %v833 = vpop.f32.mrb[0].mxu0
        %v834 = vpop.f32.mrb[0].mxu0
        %v835 = vadd.f32 0.0, %v834
        %v836 = vpop.f32.mrb[0].mxu0
        %837 = vmatprep.mubr.bf16.mxu0 0
        %838 = vmatmul.mubr.bf16.gmra.mrb[0].mxu0 %v784
        %v839 = vpop.f32.mrb[0].mxu0
        %v840 = vadd.f32 0.0, %v839
        %v841 = vpop.f32.mrb[0].mxu0
        %v842 = vpop.f32.mrb[0].mxu0
        %v843 = vadd.f32 0.0, %v842
        %v844 = vpop.f32.mrb[0].mxu0
        %845 = vmatprep.mubr.bf16.mxu0 0
        %846 = vmatmul.mubr.bf16.gmra.mrb[0].mxu0 %v787
        %v847 = vpop.f32.mrb[0].mxu0
        %v848 = vadd.f32 0.0, %v847
        %v849 = vpop.f32.mrb[0].mxu0
        %v850 = vpop.f32.mrb[0].mxu0
        %v851 = vadd.f32 0.0, %v850
        %v852 = vpop.f32.mrb[0].mxu0
        %853 = vdwg.mxu0
        %v858 = vunpack.c.l.b16 %v740
        %v859 = vunpack.c.l.b16 %v741
        %v860 = vunpack.c.l.b16 %v742
        %v861 = vunpack.c.l.b16 %v743
        %v862 = vpack.c.b16 %v859, %v858
        %v863 = vpack.c.b16 %v861, %v860
        %v867 = vsel %vm776, %v744, 0
        %v870 = vsel %vm776, %v745, 0
        %v873 = vsel %vm776, %v746, 0
        %v876 = vsel %vm776, %v747, 0
        %878 = vmatprep.subr.bf16.mxu0 0
        %879 = vmatpush1.bf16.msra.mxu0 %v862
        %880 = vmatprep.subr.bf16.mxu0 0
        %881 = vmatpush1.bf16.msra.mxu0 %v863
        %882 = vmatprep.subr.bf16.mxu0 0
        %883 = vmatpush1.bf16.msra.mxu0 0
        %884 = vmatprep.subr.bf16.mxu0 0
        %885 = vmatpush1.bf16.msra.mxu0 0
        %886 = vmatprep.subr.bf16.mxu0 0
        %887 = vmatpush1.bf16.msra.mxu0 0
        %888 = vmatprep.subr.bf16.mxu0 0
        %889 = vmatpush1.bf16.msra.mxu0 0
        %890 = vmatprep.subr.bf16.mxu0 0
        %891 = vmatpush1.bf16.msra.mxu0 0
        %892 = vmatprep.subr.bf16.mxu0 0
        %893 = vmatpush1.bf16.msra.mxu0 0
        %894 = vmatprep.subr.bf16.mxu0 0
        %895 = vmatpush1.bf16.msra.mxu0 0
        %896 = vmatprep.subr.bf16.mxu0 0
        %897 = vmatpush1.bf16.msra.mxu0 0
        %898 = vmatprep.subr.bf16.mxu0 0
        %899 = vmatpush1.bf16.msra.mxu0 0
        %900 = vmatprep.subr.bf16.mxu0 0
        %901 = vmatpush1.bf16.msra.mxu0 0
        %902 = vmatprep.subr.bf16.mxu0 0
        %903 = vmatpush1.bf16.msra.mxu0 0
        %904 = vmatprep.subr.bf16.mxu0 0
        %905 = vmatpush1.bf16.msra.mxu0 0
        %906 = vmatprep.subr.bf16.mxu0 0
        %907 = vmatpush1.bf16.msra.mxu0 0
        %908 = vmatprep.subr.bf16.mxu0 0
        %909 = vmatpush1.bf16.msra.mxu0 0
        %910 = vmatprep.mubr.bf16.mxu0 0
        %911 = vmatmul.mubr.bf16.gmra.mrb[0].mxu0 %v867
        %v912 = vpop.f32.mrb[0].mxu0
        %v913 = vadd.f32 %v824, %v912
        %v914 = vpop.f32.mrb[0].mxu0
        %v915 = vpop.f32.mrb[0].mxu0
        %v916 = vadd.f32 %v827, %v915
        %v917 = vpop.f32.mrb[0].mxu0
        %918 = vmatprep.mubr.bf16.mxu0 0
        %919 = vmatmul.mubr.bf16.gmra.mrb[0].mxu0 %v870
        %v920 = vpop.f32.mrb[0].mxu0
        %v921 = vadd.f32 %v832, %v920
        %v922 = vpop.f32.mrb[0].mxu0
        %v923 = vpop.f32.mrb[0].mxu0
        %v924 = vadd.f32 %v835, %v923
        %v925 = vpop.f32.mrb[0].mxu0
        %926 = vmatprep.mubr.bf16.mxu0 0
        %927 = vmatmul.mubr.bf16.gmra.mrb[0].mxu0 %v873
        %v928 = vpop.f32.mrb[0].mxu0
        %v929 = vadd.f32 %v840, %v928
        %v930 = vpop.f32.mrb[0].mxu0
        %v931 = vpop.f32.mrb[0].mxu0
        %v932 = vadd.f32 %v843, %v931
        %v933 = vpop.f32.mrb[0].mxu0
        %934 = vmatprep.mubr.bf16.mxu0 0
        %935 = vmatmul.mubr.bf16.gmra.mrb[0].mxu0 %v876
        %v936 = vpop.f32.mrb[0].mxu0
        %v937 = vadd.f32 %v848, %v936
        %v938 = vpop.f32.mrb[0].mxu0
        %v939 = vpop.f32.mrb[0].mxu0
        %v940 = vadd.f32 %v851, %v939
        %v941 = vpop.f32.mrb[0].mxu0
        %942 = vdwg.mxu0
        %v943 = vld [vmem:[%s8] sm:$0x1]
        %v945 = vlaneseq
        %v946 = vshrl.u32 %v945, 7
        %v947 = vsub.s32 0, %v946
        %v948 = vrot.slane %v943, %v947
        %v950 = vadd.f32 %v913, %v948
        %v951 = vadd.f32 %v916, %v948
        %v952 = vadd.f32 %v921, %v948
        %v953 = vadd.f32 %v924, %v948
        %v954 = vadd.f32 %v929, %v948
        %v955 = vadd.f32 %v932, %v948
        %v956 = vadd.f32 %v937, %v948
        %v957 = vadd.f32 %v940, %v948
        %v958 = vld [vmem:[%s715] sm:$0xff]
        %v959 = vld [vmem:[%s6] sm:$0xf]
        %v960 = vld [vmem:[%s6 + $0x4] sm:$0xf]
        %v961 = vld [vmem:[%s6 + $0x8] sm:$0xf]
        %v962 = vld [vmem:[%s6 + $0xc] sm:$0xf]
        %v963 = vpack.c.bf16 %v958, %v958
        %v968 = vunpack.c.l.b16 %v959
        %v969 = vunpack.c.l.b16 %v960
        %v970 = vunpack.c.l.b16 %v961
        %v971 = vunpack.c.l.b16 %v962
        %v972 = vpack.c.b16 %v969, %v968
        %v973 = vpack.c.b16 %v971, %v970
        %v977 = vsel %vm776, %v963, 0
        %979 = vmatprep.subr.bf16.mxu0 0
        %980 = vmatpush1.bf16.msra.mxu0 %v972
        %981 = vmatprep.subr.bf16.mxu0 0
        %982 = vmatpush1.bf16.msra.mxu0 %v973
        %983 = vmatprep.subr.bf16.mxu0 0
        %984 = vmatpush1.bf16.msra.mxu0 0
        %985 = vmatprep.subr.bf16.mxu0 0
        %986 = vmatpush1.bf16.msra.mxu0 0
        %987 = vmatprep.subr.bf16.mxu0 0
        %988 = vmatpush1.bf16.msra.mxu0 0
        %989 = vmatprep.subr.bf16.mxu0 0
        %990 = vmatpush1.bf16.msra.mxu0 0
        %991 = vmatprep.subr.bf16.mxu0 0
        %992 = vmatpush1.bf16.msra.mxu0 0
        %993 = vmatprep.subr.bf16.mxu0 0
        %994 = vmatpush1.bf16.msra.mxu0 0
        %995 = vmatprep.subr.bf16.mxu0 0
        %996 = vmatpush1.bf16.msra.mxu0 0
        %997 = vmatprep.subr.bf16.mxu0 0
        %998 = vmatpush1.bf16.msra.mxu0 0
        %999 = vmatprep.subr.bf16.mxu0 0
        %1000 = vmatpush1.bf16.msra.mxu0 0
        %1001 = vmatprep.subr.bf16.mxu0 0
        %1002 = vmatpush1.bf16.msra.mxu0 0
        %1003 = vmatprep.subr.bf16.mxu0 0
        %1004 = vmatpush1.bf16.msra.mxu0 0
        %1005 = vmatprep.subr.bf16.mxu0 0
        %1006 = vmatpush1.bf16.msra.mxu0 0
        %1007 = vmatprep.subr.bf16.mxu0 0
        %1008 = vmatpush1.bf16.msra.mxu0 0
        %1009 = vmatprep.subr.bf16.mxu0 0
        %1010 = vmatpush1.bf16.msra.mxu0 0
        %1011 = vmatprep.mubr.bf16.mxu0 0
        %1012 = vmatmul.mubr.bf16.gmra.mrb[0].mxu0 %v977
        %v1013 = vpop.f32.mrb[0].mxu0
        %v1014 = vadd.f32 0.0, %v1013
        %v1015 = vpop.f32.mrb[0].mxu0
        %v1016 = vpop.f32.mrb[0].mxu0
        %v1017 = vpop.f32.mrb[0].mxu0
        %1018 = vdwg.mxu0
        %v1020 = vcombine.high %v1014, %v1014
        %v1022 = vunpack.c.l.s4 1966171168
        %v1023 = vunpack.c.0.s8 %v1022
        %v1024 = vlaneseq
        %v1025 = vshrl.u32 %v1024, 7
        %v1026 = vsub.s32 %v1023, %v1025
        %v1027 = vrot.slane %v1014, %v1026
        %v1029 = vunpack.c.l.s4 1966171168
        %v1030 = vunpack.c.0.s8 %v1029
        %v1031 = vlaneseq
        %v1032 = vshrl.u32 %v1031, 7
        %v1033 = vsub.s32 %v1030, %v1032
        %v1034 = vrot.slane %v1020, %v1033
        %v1035 = vcombine.high %v1027, %v1027
        %v1036 = vcombine.high %v1034, %v1034
        %v1038 = vunpack.c.l.s4 1966171168
        %v1039 = vunpack.c.0.s8 %v1038
        %v1040 = vlaneseq
        %v1041 = vshrl.u32 %v1040, 7
        %v1042 = vsub.s32 %v1039, %v1041
        %v1043 = vrot.slane %v1027, %v1042
        %v1045 = vunpack.c.l.s4 1966171168
        %v1046 = vunpack.c.0.s8 %v1045
        %v1047 = vlaneseq
        %v1048 = vshrl.u32 %v1047, 7
        %v1049 = vsub.s32 %v1046, %v1048
        %v1050 = vrot.slane %v1034, %v1049
        %v1052 = vunpack.c.l.s4 1966171168
        %v1053 = vunpack.c.0.s8 %v1052
        %v1054 = vlaneseq
        %v1055 = vshrl.u32 %v1054, 7
        %v1056 = vsub.s32 %v1053, %v1055
        %v1057 = vrot.slane %v1035, %v1056
        %v1059 = vunpack.c.l.s4 1966171168
        %v1060 = vunpack.c.0.s8 %v1059
        %v1061 = vlaneseq
        %v1062 = vshrl.u32 %v1061, 7
        %v1063 = vsub.s32 %v1060, %v1062
        %v1064 = vrot.slane %v1036, %v1063
        %v1065 = vcombine.high %v1043, %v1043
        %v1066 = vcombine.high %v1050, %v1050
        %v1067 = vcombine.high %v1057, %v1057
        %v1068 = vcombine.high %v1064, %v1064
        %v1069 = vlaneseq
        %v1070 = vshrl.u32 %v1069, 7
        %v1071 = vsub.s32 0, %v1070
        %v1072 = vrot.slane %v1043, %v1071
        %v1073 = vlaneseq
        %v1074 = vshrl.u32 %v1073, 7
        %v1075 = vsub.s32 0, %v1074
        %v1076 = vrot.slane %v1057, %v1075
        %v1077 = vlaneseq
        %v1078 = vshrl.u32 %v1077, 7
        %v1079 = vsub.s32 0, %v1078
        %v1080 = vrot.slane %v1065, %v1079
        %v1081 = vlaneseq
        %v1082 = vshrl.u32 %v1081, 7
        %v1083 = vsub.s32 0, %v1082
        %v1084 = vrot.slane %v1067, %v1083
        %v1085 = vlaneseq
        %v1086 = vshrl.u32 %v1085, 7
        %v1087 = vsub.s32 0, %v1086
        %v1088 = vrot.slane %v1050, %v1087
        %v1089 = vlaneseq
        %v1090 = vshrl.u32 %v1089, 7
        %v1091 = vsub.s32 0, %v1090
        %v1092 = vrot.slane %v1064, %v1091
        %v1093 = vlaneseq
        %v1094 = vshrl.u32 %v1093, 7
        %v1095 = vsub.s32 0, %v1094
        %v1096 = vrot.slane %v1066, %v1095
        %v1097 = vlaneseq
        %v1098 = vshrl.u32 %v1097, 7
        %v1099 = vsub.s32 0, %v1098
        %v1100 = vrot.slane %v1068, %v1099
        %v1109 = vadd.f32 %v950, %v1072
        %v1110 = vadd.f32 %v951, %v1076
        %v1111 = vadd.f32 %v952, %v1080
        %v1112 = vadd.f32 %v953, %v1084
        %v1113 = vadd.f32 %v954, %v1088
        %v1114 = vadd.f32 %v955, %v1092
        %v1115 = vadd.f32 %v956, %v1096
        %v1116 = vadd.f32 %v957, %v1100
        %v1117 = vmax.f32 %v1109, 0.0
        %v1118 = vmax.f32 %v1110, 0.0
        %v1119 = vmax.f32 %v1111, 0.0
        %v1120 = vmax.f32 %v1112, 0.0
        %v1121 = vmax.f32 %v1113, 0.0
        %v1122 = vmax.f32 %v1114, 0.0
        %v1123 = vmax.f32 %v1115, 0.0
        %v1124 = vmax.f32 %v1116, 0.0
        %v1125 = vld [vmem:[%s9] sm:$0xf]
        %v1126 = vld [vmem:[%s9 + $0x4] sm:$0xf]
        %v1127 = vld [vmem:[%s9 + $0x8] sm:$0xf]
        %v1128 = vld [vmem:[%s9 + $0xc] sm:$0xf]
        %v1129 = vpack.c.bf16 %v1118, %v1117
        %v1130 = vpack.c.bf16 %v1120, %v1119
        %v1131 = vpack.c.bf16 %v1122, %v1121
        %v1132 = vpack.c.bf16 %v1124, %v1123
        %v1133 = vld [vmem:[%s10] sm:$0x1]
        %v1135 = vlaneseq
        %v1136 = vshrl.u32 %v1135, 7
        %v1137 = vsub.s32 0, %v1136
        %v1138 = vrot.slane %v1133, %v1137
        %v1144 = vunpack.c.l.b16 %v1125
        %v1145 = vunpack.c.l.b16 %v1126
        %v1146 = vunpack.c.l.b16 %v1127
        %v1147 = vunpack.c.l.b16 %v1128
        %v1148 = vpack.c.b16 %v1145, %v1144
        %v1149 = vpack.c.b16 %v1147, %v1146
        %v1153 = vsel %vm776, %v1129, 0
        %v1156 = vsel %vm776, %v1130, 0
        %v1159 = vsel %vm776, %v1131, 0
        %v1162 = vsel %vm776, %v1132, 0
        %1164 = vmatprep.subr.bf16.mxu0 0
        %1165 = vmatpush1.bf16.msra.mxu0 %v1148
        %1166 = vmatprep.subr.bf16.mxu0 0
        %1167 = vmatpush1.bf16.msra.mxu0 %v1149
        %1168 = vmatprep.subr.bf16.mxu0 0
        %1169 = vmatpush1.bf16.msra.mxu0 0
        %1170 = vmatprep.subr.bf16.mxu0 0
        %1171 = vmatpush1.bf16.msra.mxu0 0
        %1172 = vmatprep.subr.bf16.mxu0 0
        %1173 = vmatpush1.bf16.msra.mxu0 0
        %1174 = vmatprep.subr.bf16.mxu0 0
        %1175 = vmatpush1.bf16.msra.mxu0 0
        %1176 = vmatprep.subr.bf16.mxu0 0
        %1177 = vmatpush1.bf16.msra.mxu0 0
        %1178 = vmatprep.subr.bf16.mxu0 0
        %1179 = vmatpush1.bf16.msra.mxu0 0
        %1180 = vmatprep.subr.bf16.mxu0 0
        %1181 = vmatpush1.bf16.msra.mxu0 0
        %1182 = vmatprep.subr.bf16.mxu0 0
        %1183 = vmatpush1.bf16.msra.mxu0 0
        %1184 = vmatprep.subr.bf16.mxu0 0
        %1185 = vmatpush1.bf16.msra.mxu0 0
        %1186 = vmatprep.subr.bf16.mxu0 0
        %1187 = vmatpush1.bf16.msra.mxu0 0
        %1188 = vmatprep.subr.bf16.mxu0 0
        %1189 = vmatpush1.bf16.msra.mxu0 0
        %1190 = vmatprep.subr.bf16.mxu0 0
        %1191 = vmatpush1.bf16.msra.mxu0 0
        %1192 = vmatprep.subr.bf16.mxu0 0
        %1193 = vmatpush1.bf16.msra.mxu0 0
        %1194 = vmatprep.subr.bf16.mxu0 0
        %1195 = vmatpush1.bf16.msra.mxu0 0
        %1196 = vmatprep.mubr.bf16.mxu0 0
        %1197 = vmatmul.mubr.bf16.gmra.mrb[0].mxu0 %v1153
        %v1198 = vpop.f32.mrb[0].mxu0
        %v1199 = vadd.f32 %v1138, %v1198
        %v1200 = vpop.f32.mrb[0].mxu0
        %v1201 = vpop.f32.mrb[0].mxu0
        %v1202 = vadd.f32 %v1138, %v1201
        %v1203 = vpop.f32.mrb[0].mxu0
        %1204 = vmatprep.mubr.bf16.mxu0 0
        %1205 = vmatmul.mubr.bf16.gmra.mrb[0].mxu0 %v1156
        %v1206 = vpop.f32.mrb[0].mxu0
        %v1207 = vadd.f32 %v1138, %v1206
        %v1208 = vpop.f32.mrb[0].mxu0
        %v1209 = vpop.f32.mrb[0].mxu0
        %v1210 = vadd.f32 %v1138, %v1209
        %v1211 = vpop.f32.mrb[0].mxu0
        %1212 = vmatprep.mubr.bf16.mxu0 0
        %1213 = vmatmul.mubr.bf16.gmra.mrb[0].mxu0 %v1159
        %v1214 = vpop.f32.mrb[0].mxu0
        %v1215 = vadd.f32 %v1138, %v1214
        %v1216 = vpop.f32.mrb[0].mxu0
        %v1217 = vpop.f32.mrb[0].mxu0
        %v1218 = vadd.f32 %v1138, %v1217
        %v1219 = vpop.f32.mrb[0].mxu0
        %1220 = vmatprep.mubr.bf16.mxu0 0
        %1221 = vmatmul.mubr.bf16.gmra.mrb[0].mxu0 %v1162
        %v1222 = vpop.f32.mrb[0].mxu0
        %v1223 = vadd.f32 %v1138, %v1222
        %v1224 = vpop.f32.mrb[0].mxu0
        %v1225 = vpop.f32.mrb[0].mxu0
        %v1226 = vadd.f32 %v1138, %v1225
        %v1227 = vpop.f32.mrb[0].mxu0
        %1228 = vdwg.mxu0
        %v1229 = vmax.f32 %v1199, 0.0
        %v1230 = vmax.f32 %v1202, 0.0
        %v1231 = vmax.f32 %v1207, 0.0
        %v1232 = vmax.f32 %v1210, 0.0
        %v1233 = vmax.f32 %v1215, 0.0
        %v1234 = vmax.f32 %v1218, 0.0
        %v1235 = vmax.f32 %v1223, 0.0
        %v1236 = vmax.f32 %v1226, 0.0
        %v1237 = vld [vmem:[%s11] sm:$0xf]
        %v1238 = vld [vmem:[%s11 + $0x4] sm:$0xf]
        %v1239 = vld [vmem:[%s11 + $0x8] sm:$0xf]
        %v1240 = vld [vmem:[%s11 + $0xc] sm:$0xf]
        %v1241 = vpack.c.bf16 %v1230, %v1229
        %v1242 = vpack.c.bf16 %v1232, %v1231
        %v1243 = vpack.c.bf16 %v1234, %v1233
        %v1244 = vpack.c.bf16 %v1236, %v1235
        %v1245 = vld [vmem:[%s12] sm:$0x1]
        %v1247 = vlaneseq
        %v1248 = vshrl.u32 %v1247, 7
        %v1249 = vsub.s32 0, %v1248
        %v1250 = vrot.slane %v1245, %v1249
        %v1256 = vunpack.c.l.b16 %v1237
        %v1257 = vunpack.c.l.b16 %v1238
        %v1258 = vunpack.c.l.b16 %v1239
        %v1259 = vunpack.c.l.b16 %v1240
        %v1260 = vpack.c.b16 %v1257, %v1256
        %v1261 = vpack.c.b16 %v1259, %v1258
        %v1265 = vsel %vm776, %v1241, 0
        %v1268 = vsel %vm776, %v1242, 0
        %v1271 = vsel %vm776, %v1243, 0
        %v1274 = vsel %vm776, %v1244, 0
        %1276 = vmatprep.subr.bf16.mxu0 0
        %1277 = vmatpush1.bf16.msra.mxu0 %v1260
        %1278 = vmatprep.subr.bf16.mxu0 0
        %1279 = vmatpush1.bf16.msra.mxu0 %v1261
        %1280 = vmatprep.subr.bf16.mxu0 0
        %1281 = vmatpush1.bf16.msra.mxu0 0
        %1282 = vmatprep.subr.bf16.mxu0 0
        %1283 = vmatpush1.bf16.msra.mxu0 0
        %1284 = vmatprep.subr.bf16.mxu0 0
        %1285 = vmatpush1.bf16.msra.mxu0 0
        %1286 = vmatprep.subr.bf16.mxu0 0
        %1287 = vmatpush1.bf16.msra.mxu0 0
        %1288 = vmatprep.subr.bf16.mxu0 0
        %1289 = vmatpush1.bf16.msra.mxu0 0
        %1290 = vmatprep.subr.bf16.mxu0 0
        %1291 = vmatpush1.bf16.msra.mxu0 0
        %1292 = vmatprep.subr.bf16.mxu0 0
        %1293 = vmatpush1.bf16.msra.mxu0 0
        %1294 = vmatprep.subr.bf16.mxu0 0
        %1295 = vmatpush1.bf16.msra.mxu0 0
        %1296 = vmatprep.subr.bf16.mxu0 0
        %1297 = vmatpush1.bf16.msra.mxu0 0
        %1298 = vmatprep.subr.bf16.mxu0 0
        %1299 = vmatpush1.bf16.msra.mxu0 0
        %1300 = vmatprep.subr.bf16.mxu0 0
        %1301 = vmatpush1.bf16.msra.mxu0 0
        %1302 = vmatprep.subr.bf16.mxu0 0
        %1303 = vmatpush1.bf16.msra.mxu0 0
        %1304 = vmatprep.subr.bf16.mxu0 0
        %1305 = vmatpush1.bf16.msra.mxu0 0
        %1306 = vmatprep.subr.bf16.mxu0 0
        %1307 = vmatpush1.bf16.msra.mxu0 0
        %1308 = vmatprep.mubr.bf16.mxu0 0
        %1309 = vmatmul.mubr.bf16.gmra.mrb[0].mxu0 %v1265
        %v1310 = vpop.f32.mrb[0].mxu0
        %v1311 = vadd.f32 %v1250, %v1310
        %v1312 = vpop.f32.mrb[0].mxu0
        %v1313 = vpop.f32.mrb[0].mxu0
        %v1314 = vadd.f32 %v1250, %v1313
        %v1315 = vpop.f32.mrb[0].mxu0
        %1316 = vmatprep.mubr.bf16.mxu0 0
        %1317 = vmatmul.mubr.bf16.gmra.mrb[0].mxu0 %v1268
        %v1318 = vpop.f32.mrb[0].mxu0
        %v1319 = vadd.f32 %v1250, %v1318
        %v1320 = vpop.f32.mrb[0].mxu0
        %v1321 = vpop.f32.mrb[0].mxu0
        %v1322 = vadd.f32 %v1250, %v1321
        %v1323 = vpop.f32.mrb[0].mxu0
        %1324 = vmatprep.mubr.bf16.mxu0 0
        %1325 = vmatmul.mubr.bf16.gmra.mrb[0].mxu0 %v1271
        %v1326 = vpop.f32.mrb[0].mxu0
        %v1327 = vadd.f32 %v1250, %v1326
        %v1328 = vpop.f32.mrb[0].mxu0
        %v1329 = vpop.f32.mrb[0].mxu0
        %v1330 = vadd.f32 %v1250, %v1329
        %v1331 = vpop.f32.mrb[0].mxu0
        %1332 = vmatprep.mubr.bf16.mxu0 0
        %1333 = vmatmul.mubr.bf16.gmra.mrb[0].mxu0 %v1274
        %v1334 = vpop.f32.mrb[0].mxu0
        %v1335 = vadd.f32 %v1250, %v1334
        %v1336 = vpop.f32.mrb[0].mxu0
        %v1337 = vpop.f32.mrb[0].mxu0
        %v1338 = vadd.f32 %v1250, %v1337
        %v1339 = vpop.f32.mrb[0].mxu0
        %1340 = vdwg.mxu0
        %v1341 = vld [vmem:[%s725] sm:$0xff]
        %v1342 = vlaneseq
        %v1343 = vshrl.u32 %v1342, 7
        %v1344 = vsub.s32 0, %v1343
        %v1345 = vrot.slane %v1341, %v1344
        %1347 = vbcast.lane.b32.xlu0 %v1345, 256
        %v1348 = vpop.permute.xlu0 %1347
        %v1349 = vlaneseq
        %v1350 = vshrl.u32 %v1349, 7
        %v1351 = vsub.s32 1, %v1350
        %v1352 = vrot.slane %v1341, %v1351
        %1354 = vbcast.lane.b32.xlu0 %v1352, 256
        %v1355 = vpop.permute.xlu0 %1354
        %v1356 = vlaneseq
        %v1357 = vshrl.u32 %v1356, 7
        %v1358 = vsub.s32 2, %v1357
        %v1359 = vrot.slane %v1341, %v1358
        %1361 = vbcast.lane.b32.xlu0 %v1359, 256
        %v1362 = vpop.permute.xlu0 %1361
        %v1363 = vlaneseq
        %v1364 = vshrl.u32 %v1363, 7
        %v1365 = vsub.s32 3, %v1364
        %v1366 = vrot.slane %v1341, %v1365
        %1368 = vbcast.lane.b32.xlu0 %v1366, 256
        %v1369 = vpop.permute.xlu0 %1368
        %v1370 = vlaneseq
        %v1371 = vshrl.u32 %v1370, 7
        %v1372 = vsub.s32 4, %v1371
        %v1373 = vrot.slane %v1341, %v1372
        %1375 = vbcast.lane.b32.xlu0 %v1373, 256
        %v1376 = vpop.permute.xlu0 %1375
        %v1377 = vlaneseq
        %v1378 = vshrl.u32 %v1377, 7
        %v1379 = vsub.s32 5, %v1378
        %v1380 = vrot.slane %v1341, %v1379
        %1382 = vbcast.lane.b32.xlu0 %v1380, 256
        %v1383 = vpop.permute.xlu0 %1382
        %v1384 = vlaneseq
        %v1385 = vshrl.u32 %v1384, 7
        %v1386 = vsub.s32 6, %v1385
        %v1387 = vrot.slane %v1341, %v1386
        %1389 = vbcast.lane.b32.xlu0 %v1387, 256
        %v1390 = vpop.permute.xlu0 %1389
        %v1391 = vlaneseq
        %v1392 = vshrl.u32 %v1391, 7
        %v1393 = vsub.s32 7, %v1392
        %v1394 = vrot.slane %v1341, %v1393
        %1396 = vbcast.lane.b32.xlu0 %v1394, 256
        %v1397 = vpop.permute.xlu0 %1396
        %v1398 = vmul.f32 %v1311, %v1348
        %v1399 = vmul.f32 %v1314, %v1355
        %v1400 = vmul.f32 %v1319, %v1362
        %v1401 = vmul.f32 %v1322, %v1369
        %v1402 = vmul.f32 %v1327, %v1376
        %v1403 = vmul.f32 %v1330, %v1383
        %v1404 = vmul.f32 %v1335, %v1390
        %v1405 = vmul.f32 %v1338, %v1397
        %v1406 = vadd.f32 %v732, %v1398
        %v1407 = vadd.f32 %v733, %v1399
        %v1408 = vadd.f32 %v734, %v1400
        %v1409 = vadd.f32 %v735, %v1401
        %v1410 = vadd.f32 %v736, %v1402
        %v1411 = vadd.f32 %v737, %v1403
        %v1412 = vadd.f32 %v738, %v1404
        %v1413 = vadd.f32 %v739, %v1405
        %v1414 = vld [vmem:[%s13] sm:$0x1]
        %v1415 = vld [vmem:[%s14] sm:$0x1]
        %v1416 = vsel %vm776, %v1406, 0.0
        %1417 = vadd.xlane.f32.xlu0 %v1416
        %v1418 = vpop.xlane.xlu0 %1417
        %v1419 = vsel %vm776, %v1407, 0.0
        %1420 = vadd.xlane.f32.xlu0 %v1419
        %v1421 = vpop.xlane.xlu0 %1420
        %v1422 = vsel %vm776, %v1408, 0.0
        %1423 = vadd.xlane.f32.xlu0 %v1422
        %v1424 = vpop.xlane.xlu0 %1423
        %v1425 = vsel %vm776, %v1409, 0.0
        %1426 = vadd.xlane.f32.xlu0 %v1425
        %v1427 = vpop.xlane.xlu0 %1426
        %v1428 = vsel %vm776, %v1410, 0.0
        %1429 = vadd.xlane.f32.xlu0 %v1428
        %v1430 = vpop.xlane.xlu0 %1429
        %v1431 = vsel %vm776, %v1411, 0.0
        %1432 = vadd.xlane.f32.xlu0 %v1431
        %v1433 = vpop.xlane.xlu0 %1432
        %v1434 = vsel %vm776, %v1412, 0.0
        %1435 = vadd.xlane.f32.xlu0 %v1434
        %v1436 = vpop.xlane.xlu0 %1435
        %v1437 = vsel %vm776, %v1413, 0.0
        %1438 = vadd.xlane.f32.xlu0 %v1437
        %v1439 = vpop.xlane.xlu0 %1438
        %v1440 = vrcp.pop 32.0
        %v1441 = vmul.f32 %v1418, %v1440
        %v1442 = vmul.f32 %v1421, %v1440
        %v1443 = vmul.f32 %v1424, %v1440
        %v1444 = vmul.f32 %v1427, %v1440
        %v1445 = vmul.f32 %v1430, %v1440
        %v1446 = vmul.f32 %v1433, %v1440
        %v1447 = vmul.f32 %v1436, %v1440
        %v1448 = vmul.f32 %v1439, %v1440
        %v1449 = vsub.f32 %v1406, %v1441
        %v1450 = vsub.f32 %v1407, %v1442
        %v1451 = vsub.f32 %v1408, %v1443
        %v1452 = vsub.f32 %v1409, %v1444
        %v1453 = vsub.f32 %v1410, %v1445
        %v1454 = vsub.f32 %v1411, %v1446
        %v1455 = vsub.f32 %v1412, %v1447
        %v1456 = vsub.f32 %v1413, %v1448
        %v1457 = vmul.f32 %v1449, %v1449
        %v1458 = vmul.f32 %v1450, %v1450
        %v1459 = vmul.f32 %v1451, %v1451
        %v1460 = vmul.f32 %v1452, %v1452
        %v1461 = vmul.f32 %v1453, %v1453
        %v1462 = vmul.f32 %v1454, %v1454
        %v1463 = vmul.f32 %v1455, %v1455
        %v1464 = vmul.f32 %v1456, %v1456
        %v1465 = vsel %vm776, %v1457, 0.0
        %1466 = vadd.xlane.f32.xlu0 %v1465
        %v1467 = vpop.xlane.xlu0 %1466
        %v1468 = vsel %vm776, %v1458, 0.0
        %1469 = vadd.xlane.f32.xlu0 %v1468
        %v1470 = vpop.xlane.xlu0 %1469
        %v1471 = vsel %vm776, %v1459, 0.0
        %1472 = vadd.xlane.f32.xlu0 %v1471
        %v1473 = vpop.xlane.xlu0 %1472
        %v1474 = vsel %vm776, %v1460, 0.0
        %1475 = vadd.xlane.f32.xlu0 %v1474
        %v1476 = vpop.xlane.xlu0 %1475
        %v1477 = vsel %vm776, %v1461, 0.0
        %1478 = vadd.xlane.f32.xlu0 %v1477
        %v1479 = vpop.xlane.xlu0 %1478
        %v1480 = vsel %vm776, %v1462, 0.0
        %1481 = vadd.xlane.f32.xlu0 %v1480
        %v1482 = vpop.xlane.xlu0 %1481
        %v1483 = vsel %vm776, %v1463, 0.0
        %1484 = vadd.xlane.f32.xlu0 %v1483
        %v1485 = vpop.xlane.xlu0 %1484
        %v1486 = vsel %vm776, %v1464, 0.0
        %1487 = vadd.xlane.f32.xlu0 %v1486
        %v1488 = vpop.xlane.xlu0 %1487
        %v1489 = vmul.f32 %v1467, %v1440
        %v1490 = vmul.f32 %v1470, %v1440
        %v1491 = vmul.f32 %v1473, %v1440
        %v1492 = vmul.f32 %v1476, %v1440
        %v1493 = vmul.f32 %v1479, %v1440
        %v1494 = vmul.f32 %v1482, %v1440
        %v1495 = vmul.f32 %v1485, %v1440
        %v1496 = vmul.f32 %v1488, %v1440
        %v1497 = vadd.f32 %v1489, 1e-05
        %v1498 = vadd.f32 %v1490, 1e-05
        %v1499 = vadd.f32 %v1491, 1e-05
        %v1500 = vadd.f32 %v1492, 1e-05
        %v1501 = vadd.f32 %v1493, 1e-05
        %v1502 = vadd.f32 %v1494, 1e-05
        %v1503 = vadd.f32 %v1495, 1e-05
        %v1504 = vadd.f32 %v1496, 1e-05
        %v1505 = vrsqrt.pop %v1497
        %v1506 = vrsqrt.pop %v1498
        %v1507 = vrsqrt.pop %v1499
        %v1508 = vrsqrt.pop %v1500
        %v1509 = vrsqrt.pop %v1501
        %v1510 = vrsqrt.pop %v1502
        %v1511 = vrsqrt.pop %v1503
        %v1512 = vrsqrt.pop %v1504
        %v1513 = vmul.f32 %v1449, %v1505
        %v1514 = vmul.f32 %v1450, %v1506
        %v1515 = vmul.f32 %v1451, %v1507
        %v1516 = vmul.f32 %v1452, %v1508
        %v1517 = vmul.f32 %v1453, %v1509
        %v1518 = vmul.f32 %v1454, %v1510
        %v1519 = vmul.f32 %v1455, %v1511
        %v1520 = vmul.f32 %v1456, %v1512
        %v1522 = vlaneseq
        %v1523 = vshrl.u32 %v1522, 7
        %v1524 = vsub.s32 0, %v1523
        %v1525 = vrot.slane %v1414, %v1524
        %v1527 = vmul.f32 %v1513, %v1525
        %v1528 = vmul.f32 %v1514, %v1525
        %v1529 = vmul.f32 %v1515, %v1525
        %v1530 = vmul.f32 %v1516, %v1525
        %v1531 = vmul.f32 %v1517, %v1525
        %v1532 = vmul.f32 %v1518, %v1525
        %v1533 = vmul.f32 %v1519, %v1525
        %v1534 = vmul.f32 %v1520, %v1525
        %v1536 = vlaneseq
        %v1537 = vshrl.u32 %v1536, 7
        %v1538 = vsub.s32 0, %v1537
        %v1539 = vrot.slane %v1415, %v1538
        %v1541 = vadd.f32 %v1527, %v1539
        %v1542 = vadd.f32 %v1528, %v1539
        %v1543 = vadd.f32 %v1529, %v1539
        %v1544 = vadd.f32 %v1530, %v1539
        %v1545 = vadd.f32 %v1531, %v1539
        %v1546 = vadd.f32 %v1532, %v1539
        %v1547 = vadd.f32 %v1533, %v1539
        %v1548 = vadd.f32 %v1534, %v1539
        %v1549 = vld [vmem:[%s15] sm:$0xf]
        %v1550 = vld [vmem:[%s15 + $0x4] sm:$0xf]
        %v1551 = vld [vmem:[%s15 + $0x8] sm:$0xf]
        %v1552 = vld [vmem:[%s15 + $0xc] sm:$0xf]
        %v1553 = vpack.c.bf16 %v1542, %v1541
        %v1554 = vpack.c.bf16 %v1544, %v1543
        %v1555 = vpack.c.bf16 %v1546, %v1545
        %v1556 = vpack.c.bf16 %v1548, %v1547
        %v1557 = vld [vmem:[%s16] sm:$0x1]
        %v1559 = vlaneseq
        %v1560 = vshrl.u32 %v1559, 7
        %v1561 = vsub.s32 0, %v1560
        %v1562 = vrot.slane %v1557, %v1561
        %v1568 = vunpack.c.l.b16 %v1549
        %v1569 = vunpack.c.l.b16 %v1550
        %v1570 = vunpack.c.l.b16 %v1551
        %v1571 = vunpack.c.l.b16 %v1552
        %v1572 = vpack.c.b16 %v1569, %v1568
        %v1573 = vpack.c.b16 %v1571, %v1570
        %v1577 = vsel %vm776, %v1553, 0
        %v1580 = vsel %vm776, %v1554, 0
        %v1583 = vsel %vm776, %v1555, 0
        %v1586 = vsel %vm776, %v1556, 0
        %1588 = vmatprep.subr.bf16.mxu0 0
        %1589 = vmatpush1.bf16.msra.mxu0 %v1572
        %1590 = vmatprep.subr.bf16.mxu0 0
        %1591 = vmatpush1.bf16.msra.mxu0 %v1573
        %1592 = vmatprep.subr.bf16.mxu0 0
        %1593 = vmatpush1.bf16.msra.mxu0 0
        %1594 = vmatprep.subr.bf16.mxu0 0
        %1595 = vmatpush1.bf16.msra.mxu0 0
        %1596 = vmatprep.subr.bf16.mxu0 0
        %1597 = vmatpush1.bf16.msra.mxu0 0
        %1598 = vmatprep.subr.bf16.mxu0 0
        %1599 = vmatpush1.bf16.msra.mxu0 0
        %1600 = vmatprep.subr.bf16.mxu0 0
        %1601 = vmatpush1.bf16.msra.mxu0 0
        %1602 = vmatprep.subr.bf16.mxu0 0
        %1603 = vmatpush1.bf16.msra.mxu0 0
        %1604 = vmatprep.subr.bf16.mxu0 0
        %1605 = vmatpush1.bf16.msra.mxu0 0
        %1606 = vmatprep.subr.bf16.mxu0 0
        %1607 = vmatpush1.bf16.msra.mxu0 0
        %1608 = vmatprep.subr.bf16.mxu0 0
        %1609 = vmatpush1.bf16.msra.mxu0 0
        %1610 = vmatprep.subr.bf16.mxu0 0
        %1611 = vmatpush1.bf16.msra.mxu0 0
        %1612 = vmatprep.subr.bf16.mxu0 0
        %1613 = vmatpush1.bf16.msra.mxu0 0
        %1614 = vmatprep.subr.bf16.mxu0 0
        %1615 = vmatpush1.bf16.msra.mxu0 0
        %1616 = vmatprep.subr.bf16.mxu0 0
        %1617 = vmatpush1.bf16.msra.mxu0 0
        %1618 = vmatprep.subr.bf16.mxu0 0
        %1619 = vmatpush1.bf16.msra.mxu0 0
        %1620 = vmatprep.mubr.bf16.mxu0 0
        %1621 = vmatmul.mubr.bf16.gmra.mrb[0].mxu0 %v1577
        %v1622 = vpop.f32.mrb[0].mxu0
        %v1623 = vadd.f32 %v1562, %v1622
        %v1624 = vpop.f32.mrb[0].mxu0
        %v1625 = vpop.f32.mrb[0].mxu0
        %v1626 = vadd.f32 %v1562, %v1625
        %v1627 = vpop.f32.mrb[0].mxu0
        %1628 = vmatprep.mubr.bf16.mxu0 0
        %1629 = vmatmul.mubr.bf16.gmra.mrb[0].mxu0 %v1580
        %v1630 = vpop.f32.mrb[0].mxu0
        %v1631 = vadd.f32 %v1562, %v1630
        %v1632 = vpop.f32.mrb[0].mxu0
        %v1633 = vpop.f32.mrb[0].mxu0
        %v1634 = vadd.f32 %v1562, %v1633
        %v1635 = vpop.f32.mrb[0].mxu0
        %1636 = vmatprep.mubr.bf16.mxu0 0
        %1637 = vmatmul.mubr.bf16.gmra.mrb[0].mxu0 %v1583
        %v1638 = vpop.f32.mrb[0].mxu0
        %v1639 = vadd.f32 %v1562, %v1638
        %v1640 = vpop.f32.mrb[0].mxu0
        %v1641 = vpop.f32.mrb[0].mxu0
        %v1642 = vadd.f32 %v1562, %v1641
        %v1643 = vpop.f32.mrb[0].mxu0
        %1644 = vmatprep.mubr.bf16.mxu0 0
        %1645 = vmatmul.mubr.bf16.gmra.mrb[0].mxu0 %v1586
        %v1646 = vpop.f32.mrb[0].mxu0
        %v1647 = vadd.f32 %v1562, %v1646
        %v1648 = vpop.f32.mrb[0].mxu0
        %v1649 = vpop.f32.mrb[0].mxu0
        %v1650 = vadd.f32 %v1562, %v1649
        %v1651 = vpop.f32.mrb[0].mxu0
        %1652 = vdwg.mxu0
        %v1653 = vmax.f32 %v1623, 0.0
        %v1654 = vmax.f32 %v1626, 0.0
        %v1655 = vmax.f32 %v1631, 0.0
        %v1656 = vmax.f32 %v1634, 0.0
        %v1657 = vmax.f32 %v1639, 0.0
        %v1658 = vmax.f32 %v1642, 0.0
        %v1659 = vmax.f32 %v1647, 0.0
        %v1660 = vmax.f32 %v1650, 0.0
        %v1661 = vld [vmem:[%s17] sm:$0xf]
        %v1662 = vld [vmem:[%s17 + $0x4] sm:$0xf]
        %v1663 = vld [vmem:[%s17 + $0x8] sm:$0xf]
        %v1664 = vld [vmem:[%s17 + $0xc] sm:$0xf]
        %v1665 = vld [vmem:[%s17 + $0x10] sm:$0xf]
        %v1666 = vld [vmem:[%s17 + $0x14] sm:$0xf]
        %v1667 = vld [vmem:[%s17 + $0x18] sm:$0xf]
        %v1668 = vld [vmem:[%s17 + $0x1c] sm:$0xf]
        %v1669 = vld [vmem:[%s17 + $0x20] sm:$0xf]
        %v1670 = vld [vmem:[%s17 + $0x24] sm:$0xf]
        %v1671 = vld [vmem:[%s17 + $0x28] sm:$0xf]
        %v1672 = vld [vmem:[%s17 + $0x2c] sm:$0xf]
        %v1673 = vld [vmem:[%s17 + $0x30] sm:$0xf]
        %v1674 = vld [vmem:[%s17 + $0x34] sm:$0xf]
        %v1675 = vld [vmem:[%s17 + $0x38] sm:$0xf]
        %v1676 = vld [vmem:[%s17 + $0x3c] sm:$0xf]
        %v1677 = vpack.c.bf16 %v1654, %v1653
        %v1678 = vpack.c.bf16 %v1656, %v1655
        %v1679 = vpack.c.bf16 %v1658, %v1657
        %v1680 = vpack.c.bf16 %v1660, %v1659
        %v1681 = vld [vmem:[%s18] sm:$0x1]
        %v1683 = vlaneseq
        %v1684 = vshrl.u32 %v1683, 7
        %v1685 = vsub.s32 0, %v1684
        %v1686 = vrot.slane %v1681, %v1685
        %v1704 = vunpack.c.l.b16 %v1661
        %v1705 = vunpack.c.l.b16 %v1662
        %v1706 = vunpack.c.l.b16 %v1663
        %v1707 = vunpack.c.l.b16 %v1664
        %v1708 = vunpack.c.l.b16 %v1665
        %v1709 = vunpack.c.l.b16 %v1666
        %v1710 = vunpack.c.l.b16 %v1667
        %v1711 = vunpack.c.l.b16 %v1668
        %v1712 = vunpack.c.l.b16 %v1669
        %v1713 = vunpack.c.l.b16 %v1670
        %v1714 = vunpack.c.l.b16 %v1671
        %v1715 = vunpack.c.l.b16 %v1672
        %v1716 = vunpack.c.l.b16 %v1673
        %v1717 = vunpack.c.l.b16 %v1674
        %v1718 = vunpack.c.l.b16 %v1675
        %v1719 = vunpack.c.l.b16 %v1676
        %v1720 = vpack.c.b16 %v1705, %v1704
        %v1721 = vpack.c.b16 %v1707, %v1706
        %v1722 = vpack.c.b16 %v1709, %v1708
        %v1723 = vpack.c.b16 %v1711, %v1710
        %v1724 = vpack.c.b16 %v1713, %v1712
        %v1725 = vpack.c.b16 %v1715, %v1714
        %v1726 = vpack.c.b16 %v1717, %v1716
        %v1727 = vpack.c.b16 %v1719, %v1718
        %1736 = vmatprep.subr.bf16.mxu0 0
        %1737 = vmatpush1.bf16.msra.mxu0 %v1720
        %1738 = vmatprep.subr.bf16.mxu0 0
        %1739 = vmatpush1.bf16.msra.mxu0 %v1721
        %1740 = vmatprep.subr.bf16.mxu0 0
        %1741 = vmatpush1.bf16.msra.mxu0 %v1722
        %1742 = vmatprep.subr.bf16.mxu0 0
        %1743 = vmatpush1.bf16.msra.mxu0 %v1723
        %1744 = vmatprep.subr.bf16.mxu0 0
        %1745 = vmatpush1.bf16.msra.mxu0 %v1724
        %1746 = vmatprep.subr.bf16.mxu0 0
        %1747 = vmatpush1.bf16.msra.mxu0 %v1725
        %1748 = vmatprep.subr.bf16.mxu0 0
        %1749 = vmatpush1.bf16.msra.mxu0 %v1726
        %1750 = vmatprep.subr.bf16.mxu0 0
        %1751 = vmatpush1.bf16.msra.mxu0 %v1727
        %1752 = vmatprep.subr.bf16.mxu0 0
        %1753 = vmatpush1.bf16.msra.mxu0 0
        %1754 = vmatprep.subr.bf16.mxu0 0
        %1755 = vmatpush1.bf16.msra.mxu0 0
        %1756 = vmatprep.subr.bf16.mxu0 0
        %1757 = vmatpush1.bf16.msra.mxu0 0
        %1758 = vmatprep.subr.bf16.mxu0 0
        %1759 = vmatpush1.bf16.msra.mxu0 0
        %1760 = vmatprep.subr.bf16.mxu0 0
        %1761 = vmatpush1.bf16.msra.mxu0 0
        %1762 = vmatprep.subr.bf16.mxu0 0
        %1763 = vmatpush1.bf16.msra.mxu0 0
        %1764 = vmatprep.subr.bf16.mxu0 0
        %1765 = vmatpush1.bf16.msra.mxu0 0
        %1766 = vmatprep.subr.bf16.mxu0 0
        %1767 = vmatpush1.bf16.msra.mxu0 0
        %1768 = vmatprep.mubr.bf16.mxu0 0
        %1769 = vmatmul.mubr.bf16.gmra.mrb[0].mxu0 %v1677
        %v1770 = vpop.f32.mrb[0].mxu0
        %v1771 = vadd.f32 %v1686, %v1770
        %v1772 = vpop.f32.mrb[0].mxu0
        %v1773 = vpop.f32.mrb[0].mxu0
        %v1774 = vadd.f32 %v1686, %v1773
        %v1775 = vpop.f32.mrb[0].mxu0
        %1776 = vmatprep.mubr.bf16.mxu0 0
        %1777 = vmatmul.mubr.bf16.gmra.mrb[0].mxu0 %v1678
        %v1778 = vpop.f32.mrb[0].mxu0
        %v1779 = vadd.f32 %v1686, %v1778
        %v1780 = vpop.f32.mrb[0].mxu0
        %v1781 = vpop.f32.mrb[0].mxu0
        %v1782 = vadd.f32 %v1686, %v1781
        %v1783 = vpop.f32.mrb[0].mxu0
        %1784 = vmatprep.mubr.bf16.mxu0 0
        %1785 = vmatmul.mubr.bf16.gmra.mrb[0].mxu0 %v1679
        %v1786 = vpop.f32.mrb[0].mxu0
        %v1787 = vadd.f32 %v1686, %v1786
        %v1788 = vpop.f32.mrb[0].mxu0
        %v1789 = vpop.f32.mrb[0].mxu0
        %v1790 = vadd.f32 %v1686, %v1789
        %v1791 = vpop.f32.mrb[0].mxu0
        %1792 = vmatprep.mubr.bf16.mxu0 0
        %1793 = vmatmul.mubr.bf16.gmra.mrb[0].mxu0 %v1680
        %v1794 = vpop.f32.mrb[0].mxu0
        %v1795 = vadd.f32 %v1686, %v1794
        %v1796 = vpop.f32.mrb[0].mxu0
        %v1797 = vpop.f32.mrb[0].mxu0
        %v1798 = vadd.f32 %v1686, %v1797
        %v1799 = vpop.f32.mrb[0].mxu0
        %1800 = vdwg.mxu0
        %v1801 = vadd.f32 %v1541, %v1771
        %v1802 = vadd.f32 %v1542, %v1774
        %v1803 = vadd.f32 %v1543, %v1779
        %v1804 = vadd.f32 %v1544, %v1782
        %v1805 = vadd.f32 %v1545, %v1787
        %v1806 = vadd.f32 %v1546, %v1790
        %v1807 = vadd.f32 %v1547, %v1795
        %v1808 = vadd.f32 %v1548, %v1798
        %v1809 = vld [vmem:[%s19] sm:$0x1]
        %v1810 = vld [vmem:[%s20] sm:$0x1]
        %v1811 = vsel %vm776, %v1801, 0.0
        %1812 = vadd.xlane.f32.xlu0 %v1811
        %v1813 = vpop.xlane.xlu0 %1812
        %v1814 = vsel %vm776, %v1802, 0.0
        %1815 = vadd.xlane.f32.xlu0 %v1814
        %v1816 = vpop.xlane.xlu0 %1815
        %v1817 = vsel %vm776, %v1803, 0.0
        %1818 = vadd.xlane.f32.xlu0 %v1817
        %v1819 = vpop.xlane.xlu0 %1818
        %v1820 = vsel %vm776, %v1804, 0.0
        %1821 = vadd.xlane.f32.xlu0 %v1820
        %v1822 = vpop.xlane.xlu0 %1821
        %v1823 = vsel %vm776, %v1805, 0.0
        %1824 = vadd.xlane.f32.xlu0 %v1823
        %v1825 = vpop.xlane.xlu0 %1824
        %v1826 = vsel %vm776, %v1806, 0.0
        %1827 = vadd.xlane.f32.xlu0 %v1826
        %v1828 = vpop.xlane.xlu0 %1827
        %v1829 = vsel %vm776, %v1807, 0.0
        %1830 = vadd.xlane.f32.xlu0 %v1829
        %v1831 = vpop.xlane.xlu0 %1830
        %v1832 = vsel %vm776, %v1808, 0.0
        %1833 = vadd.xlane.f32.xlu0 %v1832
        %v1834 = vpop.xlane.xlu0 %1833
        %v1835 = vmul.f32 %v1813, %v1440
        %v1836 = vmul.f32 %v1816, %v1440
        %v1837 = vmul.f32 %v1819, %v1440
        %v1838 = vmul.f32 %v1822, %v1440
        %v1839 = vmul.f32 %v1825, %v1440
        %v1840 = vmul.f32 %v1828, %v1440
        %v1841 = vmul.f32 %v1831, %v1440
        %v1842 = vmul.f32 %v1834, %v1440
        %v1843 = vsub.f32 %v1801, %v1835
        %v1844 = vsub.f32 %v1802, %v1836
        %v1845 = vsub.f32 %v1803, %v1837
        %v1846 = vsub.f32 %v1804, %v1838
        %v1847 = vsub.f32 %v1805, %v1839
        %v1848 = vsub.f32 %v1806, %v1840
        %v1849 = vsub.f32 %v1807, %v1841
        %v1850 = vsub.f32 %v1808, %v1842
        %v1851 = vmul.f32 %v1843, %v1843
        %v1852 = vmul.f32 %v1844, %v1844
        %v1853 = vmul.f32 %v1845, %v1845
        %v1854 = vmul.f32 %v1846, %v1846
        %v1855 = vmul.f32 %v1847, %v1847
        %v1856 = vmul.f32 %v1848, %v1848
        %v1857 = vmul.f32 %v1849, %v1849
        %v1858 = vmul.f32 %v1850, %v1850
        %v1859 = vsel %vm776, %v1851, 0.0
        %1860 = vadd.xlane.f32.xlu0 %v1859
        %v1861 = vpop.xlane.xlu0 %1860
        %v1862 = vsel %vm776, %v1852, 0.0
        %1863 = vadd.xlane.f32.xlu0 %v1862
        %v1864 = vpop.xlane.xlu0 %1863
        %v1865 = vsel %vm776, %v1853, 0.0
        %1866 = vadd.xlane.f32.xlu0 %v1865
        %v1867 = vpop.xlane.xlu0 %1866
        %v1868 = vsel %vm776, %v1854, 0.0
        %1869 = vadd.xlane.f32.xlu0 %v1868
        %v1870 = vpop.xlane.xlu0 %1869
        %v1871 = vsel %vm776, %v1855, 0.0
        %1872 = vadd.xlane.f32.xlu0 %v1871
        %v1873 = vpop.xlane.xlu0 %1872
        %v1874 = vsel %vm776, %v1856, 0.0
        %1875 = vadd.xlane.f32.xlu0 %v1874
        %v1876 = vpop.xlane.xlu0 %1875
        %v1877 = vsel %vm776, %v1857, 0.0
        %1878 = vadd.xlane.f32.xlu0 %v1877
        %v1879 = vpop.xlane.xlu0 %1878
        %v1880 = vsel %vm776, %v1858, 0.0
        %1881 = vadd.xlane.f32.xlu0 %v1880
        %v1882 = vpop.xlane.xlu0 %1881
        %v1883 = vmul.f32 %v1861, %v1440
        %v1884 = vmul.f32 %v1864, %v1440
        %v1885 = vmul.f32 %v1867, %v1440
        %v1886 = vmul.f32 %v1870, %v1440
        %v1887 = vmul.f32 %v1873, %v1440
        %v1888 = vmul.f32 %v1876, %v1440
        %v1889 = vmul.f32 %v1879, %v1440
        %v1890 = vmul.f32 %v1882, %v1440
        %v1891 = vadd.f32 %v1883, 1e-05
        %v1892 = vadd.f32 %v1884, 1e-05
        %v1893 = vadd.f32 %v1885, 1e-05
        %v1894 = vadd.f32 %v1886, 1e-05
        %v1895 = vadd.f32 %v1887, 1e-05
        %v1896 = vadd.f32 %v1888, 1e-05
        %v1897 = vadd.f32 %v1889, 1e-05
        %v1898 = vadd.f32 %v1890, 1e-05
        %v1899 = vrsqrt.pop %v1891
        %v1900 = vrsqrt.pop %v1892
        %v1901 = vrsqrt.pop %v1893
        %v1902 = vrsqrt.pop %v1894
        %v1903 = vrsqrt.pop %v1895
        %v1904 = vrsqrt.pop %v1896
        %v1905 = vrsqrt.pop %v1897
        %v1906 = vrsqrt.pop %v1898
        %v1907 = vmul.f32 %v1843, %v1899
        %v1908 = vmul.f32 %v1844, %v1900
        %v1909 = vmul.f32 %v1845, %v1901
        %v1910 = vmul.f32 %v1846, %v1902
        %v1911 = vmul.f32 %v1847, %v1903
        %v1912 = vmul.f32 %v1848, %v1904
        %v1913 = vmul.f32 %v1849, %v1905
        %v1914 = vmul.f32 %v1850, %v1906
        %v1916 = vlaneseq
        %v1917 = vshrl.u32 %v1916, 7
        %v1918 = vsub.s32 0, %v1917
        %v1919 = vrot.slane %v1809, %v1918
        %v1921 = vmul.f32 %v1907, %v1919
        %v1922 = vmul.f32 %v1908, %v1919
        %v1923 = vmul.f32 %v1909, %v1919
        %v1924 = vmul.f32 %v1910, %v1919
        %v1925 = vmul.f32 %v1911, %v1919
        %v1926 = vmul.f32 %v1912, %v1919
        %v1927 = vmul.f32 %v1913, %v1919
        %v1928 = vmul.f32 %v1914, %v1919
        %v1930 = vlaneseq
        %v1931 = vshrl.u32 %v1930, 7
        %v1932 = vsub.s32 0, %v1931
        %v1933 = vrot.slane %v1810, %v1932
        %v1935 = vadd.f32 %v1921, %v1933
        %v1936 = vadd.f32 %v1922, %v1933
        %v1937 = vadd.f32 %v1923, %v1933
        %v1938 = vadd.f32 %v1924, %v1933
        %v1939 = vadd.f32 %v1925, %v1933
        %v1940 = vadd.f32 %v1926, %v1933
        %v1941 = vadd.f32 %v1927, %v1933
        %v1942 = vadd.f32 %v1928, %v1933
        %v1943 = vld [vmem:[%s729] sm:$0xff]
        %v1945 = vcombine.high %v1943, %v1943
        %v1947 = vunpack.c.l.s4 1966171168
        %v1948 = vunpack.c.0.s8 %v1947
        %v1949 = vlaneseq
        %v1950 = vshrl.u32 %v1949, 7
        %v1951 = vsub.s32 %v1948, %v1950
        %v1952 = vrot.slane %v1943, %v1951
        %v1954 = vunpack.c.l.s4 1966171168
        %v1955 = vunpack.c.0.s8 %v1954
        %v1956 = vlaneseq
        %v1957 = vshrl.u32 %v1956, 7
        %v1958 = vsub.s32 %v1955, %v1957
        %v1959 = vrot.slane %v1945, %v1958
        %v1960 = vcombine.high %v1952, %v1952
        %v1961 = vcombine.high %v1959, %v1959
        %v1963 = vunpack.c.l.s4 1966171168
        %v1964 = vunpack.c.0.s8 %v1963
        %v1965 = vlaneseq
        %v1966 = vshrl.u32 %v1965, 7
        %v1967 = vsub.s32 %v1964, %v1966
        %v1968 = vrot.slane %v1952, %v1967
        %v1970 = vunpack.c.l.s4 1966171168
        %v1971 = vunpack.c.0.s8 %v1970
        %v1972 = vlaneseq
        %v1973 = vshrl.u32 %v1972, 7
        %v1974 = vsub.s32 %v1971, %v1973
        %v1975 = vrot.slane %v1959, %v1974
        %v1977 = vunpack.c.l.s4 1966171168
        %v1978 = vunpack.c.0.s8 %v1977
        %v1979 = vlaneseq
        %v1980 = vshrl.u32 %v1979, 7
        %v1981 = vsub.s32 %v1978, %v1980
        %v1982 = vrot.slane %v1960, %v1981
        %v1984 = vunpack.c.l.s4 1966171168
        %v1985 = vunpack.c.0.s8 %v1984
        %v1986 = vlaneseq
        %v1987 = vshrl.u32 %v1986, 7
        %v1988 = vsub.s32 %v1985, %v1987
        %v1989 = vrot.slane %v1961, %v1988
        %v1990 = vcombine.high %v1968, %v1968
        %v1991 = vcombine.high %v1975, %v1975
        %v1992 = vcombine.high %v1982, %v1982
        %v1993 = vcombine.high %v1989, %v1989
        %v1994 = vlaneseq
        %v1995 = vshrl.u32 %v1994, 7
        %v1996 = vsub.s32 0, %v1995
        %v1997 = vrot.slane %v1968, %v1996
        %v1998 = vlaneseq
        %v1999 = vshrl.u32 %v1998, 7
        %v2000 = vsub.s32 0, %v1999
        %v2001 = vrot.slane %v1982, %v2000
        %v2002 = vlaneseq
        %v2003 = vshrl.u32 %v2002, 7
        %v2004 = vsub.s32 0, %v2003
        %v2005 = vrot.slane %v1990, %v2004
        %v2006 = vlaneseq
        %v2007 = vshrl.u32 %v2006, 7
        %v2008 = vsub.s32 0, %v2007
        %v2009 = vrot.slane %v1992, %v2008
        %v2010 = vlaneseq
        %v2011 = vshrl.u32 %v2010, 7
        %v2012 = vsub.s32 0, %v2011
        %v2013 = vrot.slane %v1975, %v2012
        %v2014 = vlaneseq
        %v2015 = vshrl.u32 %v2014, 7
        %v2016 = vsub.s32 0, %v2015
        %v2017 = vrot.slane %v1989, %v2016
        %v2018 = vlaneseq
        %v2019 = vshrl.u32 %v2018, 7
        %v2020 = vsub.s32 0, %v2019
        %v2021 = vrot.slane %v1991, %v2020
        %v2022 = vlaneseq
        %v2023 = vshrl.u32 %v2022, 7
        %v2024 = vsub.s32 0, %v2023
        %v2025 = vrot.slane %v1993, %v2024
        %2026 = vset.pattern.permute.xlu0 0
        %2027 = vperm.xlu0 %2026, %v1997
        %v2028 = vpop.permute.xlu0 %2027
        %2030 = vset.pattern.permute.xlu0 0
        %2031 = vperm.xlu0 %2030, %v2001
        %v2032 = vpop.permute.xlu0 %2031
        %2034 = vset.pattern.permute.xlu0 0
        %2035 = vperm.xlu0 %2034, %v2005
        %v2036 = vpop.permute.xlu0 %2035
        %2038 = vset.pattern.permute.xlu0 0
        %2039 = vperm.xlu0 %2038, %v2009
        %v2040 = vpop.permute.xlu0 %2039
        %2042 = vset.pattern.permute.xlu0 0
        %2043 = vperm.xlu0 %2042, %v2013
        %v2044 = vpop.permute.xlu0 %2043
        %2046 = vset.pattern.permute.xlu0 0
        %2047 = vperm.xlu0 %2046, %v2017
        %v2048 = vpop.permute.xlu0 %2047
        %2050 = vset.pattern.permute.xlu0 0
        %2051 = vperm.xlu0 %2050, %v2021
        %v2052 = vpop.permute.xlu0 %2051
        %2054 = vset.pattern.permute.xlu0 0
        %2055 = vperm.xlu0 %2054, %v2025
        %v2056 = vpop.permute.xlu0 %2055
        %v2058 = vmul.f32 %v1935, %v2028
        %v2059 = vmul.f32 %v1936, %v2032
        %v2060 = vmul.f32 %v1937, %v2036
        %v2061 = vmul.f32 %v1938, %v2040
        %v2062 = vmul.f32 %v1939, %v2044
        %v2063 = vmul.f32 %v1940, %v2048
        %v2064 = vmul.f32 %v1941, %v2052
        %v2065 = vmul.f32 %v1942, %v2056
        %2066 = vst.msk [vmem:[%s705] sm:$0xff] %vm776, %v2058
        %2067 = vst.msk [vmem:[%s705 + $0x8] sm:$0xff] %vm776, %v2059
        %2068 = vst.msk [vmem:[%s705 + $0x10] sm:$0xff] %vm776, %v2060
        %2069 = vst.msk [vmem:[%s705 + $0x18] sm:$0xff] %vm776, %v2061
        %2070 = vst.msk [vmem:[%s705 + $0x20] sm:$0xff] %vm776, %v2062
        %2071 = vst.msk [vmem:[%s705 + $0x28] sm:$0xff] %vm776, %v2063
        %2072 = vst.msk [vmem:[%s705 + $0x30] sm:$0xff] %vm776, %v2064
        %2073 = vst.msk [vmem:[%s705 + $0x38] sm:$0xff] %vm776, %v2065
        %s2074 = sand.u32 %s509, 1
        %s2075 = scalar_lea.sflag [#allocation3], %s2074
        %s2076 = sand.u32 %s509, 1
        %s2077 = smul.addr %s2076, 64
        %s2078 = scalar_lea.vmem [#allocation2], %s2077
        // Predicated region
        $region105: #{pair_energies_forward.7} parent=103 // pred_check
          %p2079 = pneg %p519
        $region106: #{pair_energies_forward.7} parent=103 // pred_check_branch
          %2081 = sbr.rel (%p2079) target = $region108
        $region107: #{pair_energies_forward.7} parent=103 // pred_region
          %s2082 = smul.u32 8, %s35
          %s2084 = ssub.s32 1024, 1024
          %2085 = vsyncadd %s2075, %s2084
          %s2086 = smul.addr %s2082, 128
          %s2087 = scalar_lea.hbm %s21, %s2086
          %s2088 = sshll.u32 %s2078, 4
          %s2089 = int_to_ptr.vmem [resolvable:$true] %s2088
          %2094 = dma.vmem_to_hbm [thread:$0]  %s2089, 1024, %s2087, %s2075, 128, 128, 8
        $region108: #{pair_energies_forward.7} parent=103 // pred_fallthru
          _
      $region104: #{pair_energies_forward.7} parent=5 // pred_fallthru
        _
      %p2095 = scmp.le.s32.totalorder 2, %s30
      // Predicated region
      $region109: #{pair_energies_forward.7} parent=5 // pred_check
        %p2096 = pneg %p2095
      $region110: #{pair_energies_forward.7} parent=5 // pred_check_branch
        %2098 = sbr.rel (%p2096) target = $region112
      $region111: #{pair_energies_forward.7} parent=5 // pred_region
        %s2099 = ssub.s32 %s30, 2
        // Predicated region
        $region113: #{pair_energies_forward.7} parent=111 // pred_check
          %p2100 = pneg %p525
        $region114: #{pair_energies_forward.7} parent=111 // pred_check_branch
          %2102 = sbr.rel (%p2100) target = $region116
        $region115: #{pair_energies_forward.7} parent=111 // pred_region
          %s2103 = sand.u32 %s510, 1
          %s2104 = scalar_lea.sflag [#allocation3], %s2103
          %s2105 = sand.u32 %s510, 1
          %s2106 = smul.addr %s2105, 64
          %s2107 = scalar_lea.vmem [#allocation2], %s2106
          %2108 = dma.done %s2104, 1024
        $region116: #{pair_energies_forward.7} parent=111 // pred_fallthru
          _
      $region112: #{pair_energies_forward.7} parent=5 // pred_fallthru
        _
    $region6: #{pair_energies_forward.7} parent=1 // loop_footer
      %s34 = sadd.s32 1, %s30
    $region7: #{pair_energies_forward.7} parent=1 // loop_footer_branch
      %29 = sbr.rel target = $region3
    $region8: #{pair_energies_forward.7} parent=1 // loop_exit
      _
    %2109 = vsyncpa [#allocation3], 1
    %s2110 = scalar_lea.sflag [#allocation3], 1
    %2111 = vsyncpa %s2110, 1

// kernel: pair_energies_forward.8
$region0: #{pair_energies_forward.8}
  #allocation0 [shape = 'u32[]', space=smem, size = 0x4, offset = 0x4, fixed_abs, tag = 'smem constant byte address 0x4 - core index']
  #allocation1 [shape = 'u32[144,128]{1,0:T(1,128)}', space=vmem, size = 0x12000, scoped, tag = 'internal scratch']
  %s0 = inlined_call_operand.vmem [shape: f32[16,32], index: 0, kind: input, shape index: {}]
  %s1 = inlined_call_operand.vmem [shape: f32[16,8,32], index: 1, kind: input, shape index: {}]
  %s2 = inlined_call_operand.vmem [shape: f32[16,8,32], index: 2, kind: input, shape index: {}]
  %s3 = inlined_call_operand.vmem [shape: f32[16,8], index: 3, kind: input, shape index: {}]
  %s4 = inlined_call_operand.vmem [shape: f32[16,1], index: 4, kind: input, shape index: {}]
  %s5 = inlined_call_operand.vmem [shape: bf16[32,32], index: 5, kind: input, shape index: {}]
  %s6 = inlined_call_operand.vmem [shape: bf16[32,32], index: 6, kind: input, shape index: {}]
  %s7 = inlined_call_operand.vmem [shape: bf16[32,32], index: 7, kind: input, shape index: {}]
  %s8 = inlined_call_operand.vmem [shape: f32[1,32], index: 8, kind: input, shape index: {}, may-alias: {8,10,12,14,18,20}]
  %s9 = inlined_call_operand.vmem [shape: bf16[32,32], index: 9, kind: input, shape index: {}]
  %s10 = inlined_call_operand.vmem [shape: f32[1,32], index: 10, kind: input, shape index: {}, may-alias: {8,10,12,14,18,20}]
  %s11 = inlined_call_operand.vmem [shape: bf16[32,32], index: 11, kind: input, shape index: {}]
  %s12 = inlined_call_operand.vmem [shape: f32[1,32], index: 12, kind: input, shape index: {}, may-alias: {8,10,12,14,18,20}]
  %s13 = inlined_call_operand.vmem [shape: f32[1,32], index: 13, kind: input, shape index: {}, may-alias: {13,19}]
  %s14 = inlined_call_operand.vmem [shape: f32[1,32], index: 14, kind: input, shape index: {}, may-alias: {8,10,12,14,18,20}]
  %s15 = inlined_call_operand.vmem [shape: bf16[32,128], index: 15, kind: input, shape index: {}]
  %s16 = inlined_call_operand.vmem [shape: f32[1,128], index: 16, kind: input, shape index: {}]
  %s17 = inlined_call_operand.vmem [shape: bf16[128,32], index: 17, kind: input, shape index: {}]
  %s18 = inlined_call_operand.vmem [shape: f32[1,32], index: 18, kind: input, shape index: {}, may-alias: {8,10,12,14,18,20}]
  %s19 = inlined_call_operand.vmem [shape: f32[1,32], index: 19, kind: input, shape index: {}, may-alias: {13,19}]
  %s20 = inlined_call_operand.vmem [shape: f32[1,32], index: 20, kind: input, shape index: {}, may-alias: {8,10,12,14,18,20}]
  %s21 = inlined_call_operand.hbm [shape: f32[16,32], index: 21, kind: output, shape index: {}]
  %s22 = sld [smem:[#allocation0]]
  $region117: #{pair_energies_forward.8} parent=0
    _
  %s24 = ssub.s32 1, %s22
  %s25 = scalar_select 0, %s24, %s22
  $region1: #{pair_energies_forward.8} parent=0
    #allocation2 [shape = 'u8[8192]{0}', space=vmem, size = 0x2000, scoped, tag = 'output window, operand 0']
    #allocation3 [shape = 's32[2]{0}', space=sflag, size = 0x8, scoped, tag = 'scoped memory for pair_energies_forward.8']
    %26 = vsyncpa [#allocation3], 0
    %s27 = scalar_lea.sflag [#allocation3], 1
    %28 = vsyncpa %s27, 0
    loop: start=0, step=1, limit=4
    $region2: #{pair_energies_forward.8} parent=1 // loop_pre_header
      _
    $region3: #{pair_energies_forward.8} parent=1 // loop_header
      %s30 = sphi 0, %s34
      %p31 = scmp.ge.s32.totalorder %s30, 4
      %s40 = sphi 0, %s42
      %s43 = sphi 0, %s40
      %s44 = sphi 0, %s43
      %s60 = sphi 0, %s44
      %s66 = sphi 0, %s68
      %s69 = sphi 0, %s66
      %s70 = sphi 0, %s69
      %s86 = sphi 0, %s70
      %s92 = sphi 0, %s94
      %s95 = sphi 0, %s92
      %s96 = sphi 0, %s95
      %s112 = sphi 0, %s96
      %s118 = sphi 0, %s120
      %s121 = sphi 0, %s118
      %s122 = sphi 0, %s121
      %s138 = sphi 0, %s122
      %s144 = sphi 0, %s146
      %s147 = sphi 0, %s144
      %s148 = sphi 0, %s147
      %s164 = sphi 0, %s148
      %s168 = sphi 0, %s168
      %s170 = sphi 0, %s168
      %s171 = sphi 0, %s170
      %s185 = sphi 0, %s171
      %s189 = sphi 0, %s189
      %s191 = sphi 0, %s189
      %s192 = sphi 0, %s191
      %s206 = sphi 0, %s192
      %s210 = sphi 0, %s210
      %s212 = sphi 0, %s210
      %s213 = sphi 0, %s212
      %s227 = sphi 0, %s213
      %s231 = sphi 0, %s231
      %s233 = sphi 0, %s231
      %s234 = sphi 0, %s233
      %s248 = sphi 0, %s234
      %s252 = sphi 0, %s252
      %s254 = sphi 0, %s252
      %s255 = sphi 0, %s254
      %s269 = sphi 0, %s255
      %s273 = sphi 0, %s273
      %s275 = sphi 0, %s273
      %s276 = sphi 0, %s275
      %s290 = sphi 0, %s276
      %s294 = sphi 0, %s294
      %s296 = sphi 0, %s294
      %s297 = sphi 0, %s296
      %s311 = sphi 0, %s297
      %s315 = sphi 0, %s315
      %s317 = sphi 0, %s315
      %s318 = sphi 0, %s317
      %s332 = sphi 0, %s318
      %s336 = sphi 0, %s336
      %s338 = sphi 0, %s336
      %s339 = sphi 0, %s338
      %s353 = sphi 0, %s339
      %s357 = sphi 0, %s357
      %s359 = sphi 0, %s357
      %s360 = sphi 0, %s359
      %s374 = sphi 0, %s360
      %s378 = sphi 0, %s378
      %s380 = sphi 0, %s378
      %s381 = sphi 0, %s380
      %s395 = sphi 0, %s381
      %s399 = sphi 0, %s399
      %s401 = sphi 0, %s399
      %s402 = sphi 0, %s401
      %s416 = sphi 0, %s402
      %s420 = sphi 0, %s420
      %s422 = sphi 0, %s420
      %s423 = sphi 0, %s422
      %s437 = sphi 0, %s423
      %s441 = sphi 0, %s441
      %s443 = sphi 0, %s441
      %s444 = sphi 0, %s443
      %s458 = sphi 0, %s444
      %s462 = sphi 0, %s462
      %s464 = sphi 0, %s462
      %s465 = sphi 0, %s464
      %s479 = sphi 0, %s465
      %s483 = sphi 0, %s483
      %s485 = sphi 0, %s483
      %s486 = sphi 0, %s485
      %s500 = sphi 0, %s486
      %s506 = sphi 0, %s508
      %s509 = sphi 0, %s506
      %s510 = sphi 0, %s509
      %s526 = sphi 0, %s510
    $region4: #{pair_energies_forward.8} parent=1 // loop_header_branch
      %33 = sbr.rel (%p31) target = $region8
    $region5: #{pair_energies_forward.8} parent=1 // loop_body
      %s35 = ssub.s32 %s30, 1
      %s36 = ssub.s32 %s30, 2
      %s37 = sadd.s32 %s30, 1
      %s38 = ssub.s32 %s30, %s37
      %p39 = scmp.eq.s32.totalorder %s38, 0
      %s41 = sadd.s32 %s40, 1
      %s42 = scalar_select %p39, %s40, %s41
      %p45 = pneg %p39
      %p46 = scmp.eq.s32.totalorder %s30, 1
      %p47 = por %p45, %p46
      %p48 = scmp.ne.s32.totalorder %s40, %s43
      %p49 = scmp.eq.s32.totalorder %s30, 0
      %p50 = por %p48, %p49
      %p51 = scmp.ne.s32.totalorder %s40, %s43
      %p52 = scmp.eq.s32.totalorder %s35, 1
      %p53 = por %p51, %p52
      %p54 = scmp.ne.s32.totalorder %s43, %s44
      %p55 = scmp.eq.s32.totalorder %s35, 0
      %p56 = por %p54, %p55
      %p57 = scmp.ne.s32.totalorder %s43, %s44
      %p58 = scmp.eq.s32.totalorder %s36, 1
      %p59 = por %p57, %p58
      %p61 = scmp.ne.s32.totalorder %s44, %s60
      %p62 = scmp.eq.s32.totalorder %s36, 0
      %p63 = por %p61, %p62
      %s64 = ssub.s32 %s30, %s37
      %p65 = scmp.eq.s32.totalorder %s64, 0
      %s67 = sadd.s32 %s66, 1
      %s68 = scalar_select %p65, %s66, %s67
      %p71 = pneg %p65
      %p72 = scmp.eq.s32.totalorder %s30, 1
      %p73 = por %p71, %p72
      %p74 = scmp.ne.s32.totalorder %s66, %s69
      %p75 = scmp.eq.s32.totalorder %s30, 0
      %p76 = por %p74, %p75
      %p77 = scmp.ne.s32.totalorder %s66, %s69
      %p78 = scmp.eq.s32.totalorder %s35, 1
      %p79 = por %p77, %p78
      %p80 = scmp.ne.s32.totalorder %s69, %s70
      %p81 = scmp.eq.s32.totalorder %s35, 0
      %p82 = por %p80, %p81
      %p83 = scmp.ne.s32.totalorder %s69, %s70
      %p84 = scmp.eq.s32.totalorder %s36, 1
      %p85 = por %p83, %p84
      %p87 = scmp.ne.s32.totalorder %s70, %s86
      %p88 = scmp.eq.s32.totalorder %s36, 0
      %p89 = por %p87, %p88
      %s90 = ssub.s32 %s30, %s37
      %p91 = scmp.eq.s32.totalorder %s90, 0
      %s93 = sadd.s32 %s92, 1
      %s94 = scalar_select %p91, %s92, %s93
      %p97 = pneg %p91
      %p98 = scmp.eq.s32.totalorder %s30, 1
      %p99 = por %p97, %p98
      %p100 = scmp.ne.s32.totalorder %s92, %s95
      %p101 = scmp.eq.s32.totalorder %s30, 0
      %p102 = por %p100, %p101
      %p103 = scmp.ne.s32.totalorder %s92, %s95
      %p104 = scmp.eq.s32.totalorder %s35, 1
      %p105 = por %p103, %p104
      %p106 = scmp.ne.s32.totalorder %s95, %s96
      %p107 = scmp.eq.s32.totalorder %s35, 0
      %p108 = por %p106, %p107
      %p109 = scmp.ne.s32.totalorder %s95, %s96
      %p110 = scmp.eq.s32.totalorder %s36, 1
      %p111 = por %p109, %p110
      %p113 = scmp.ne.s32.totalorder %s96, %s112
      %p114 = scmp.eq.s32.totalorder %s36, 0
      %p115 = por %p113, %p114
      %s116 = ssub.s32 %s30, %s37
      %p117 = scmp.eq.s32.totalorder %s116, 0
      %s119 = sadd.s32 %s118, 1
      %s120 = scalar_select %p117, %s118, %s119
      %p123 = pneg %p117
      %p124 = scmp.eq.s32.totalorder %s30, 1
      %p125 = por %p123, %p124
      %p126 = scmp.ne.s32.totalorder %s118, %s121
      %p127 = scmp.eq.s32.totalorder %s30, 0
      %p128 = por %p126, %p127
      %p129 = scmp.ne.s32.totalorder %s118, %s121
      %p130 = scmp.eq.s32.totalorder %s35, 1
      %p131 = por %p129, %p130
      %p132 = scmp.ne.s32.totalorder %s121, %s122
      %p133 = scmp.eq.s32.totalorder %s35, 0
      %p134 = por %p132, %p133
      %p135 = scmp.ne.s32.totalorder %s121, %s122
      %p136 = scmp.eq.s32.totalorder %s36, 1
      %p137 = por %p135, %p136
      %p139 = scmp.ne.s32.totalorder %s122, %s138
      %p140 = scmp.eq.s32.totalorder %s36, 0
      %p141 = por %p139, %p140
      %s142 = ssub.s32 %s30, %s37
      %p143 = scmp.eq.s32.totalorder %s142, 0
      %s145 = sadd.s32 %s144, 1
      %s146 = scalar_select %p143, %s144, %s145
      %p149 = pneg %p143
      %p150 = scmp.eq.s32.totalorder %s30, 1
      %p151 = por %p149, %p150
      %p152 = scmp.ne.s32.totalorder %s144, %s147
      %p153 = scmp.eq.s32.totalorder %s30, 0
      %p154 = por %p152, %p153
      %p155 = scmp.ne.s32.totalorder %s144, %s147
      %p156 = scmp.eq.s32.totalorder %s35, 1
      %p157 = por %p155, %p156
      %p158 = scmp.ne.s32.totalorder %s147, %s148
      %p159 = scmp.eq.s32.totalorder %s35, 0
      %p160 = por %p158, %p159
      %p161 = scmp.ne.s32.totalorder %s147, %s148
      %p162 = scmp.eq.s32.totalorder %s36, 1
      %p163 = por %p161, %p162
      %p165 = scmp.ne.s32.totalorder %s148, %s164
      %p166 = scmp.eq.s32.totalorder %s36, 0
      %p167 = por %p165, %p166
      %s169 = sadd.s32 %s168, 1
      %p172 = scmp.eq.s32.totalorder %s30, 1
      %p173 = scmp.ne.s32.totalorder %s168, %s170
      %p174 = scmp.eq.s32.totalorder %s30, 0
      %p175 = por %p173, %p174
      %p176 = scmp.ne.s32.totalorder %s168, %s170
      %p177 = scmp.eq.s32.totalorder %s35, 1
      %p178 = por %p176, %p177
      %p179 = scmp.ne.s32.totalorder %s170, %s171
      %p180 = scmp.eq.s32.totalorder %s35, 0
      %p181 = por %p179, %p180
      %p182 = scmp.ne.s32.totalorder %s170, %s171
      %p183 = scmp.eq.s32.totalorder %s36, 1
      %p184 = por %p182, %p183
      %p186 = scmp.ne.s32.totalorder %s171, %s185
      %p187 = scmp.eq.s32.totalorder %s36, 0
      %p188 = por %p186, %p187
      %s190 = sadd.s32 %s189, 1
      %p193 = scmp.eq.s32.totalorder %s30, 1
      %p194 = scmp.ne.s32.totalorder %s189, %s191
      %p195 = scmp.eq.s32.totalorder %s30, 0
      %p196 = por %p194, %p195
      %p197 = scmp.ne.s32.totalorder %s189, %s191
      %p198 = scmp.eq.s32.totalorder %s35, 1
      %p199 = por %p197, %p198
      %p200 = scmp.ne.s32.totalorder %s191, %s192
      %p201 = scmp.eq.s32.totalorder %s35, 0
      %p202 = por %p200, %p201
      %p203 = scmp.ne.s32.totalorder %s191, %s192
      %p204 = scmp.eq.s32.totalorder %s36, 1
      %p205 = por %p203, %p204
      %p207 = scmp.ne.s32.totalorder %s192, %s206
      %p208 = scmp.eq.s32.totalorder %s36, 0
      %p209 = por %p207, %p208
      %s211 = sadd.s32 %s210, 1
      %p214 = scmp.eq.s32.totalorder %s30, 1
      %p215 = scmp.ne.s32.totalorder %s210, %s212
      %p216 = scmp.eq.s32.totalorder %s30, 0
      %p217 = por %p215, %p216
      %p218 = scmp.ne.s32.totalorder %s210, %s212
      %p219 = scmp.eq.s32.totalorder %s35, 1
      %p220 = por %p218, %p219
      %p221 = scmp.ne.s32.totalorder %s212, %s213
      %p222 = scmp.eq.s32.totalorder %s35, 0
      %p223 = por %p221, %p222
      %p224 = scmp.ne.s32.totalorder %s212, %s213
      %p225 = scmp.eq.s32.totalorder %s36, 1
      %p226 = por %p224, %p225
      %p228 = scmp.ne.s32.totalorder %s213, %s227
      %p229 = scmp.eq.s32.totalorder %s36, 0
      %p230 = por %p228, %p229
      %s232 = sadd.s32 %s231, 1
      %p235 = scmp.eq.s32.totalorder %s30, 1
      %p236 = scmp.ne.s32.totalorder %s231, %s233
      %p237 = scmp.eq.s32.totalorder %s30, 0
      %p238 = por %p236, %p237
      %p239 = scmp.ne.s32.totalorder %s231, %s233
      %p240 = scmp.eq.s32.totalorder %s35, 1
      %p241 = por %p239, %p240
      %p242 = scmp.ne.s32.totalorder %s233, %s234
      %p243 = scmp.eq.s32.totalorder %s35, 0
      %p244 = por %p242, %p243
      %p245 = scmp.ne.s32.totalorder %s233, %s234
      %p246 = scmp.eq.s32.totalorder %s36, 1
      %p247 = por %p245, %p246
      %p249 = scmp.ne.s32.totalorder %s234, %s248
      %p250 = scmp.eq.s32.totalorder %s36, 0
      %p251 = por %p249, %p250
      %s253 = sadd.s32 %s252, 1
      %p256 = scmp.eq.s32.totalorder %s30, 1
      %p257 = scmp.ne.s32.totalorder %s252, %s254
      %p258 = scmp.eq.s32.totalorder %s30, 0
      %p259 = por %p257, %p258
      %p260 = scmp.ne.s32.totalorder %s252, %s254
      %p261 = scmp.eq.s32.totalorder %s35, 1
      %p262 = por %p260, %p261
      %p263 = scmp.ne.s32.totalorder %s254, %s255
      %p264 = scmp.eq.s32.totalorder %s35, 0
      %p265 = por %p263, %p264
      %p266 = scmp.ne.s32.totalorder %s254, %s255
      %p267 = scmp.eq.s32.totalorder %s36, 1
      %p268 = por %p266, %p267
      %p270 = scmp.ne.s32.totalorder %s255, %s269
      %p271 = scmp.eq.s32.totalorder %s36, 0
      %p272 = por %p270, %p271
      %s274 = sadd.s32 %s273, 1
      %p277 = scmp.eq.s32.totalorder %s30, 1
      %p278 = scmp.ne.s32.totalorder %s273, %s275
      %p279 = scmp.eq.s32.totalorder %s30, 0
      %p280 = por %p278, %p279
      %p281 = scmp.ne.s32.totalorder %s273, %s275
      %p282 = scmp.eq.s32.totalorder %s35, 1
      %p283 = por %p281, %p282
      %p284 = scmp.ne.s32.totalorder %s275, %s276
      %p285 = scmp.eq.s32.totalorder %s35, 0
      %p286 = por %p284, %p285
      %p287 = scmp.ne.s32.totalorder %s275, %s276
      %p288 = scmp.eq.s32.totalorder %s36, 1
      %p289 = por %p287, %p288
      %p291 = scmp.ne.s32.totalorder %s276, %s290
      %p292 = scmp.eq.s32.totalorder %s36, 0
      %p293 = por %p291, %p292
      %s295 = sadd.s32 %s294, 1
      %p298 = scmp.eq.s32.totalorder %s30, 1
      %p299 = scmp.ne.s32.totalorder %s294, %s296
      %p300 = scmp.eq.s32.totalorder %s30, 0
      %p301 = por %p299, %p300
      %p302 = scmp.ne.s32.totalorder %s294, %s296
      %p303 = scmp.eq.s32.totalorder %s35, 1
      %p304 = por %p302, %p303
      %p305 = scmp.ne.s32.totalorder %s296, %s297
      %p306 = scmp.eq.s32.totalorder %s35, 0
      %p307 = por %p305, %p306
      %p308 = scmp.ne.s32.totalorder %s296, %s297
      %p309 = scmp.eq.s32.totalorder %s36, 1
      %p310 = por %p308, %p309
      %p312 = scmp.ne.s32.totalorder %s297, %s311
      %p313 = scmp.eq.s32.totalorder %s36, 0
      %p314 = por %p312, %p313
      %s316 = sadd.s32 %s315, 1
      %p319 = scmp.eq.s32.totalorder %s30, 1
      %p320 = scmp.ne.s32.totalorder %s315, %s317
      %p321 = scmp.eq.s32.totalorder %s30, 0
      %p322 = por %p320, %p321
      %p323 = scmp.ne.s32.totalorder %s315, %s317
      %p324 = scmp.eq.s32.totalorder %s35, 1
      %p325 = por %p323, %p324
      %p326 = scmp.ne.s32.totalorder %s317, %s318
      %p327 = scmp.eq.s32.totalorder %s35, 0
      %p328 = por %p326, %p327
      %p329 = scmp.ne.s32.totalorder %s317, %s318
      %p330 = scmp.eq.s32.totalorder %s36, 1
      %p331 = por %p329, %p330
      %p333 = scmp.ne.s32.totalorder %s318, %s332
      %p334 = scmp.eq.s32.totalorder %s36, 0
      %p335 = por %p333, %p334
      %s337 = sadd.s32 %s336, 1
      %p340 = scmp.eq.s32.totalorder %s30, 1
      %p341 = scmp.ne.s32.totalorder %s336, %s338
      %p342 = scmp.eq.s32.totalorder %s30, 0
      %p343 = por %p341, %p342
      %p344 = scmp.ne.s32.totalorder %s336, %s338
      %p345 = scmp.eq.s32.totalorder %s35, 1
      %p346 = por %p344, %p345
      %p347 = scmp.ne.s32.totalorder %s338, %s339
      %p348 = scmp.eq.s32.totalorder %s35, 0
      %p349 = por %p347, %p348
      %p350 = scmp.ne.s32.totalorder %s338, %s339
      %p351 = scmp.eq.s32.totalorder %s36, 1
      %p352 = por %p350, %p351
      %p354 = scmp.ne.s32.totalorder %s339, %s353
      %p355 = scmp.eq.s32.totalorder %s36, 0
      %p356 = por %p354, %p355
      %s358 = sadd.s32 %s357, 1
      %p361 = scmp.eq.s32.totalorder %s30, 1
      %p362 = scmp.ne.s32.totalorder %s357, %s359
      %p363 = scmp.eq.s32.totalorder %s30, 0
      %p364 = por %p362, %p363
      %p365 = scmp.ne.s32.totalorder %s357, %s359
      %p366 = scmp.eq.s32.totalorder %s35, 1
      %p367 = por %p365, %p366
      %p368 = scmp.ne.s32.totalorder %s359, %s360
      %p369 = scmp.eq.s32.totalorder %s35, 0
      %p370 = por %p368, %p369
      %p371 = scmp.ne.s32.totalorder %s359, %s360
      %p372 = scmp.eq.s32.totalorder %s36, 1
      %p373 = por %p371, %p372
      %p375 = scmp.ne.s32.totalorder %s360, %s374
      %p376 = scmp.eq.s32.totalorder %s36, 0
      %p377 = por %p375, %p376
      %s379 = sadd.s32 %s378, 1
      %p382 = scmp.eq.s32.totalorder %s30, 1
      %p383 = scmp.ne.s32.totalorder %s378, %s380
      %p384 = scmp.eq.s32.totalorder %s30, 0
      %p385 = por %p383, %p384
      %p386 = scmp.ne.s32.totalorder %s378, %s380
      %p387 = scmp.eq.s32.totalorder %s35, 1
      %p388 = por %p386, %p387
      %p389 = scmp.ne.s32.totalorder %s380, %s381
      %p390 = scmp.eq.s32.totalorder %s35, 0
      %p391 = por %p389, %p390
      %p392 = scmp.ne.s32.totalorder %s380, %s381
      %p393 = scmp.eq.s32.totalorder %s36, 1
      %p394 = por %p392, %p393
      %p396 = scmp.ne.s32.totalorder %s381, %s395
      %p397 = scmp.eq.s32.totalorder %s36, 0
      %p398 = por %p396, %p397
      %s400 = sadd.s32 %s399, 1
      %p403 = scmp.eq.s32.totalorder %s30, 1
      %p404 = scmp.ne.s32.totalorder %s399, %s401
      %p405 = scmp.eq.s32.totalorder %s30, 0
      %p406 = por %p404, %p405
      %p407 = scmp.ne.s32.totalorder %s399, %s401
      %p408 = scmp.eq.s32.totalorder %s35, 1
      %p409 = por %p407, %p408
      %p410 = scmp.ne.s32.totalorder %s401, %s402
      %p411 = scmp.eq.s32.totalorder %s35, 0
      %p412 = por %p410, %p411
      %p413 = scmp.ne.s32.totalorder %s401, %s402
      %p414 = scmp.eq.s32.totalorder %s36, 1
      %p415 = por %p413, %p414
      %p417 = scmp.ne.s32.totalorder %s402, %s416
      %p418 = scmp.eq.s32.totalorder %s36, 0
      %p419 = por %p417, %p418
      %s421 = sadd.s32 %s420, 1
      %p424 = scmp.eq.s32.totalorder %s30, 1
      %p425 = scmp.ne.s32.totalorder %s420, %s422
      %p426 = scmp.eq.s32.totalorder %s30, 0
      %p427 = por %p425, %p426
      %p428 = scmp.ne.s32.totalorder %s420, %s422
      %p429 = scmp.eq.s32.totalorder %s35, 1
      %p430 = por %p428, %p429
      %p431 = scmp.ne.s32.totalorder %s422, %s423
      %p432 = scmp.eq.s32.totalorder %s35, 0
      %p433 = por %p431, %p432
      %p434 = scmp.ne.s32.totalorder %s422, %s423
      %p435 = scmp.eq.s32.totalorder %s36, 1
      %p436 = por %p434, %p435
      %p438 = scmp.ne.s32.totalorder %s423, %s437
      %p439 = scmp.eq.s32.totalorder %s36, 0
      %p440 = por %p438, %p439
      %s442 = sadd.s32 %s441, 1
      %p445 = scmp.eq.s32.totalorder %s30, 1
      %p446 = scmp.ne.s32.totalorder %s441, %s443
      %p447 = scmp.eq.s32.totalorder %s30, 0
      %p448 = por %p446, %p447
      %p449 = scmp.ne.s32.totalorder %s441, %s443
      %p450 = scmp.eq.s32.totalorder %s35, 1
      %p451 = por %p449, %p450
      %p452 = scmp.ne.s32.totalorder %s443, %s444
      %p453 = scmp.eq.s32.totalorder %s35, 0
      %p454 = por %p452, %p453
      %p455 = scmp.ne.s32.totalorder %s443, %s444
      %p456 = scmp.eq.s32.totalorder %s36, 1
      %p457 = por %p455, %p456
      %p459 = scmp.ne.s32.totalorder %s444, %s458
      %p460 = scmp.eq.s32.totalorder %s36, 0
      %p461 = por %p459, %p460
      %s463 = sadd.s32 %s462, 1
      %p466 = scmp.eq.s32.totalorder %s30, 1
      %p467 = scmp.ne.s32.totalorder %s462, %s464
      %p468 = scmp.eq.s32.totalorder %s30, 0
      %p469 = por %p467, %p468
      %p470 = scmp.ne.s32.totalorder %s462, %s464
      %p471 = scmp.eq.s32.totalorder %s35, 1
      %p472 = por %p470, %p471
      %p473 = scmp.ne.s32.totalorder %s464, %s465
      %p474 = scmp.eq.s32.totalorder %s35, 0
      %p475 = por %p473, %p474
      %p476 = scmp.ne.s32.totalorder %s464, %s465
      %p477 = scmp.eq.s32.totalorder %s36, 1
      %p478 = por %p476, %p477
      %p480 = scmp.ne.s32.totalorder %s465, %s479
      %p481 = scmp.eq.s32.totalorder %s36, 0
      %p482 = por %p480, %p481
      %s484 = sadd.s32 %s483, 1
      %p487 = scmp.eq.s32.totalorder %s30, 1
      %p488 = scmp.ne.s32.totalorder %s483, %s485
      %p489 = scmp.eq.s32.totalorder %s30, 0
      %p490 = por %p488, %p489
      %p491 = scmp.ne.s32.totalorder %s483, %s485
      %p492 = scmp.eq.s32.totalorder %s35, 1
      %p493 = por %p491, %p492
      %p494 = scmp.ne.s32.totalorder %s485, %s486
      %p495 = scmp.eq.s32.totalorder %s35, 0
      %p496 = por %p494, %p495
      %p497 = scmp.ne.s32.totalorder %s485, %s486
      %p498 = scmp.eq.s32.totalorder %s36, 1
      %p499 = por %p497, %p498
      %p501 = scmp.ne.s32.totalorder %s486, %s500
      %p502 = scmp.eq.s32.totalorder %s36, 0
      %p503 = por %p501, %p502
      %s504 = ssub.s32 %s30, %s37
      %p505 = scmp.eq.s32.totalorder %s504, 0
      %s507 = sadd.s32 %s506, 1
      %s508 = scalar_select %p505, %s506, %s507
      %p511 = pneg %p505
      %p512 = scmp.eq.s32.totalorder %s30, 1
      %p513 = por %p511, %p512
      %p514 = scmp.ne.s32.totalorder %s506, %s509
      %p515 = scmp.eq.s32.totalorder %s30, 0
      %p516 = por %p514, %p515
      %p517 = scmp.ne.s32.totalorder %s506, %s509
      %p518 = scmp.eq.s32.totalorder %s35, 1
      %p519 = por %p517, %p518
      %p520 = scmp.ne.s32.totalorder %s509, %s510
      %p521 = scmp.eq.s32.totalorder %s35, 0
      %p522 = por %p520, %p521
      %p523 = scmp.ne.s32.totalorder %s509, %s510
      %p524 = scmp.eq.s32.totalorder %s36, 1
      %p525 = por %p523, %p524
      %p527 = scmp.ne.s32.totalorder %s510, %s526
      %p528 = scmp.eq.s32.totalorder %s36, 0
      %p529 = por %p527, %p528
      %p530 = scmp.le.s32.totalorder 1, %s30
      %p531 = scmp.lt.s32.totalorder %s30, 3
      %p532 = pnand %p530, %p531
      %p533 = pneg %p532
      // Predicated region
      $region9: #{pair_energies_forward.8} parent=5 // pred_check
        _
      $region10: #{pair_energies_forward.8} parent=5 // pred_check_branch
        %535 = sbr.rel (%p532) target = $region12
      $region11: #{pair_energies_forward.8} parent=5 // pred_region
        %s536 = ssub.s32 %s30, 1
        // Predicated region
        $region13: #{pair_energies_forward.8} parent=11 // pred_check
          %p537 = pneg %p181
        $region14: #{pair_energies_forward.8} parent=11 // pred_check_branch
          %539 = sbr.rel (%p537) target = $region16
        $region15: #{pair_energies_forward.8} parent=11 // pred_region
          _
        $region16: #{pair_energies_forward.8} parent=11 // pred_fallthru
          _
        // Predicated region
        $region17: #{pair_energies_forward.8} parent=11 // pred_check
          %p540 = pneg %p202
        $region18: #{pair_energies_forward.8} parent=11 // pred_check_branch
          %542 = sbr.rel (%p540) target = $region20
        $region19: #{pair_energies_forward.8} parent=11 // pred_region
          _
        $region20: #{pair_energies_forward.8} parent=11 // pred_fallthru
          _
        // Predicated region
        $region21: #{pair_energies_forward.8} parent=11 // pred_check
          %p543 = pneg %p223
        $region22: #{pair_energies_forward.8} parent=11 // pred_check_branch
          %545 = sbr.rel (%p543) target = $region24
        $region23: #{pair_energies_forward.8} parent=11 // pred_region
          _
        $region24: #{pair_energies_forward.8} parent=11 // pred_fallthru
          _
        // Predicated region
        $region25: #{pair_energies_forward.8} parent=11 // pred_check
          %p546 = pneg %p244
        $region26: #{pair_energies_forward.8} parent=11 // pred_check_branch
          %548 = sbr.rel (%p546) target = $region28
        $region27: #{pair_energies_forward.8} parent=11 // pred_region
          _
        $region28: #{pair_energies_forward.8} parent=11 // pred_fallthru
          _
        // Predicated region
        $region29: #{pair_energies_forward.8} parent=11 // pred_check
          %p549 = pneg %p265
        $region30: #{pair_energies_forward.8} parent=11 // pred_check_branch
          %551 = sbr.rel (%p549) target = $region32
        $region31: #{pair_energies_forward.8} parent=11 // pred_region
          _
        $region32: #{pair_energies_forward.8} parent=11 // pred_fallthru
          _
        // Predicated region
        $region33: #{pair_energies_forward.8} parent=11 // pred_check
          %p552 = pneg %p286
        $region34: #{pair_energies_forward.8} parent=11 // pred_check_branch
          %554 = sbr.rel (%p552) target = $region36
        $region35: #{pair_energies_forward.8} parent=11 // pred_region
          _
        $region36: #{pair_energies_forward.8} parent=11 // pred_fallthru
          _
        // Predicated region
        $region37: #{pair_energies_forward.8} parent=11 // pred_check
          %p555 = pneg %p307
        $region38: #{pair_energies_forward.8} parent=11 // pred_check_branch
          %557 = sbr.rel (%p555) target = $region40
        $region39: #{pair_energies_forward.8} parent=11 // pred_region
          _
        $region40: #{pair_energies_forward.8} parent=11 // pred_fallthru
          _
        // Predicated region
        $region41: #{pair_energies_forward.8} parent=11 // pred_check
          %p558 = pneg %p328
        $region42: #{pair_energies_forward.8} parent=11 // pred_check_branch
          %560 = sbr.rel (%p558) target = $region44
        $region43: #{pair_energies_forward.8} parent=11 // pred_region
          _
        $region44: #{pair_energies_forward.8} parent=11 // pred_fallthru
          _
        // Predicated region
        $region45: #{pair_energies_forward.8} parent=11 // pred_check
          %p561 = pneg %p349
        $region46: #{pair_energies_forward.8} parent=11 // pred_check_branch
          %563 = sbr.rel (%p561) target = $region48
        $region47: #{pair_energies_forward.8} parent=11 // pred_region
          _
        $region48: #{pair_energies_forward.8} parent=11 // pred_fallthru
          _
        // Predicated region
        $region49: #{pair_energies_forward.8} parent=11 // pred_check
          %p564 = pneg %p370
        $region50: #{pair_energies_forward.8} parent=11 // pred_check_branch
          %566 = sbr.rel (%p564) target = $region52
        $region51: #{pair_energies_forward.8} parent=11 // pred_region
          _
        $region52: #{pair_energies_forward.8} parent=11 // pred_fallthru
          _
        // Predicated region
        $region53: #{pair_energies_forward.8} parent=11 // pred_check
          %p567 = pneg %p391
        $region54: #{pair_energies_forward.8} parent=11 // pred_check_branch
          %569 = sbr.rel (%p567) target = $region56
        $region55: #{pair_energies_forward.8} parent=11 // pred_region
          _
        $region56: #{pair_energies_forward.8} parent=11 // pred_fallthru
          _
        // Predicated region
        $region57: #{pair_energies_forward.8} parent=11 // pred_check
          %p570 = pneg %p412
        $region58: #{pair_energies_forward.8} parent=11 // pred_check_branch
          %572 = sbr.rel (%p570) target = $region60
        $region59: #{pair_energies_forward.8} parent=11 // pred_region
          _
        $region60: #{pair_energies_forward.8} parent=11 // pred_fallthru
          _
        // Predicated region
        $region61: #{pair_energies_forward.8} parent=11 // pred_check
          %p573 = pneg %p433
        $region62: #{pair_energies_forward.8} parent=11 // pred_check_branch
          %575 = sbr.rel (%p573) target = $region64
        $region63: #{pair_energies_forward.8} parent=11 // pred_region
          _
        $region64: #{pair_energies_forward.8} parent=11 // pred_fallthru
          _
        // Predicated region
        $region65: #{pair_energies_forward.8} parent=11 // pred_check
          %p576 = pneg %p454
        $region66: #{pair_energies_forward.8} parent=11 // pred_check_branch
          %578 = sbr.rel (%p576) target = $region68
        $region67: #{pair_energies_forward.8} parent=11 // pred_region
          _
        $region68: #{pair_energies_forward.8} parent=11 // pred_fallthru
          _
        // Predicated region
        $region69: #{pair_energies_forward.8} parent=11 // pred_check
          %p579 = pneg %p475
        $region70: #{pair_energies_forward.8} parent=11 // pred_check_branch
          %581 = sbr.rel (%p579) target = $region72
        $region71: #{pair_energies_forward.8} parent=11 // pred_region
          _
        $region72: #{pair_energies_forward.8} parent=11 // pred_fallthru
          _
        // Predicated region
        $region73: #{pair_energies_forward.8} parent=11 // pred_check
          %p582 = pneg %p496
        $region74: #{pair_energies_forward.8} parent=11 // pred_check_branch
          %584 = sbr.rel (%p582) target = $region76
        $region75: #{pair_energies_forward.8} parent=11 // pred_region
          _
        $region76: #{pair_energies_forward.8} parent=11 // pred_fallthru
          _
      $region12: #{pair_energies_forward.8} parent=5 // pred_fallthru
        _
      %p585 = scmp.lt.s32.totalorder %s30, 2
      // Predicated region
      $region77: #{pair_energies_forward.8} parent=5 // pred_check
        %p586 = pneg %p585
      $region78: #{pair_energies_forward.8} parent=5 // pred_check_branch
        %588 = sbr.rel (%p586) target = $region80
      $region79: #{pair_energies_forward.8} parent=5 // pred_region
        // Predicated region
        $region81: #{pair_energies_forward.8} parent=79 // pred_check
          %p589 = pneg %p50
        $region82: #{pair_energies_forward.8} parent=79 // pred_check_branch
          %591 = sbr.rel (%p589) target = $region84
        $region83: #{pair_energies_forward.8} parent=79 // pred_region
          %p592 = scmp.lt.s32.totalorder %s30, 1
          %s593 = scalar_select %p592, %s30, 1
          %s594 = smul.addr %s593, 8
          %s595 = scalar_lea.vmem %s0, %s594
        $region84: #{pair_energies_forward.8} parent=79 // pred_fallthru
          _
        // Predicated region
        $region85: #{pair_energies_forward.8} parent=79 // pred_check
          %p596 = pneg %p76
        $region86: #{pair_energies_forward.8} parent=79 // pred_check_branch
          %598 = sbr.rel (%p596) target = $region88
        $region87: #{pair_energies_forward.8} parent=79 // pred_region
          %s599 = smul.u32 8, %s30
          %p600 = scmp.lt.s32.totalorder %s599, 15
          %s601 = scalar_select %p600, %s599, 15
          %s602 = smul.addr %s601, 8
          %s603 = scalar_lea.vmem %s1, %s602
          %s604 = smul.u32 8, %s30
        $region88: #{pair_energies_forward.8} parent=79 // pred_fallthru
          _
        // Predicated region
        $region89: #{pair_energies_forward.8} parent=79 // pred_check
          %p605 = pneg %p102
        $region90: #{pair_energies_forward.8} parent=79 // pred_check_branch
          %607 = sbr.rel (%p605) target = $region92
        $region91: #{pair_energies_forward.8} parent=79 // pred_region
          %s608 = smul.u32 8, %s30
          %p609 = scmp.lt.s32.totalorder %s608, 15
          %s610 = scalar_select %p609, %s608, 15
          %s611 = smul.addr %s610, 8
          %s612 = scalar_lea.vmem %s2, %s611
          %s613 = smul.u32 8, %s30
        $region92: #{pair_energies_forward.8} parent=79 // pred_fallthru
          _
        // Predicated region
        $region93: #{pair_energies_forward.8} parent=79 // pred_check
          %p614 = pneg %p128
        $region94: #{pair_energies_forward.8} parent=79 // pred_check_branch
          %616 = sbr.rel (%p614) target = $region96
        $region95: #{pair_energies_forward.8} parent=79 // pred_region
          %p617 = scmp.lt.s32.totalorder %s30, 1
          %s618 = scalar_select %p617, %s30, 1
          %s619 = smul.addr %s618, 8
          %s620 = scalar_lea.vmem %s3, %s619
        $region96: #{pair_energies_forward.8} parent=79 // pred_fallthru
          _
        // Predicated region
        $region97: #{pair_energies_forward.8} parent=79 // pred_check
          %p621 = pneg %p154
        $region98: #{pair_energies_forward.8} parent=79 // pred_check_branch
          %623 = sbr.rel (%p621) target = $region100
        $region99: #{pair_energies_forward.8} parent=79 // pred_region
          %p624 = scmp.lt.s32.totalorder %s30, 1
          %s625 = scalar_select %p624, %s30, 1
          %s626 = smul.addr %s625, 8
          %s627 = scalar_lea.vmem %s4, %s626
        $region100: #{pair_energies_forward.8} parent=79 // pred_fallthru
          _
      $region80: #{pair_energies_forward.8} parent=5 // pred_fallthru
        _
      %p628 = scmp.le.s32.totalorder 1, %s30
      %p629 = scmp.lt.s32.totalorder %s30, 3
      %p630 = pnand %p628, %p629
      %p631 = pneg %p630
      // Predicated region
      $region101: #{pair_energies_forward.8} parent=5 // pred_check
        _
      $region102: #{pair_energies_forward.8} parent=5 // pred_check_branch
        %633 = sbr.rel (%p630) target = $region104
      $region103: #{pair_energies_forward.8} parent=5 // pred_region
        %s634 = ssub.s32 %s30, 1
        %p635 = scmp.lt.s32.totalorder %s35, 1
        %s636 = scalar_select %p635, %s35, 1
        %s637 = smul.addr %s636, 8
        %s638 = scalar_lea.vmem %s0, %s637
        %p639 = pneg %p56
        %p640 = pneg %p53
        %s641 = smul.u32 8, %s35
        %p642 = scmp.lt.s32.totalorder %s641, 15
        %s643 = scalar_select %p642, %s641, 15
        %s644 = smul.addr %s643, 8
        %s645 = scalar_lea.vmem %s1, %s644
        %p646 = pneg %p82
        %p647 = pneg %p79
        %s648 = smul.u32 8, %s35
        %p649 = scmp.lt.s32.totalorder %s648, 15
        %s650 = scalar_select %p649, %s648, 15
        %s651 = smul.addr %s650, 8
        %s652 = scalar_lea.vmem %s2, %s651
        %p653 = pneg %p108
        %p654 = pneg %p105
        %p655 = scmp.lt.s32.totalorder %s35, 1
        %s656 = scalar_select %p655, %s35, 1
        %s657 = smul.addr %s656, 8
        %s658 = scalar_lea.vmem %s3, %s657
        %p659 = pneg %p134
        %p660 = pneg %p131
        %p661 = scmp.lt.s32.totalorder %s35, 1
        %s662 = scalar_select %p661, %s35, 1
        %s663 = smul.addr %s662, 8
        %s664 = scalar_lea.vmem %s4, %s663
        %p665 = pneg %p160
        %p666 = pneg %p157
        %p667 = pneg %p181
        %p668 = pneg %p178
        %p669 = pneg %p202
        %p670 = pneg %p199
        %p671 = pneg %p223
        %p672 = pneg %p220
        %p673 = pneg %p244
        %p674 = pneg %p241
        %p675 = pneg %p265
        %p676 = pneg %p262
        %p677 = pneg %p286
        %p678 = pneg %p283
        %p679 = pneg %p307
        %p680 = pneg %p304
        %p681 = pneg %p328
        %p682 = pneg %p325
        %p683 = pneg %p349
        %p684 = pneg %p346
        %p685 = pneg %p370
        %p686 = pneg %p367
        %p687 = pneg %p391
        %p688 = pneg %p388
        %p689 = pneg %p412
        %p690 = pneg %p409
        %p691 = pneg %p433
        %p692 = pneg %p430
        %p693 = pneg %p454
        %p694 = pneg %p451
        %p695 = pneg %p475
        %p696 = pneg %p472
        %p697 = pneg %p496
        %p698 = pneg %p493
        %p699 = pneg %p522
        %p700 = pneg %p519
        %s701 = sand.u32 %s509, 1
        %s702 = scalar_lea.sflag [#allocation3], %s701
        %s703 = sand.u32 %s509, 1
        %s704 = smul.addr %s703, 8
        %s705 = scalar_lea.vmem [#allocation2], %s704
        %p706 = scmp.lt.s32.totalorder %s35, 1
        %s707 = scalar_select %p706, %s35, 1
        %s708 = smul.addr %s707, 8
        %s709 = scalar_lea.vmem %s0, %s708
        %s710 = smul.u32 8, %s35
        %p711 = scmp.lt.s32.totalorder %s710, 15
        %s712 = scalar_select %p711, %s710, 15
        %s713 = smul.addr %s712, 8
        %s714 = scalar_lea.vmem %s1, %s713
        %s715 = smul.u32 8, %s35
        %s716 = smul.u32 8, %s35
        %p717 = scmp.lt.s32.totalorder %s716, 15
        %s718 = scalar_select %p717, %s716, 15
        %s719 = smul.addr %s718, 8
        %s720 = scalar_lea.vmem %s2, %s719
        %s721 = smul.u32 8, %s35
        %p722 = scmp.lt.s32.totalorder %s35, 1
        %s723 = scalar_select %p722, %s35, 1
        %s724 = smul.addr %s723, 8
        %s725 = scalar_lea.vmem %s3, %s724
        %p726 = scmp.lt.s32.totalorder %s35, 1
        %s727 = scalar_select %p726, %s35, 1
        %s728 = smul.addr %s727, 8
        %s729 = scalar_lea.vmem %s4, %s728
        %v731 = vld [vmem:[%s709] sm:$0xff]
        %v732 = vld [vmem:[%s714] sm:$0xff]
        %v733 = vld [vmem:[%s714 + $0x8] sm:$0xff]
        %v734 = vld [vmem:[%s714 + $0x10] sm:$0xff]
        %v735 = vld [vmem:[%s714 + $0x18] sm:$0xff]
        %v736 = vld [vmem:[%s714 + $0x20] sm:$0xff]
        %v737 = vld [vmem:[%s714 + $0x28] sm:$0xff]
        %v738 = vld [vmem:[%s714 + $0x30] sm:$0xff]
        %v739 = vld [vmem:[%s714 + $0x38] sm:$0xff]
        %v740 = vld [vmem:[%s5] sm:$0xf]
        %v741 = vld [vmem:[%s5 + $0x4] sm:$0xf]
        %v742 = vld [vmem:[%s5 + $0x8] sm:$0xf]
        %v743 = vld [vmem:[%s5 + $0xc] sm:$0xf]
        %v744 = vpack.c.bf16 %v733, %v732
        %v745 = vpack.c.bf16 %v735, %v734
        %v746 = vpack.c.bf16 %v737, %v736
        %v747 = vpack.c.bf16 %v739, %v738
        %v748 = vld [vmem:[%s720] sm:$0xff]
        %v749 = vld [vmem:[%s720 + $0x8] sm:$0xff]
        %v750 = vld [vmem:[%s720 + $0x10] sm:$0xff]
        %v751 = vld [vmem:[%s720 + $0x18] sm:$0xff]
        %v752 = vld [vmem:[%s720 + $0x20] sm:$0xff]
        %v753 = vld [vmem:[%s720 + $0x28] sm:$0xff]
        %v754 = vld [vmem:[%s720 + $0x30] sm:$0xff]
        %v755 = vld [vmem:[%s720 + $0x38] sm:$0xff]
        %v756 = vld [vmem:[%s7] sm:$0xf]
        %v757 = vld [vmem:[%s7 + $0x4] sm:$0xf]
        %v758 = vld [vmem:[%s7 + $0x8] sm:$0xf]
        %v759 = vld [vmem:[%s7 + $0xc] sm:$0xf]
        %v760 = vpack.c.bf16 %v749, %v748
        %v761 = vpack.c.bf16 %v751, %v750
        %v762 = vpack.c.bf16 %v753, %v752
        %v763 = vpack.c.bf16 %v755, %v754
        %v768 = vunpack.c.l.b16 %v756
        %v769 = vunpack.c.l.b16 %v757
        %v770 = vunpack.c.l.b16 %v758
        %v771 = vunpack.c.l.b16 %v759
        %v772 = vpack.c.b16 %v769, %v768
        %v773 = vpack.c.b16 %v771, %v770
        %vm776 = vcmask 261120
        %v778 = vsel %vm776, %v760, 0
        %v781 = vsel %vm776, %v761, 0
        %v784 = vsel %vm776, %v762, 0
        %v787 = vsel %vm776, %v763, 0
        %789 = vmatprep.subr.bf16.mxu0 0
        %790 = vmatpush1.bf16.msra.mxu0 %v772
        %791 = vmatprep.subr.bf16.mxu0 0
        %792 = vmatpush1.bf16.msra.mxu0 %v773
        %793 = vmatprep.subr.bf16.mxu0 0
        %794 = vmatpush1.bf16.msra.mxu0 0
        %795 = vmatprep.subr.bf16.mxu0 0
        %796 = vmatpush1.bf16.msra.mxu0 0
        %797 = vmatprep.subr.bf16.mxu0 0
        %798 = vmatpush1.bf16.msra.mxu0 0
        %799 = vmatprep.subr.bf16.mxu0 0
        %800 = vmatpush1.bf16.msra.mxu0 0
        %801 = vmatprep.subr.bf16.mxu0 0
        %802 = vmatpush1.bf16.msra.mxu0 0
        %803 = vmatprep.subr.bf16.mxu0 0
        %804 = vmatpush1.bf16.msra.mxu0 0
        %805 = vmatprep.subr.bf16.mxu0 0
        %806 = vmatpush1.bf16.msra.mxu0 0
        %807 = vmatprep.subr.bf16.mxu0 0
        %808 = vmatpush1.bf16.msra.mxu0 0
        %809 = vmatprep.subr.bf16.mxu0 0
        %810 = vmatpush1.bf16.msra.mxu0 0
        %811 = vmatprep.subr.bf16.mxu0 0
        %812 = vmatpush1.bf16.msra.mxu0 0
        %813 = vmatprep.subr.bf16.mxu0 0
        %814 = vmatpush1.bf16.msra.mxu0 0
        %815 = vmatprep.subr.bf16.mxu0 0
        %816 = vmatpush1.bf16.msra.mxu0 0
        %817 = vmatprep.subr.bf16.mxu0 0
        %818 = vmatpush1.bf16.msra.mxu0 0
        %819 = vmatprep.subr.bf16.mxu0 0
        %820 = vmatpush1.bf16.msra.mxu0 0
        %821 = vmatprep.mubr.bf16.mxu0 0
        %822 = vmatmul.mubr.bf16.gmra.mrb[0].mxu0 %v778
        %v823 = vpop.f32.mrb[0].mxu0
        %v824 = vadd.f32 0.0, %v823
        %v825 = vpop.f32.mrb[0].mxu0
        %v826 = vpop.f32.mrb[0].mxu0
        %v827 = vadd.f32 0.0, %v826
        %v828 = vpop.f32.mrb[0].mxu0
        %829 = vmatprep.mubr.bf16.mxu0 0
        %830 = vmatmul.mubr.bf16.gmra.mrb[0].mxu0 %v781
        %v831 = vpop.f32.mrb[0].mxu0
        %v832 = vadd.f32 0.0, %v831
        %v833 = vpop.f32.mrb[0].mxu0
        %v834 = vpop.f32.mrb[0].mxu0
        %v835 = vadd.f32 0.0, %v834
        %v836 = vpop.f32.mrb[0].mxu0
        %837 = vmatprep.mubr.bf16.mxu0 0
        %838 = vmatmul.mubr.bf16.gmra.mrb[0].mxu0 %v784
        %v839 = vpop.f32.mrb[0].mxu0
        %v840 = vadd.f32 0.0, %v839
        %v841 = vpop.f32.mrb[0].mxu0
        %v842 = vpop.f32.mrb[0].mxu0
        %v843 = vadd.f32 0.0, %v842
        %v844 = vpop.f32.mrb[0].mxu0
        %845 = vmatprep.mubr.bf16.mxu0 0
        %846 = vmatmul.mubr.bf16.gmra.mrb[0].mxu0 %v787
        %v847 = vpop.f32.mrb[0].mxu0
        %v848 = vadd.f32 0.0, %v847
        %v849 = vpop.f32.mrb[0].mxu0
        %v850 = vpop.f32.mrb[0].mxu0
        %v851 = vadd.f32 0.0, %v850
        %v852 = vpop.f32.mrb[0].mxu0
        %853 = vdwg.mxu0
        %v858 = vunpack.c.l.b16 %v740
        %v859 = vunpack.c.l.b16 %v741
        %v860 = vunpack.c.l.b16 %v742
        %v861 = vunpack.c.l.b16 %v743
        %v862 = vpack.c.b16 %v859, %v858
        %v863 = vpack.c.b16 %v861, %v860
        %v867 = vsel %vm776, %v744, 0
        %v870 = vsel %vm776, %v745, 0
        %v873 = vsel %vm776, %v746, 0
        %v876 = vsel %vm776, %v747, 0
        %878 = vmatprep.subr.bf16.mxu0 0
        %879 = vmatpush1.bf16.msra.mxu0 %v862
        %880 = vmatprep.subr.bf16.mxu0 0
        %881 = vmatpush1.bf16.msra.mxu0 %v863
        %882 = vmatprep.subr.bf16.mxu0 0
        %883 = vmatpush1.bf16.msra.mxu0 0
        %884 = vmatprep.subr.bf16.mxu0 0
        %885 = vmatpush1.bf16.msra.mxu0 0
        %886 = vmatprep.subr.bf16.mxu0 0
        %887 = vmatpush1.bf16.msra.mxu0 0
        %888 = vmatprep.subr.bf16.mxu0 0
        %889 = vmatpush1.bf16.msra.mxu0 0
        %890 = vmatprep.subr.bf16.mxu0 0
        %891 = vmatpush1.bf16.msra.mxu0 0
        %892 = vmatprep.subr.bf16.mxu0 0
        %893 = vmatpush1.bf16.msra.mxu0 0
        %894 = vmatprep.subr.bf16.mxu0 0
        %895 = vmatpush1.bf16.msra.mxu0 0
        %896 = vmatprep.subr.bf16.mxu0 0
        %897 = vmatpush1.bf16.msra.mxu0 0
        %898 = vmatprep.subr.bf16.mxu0 0
        %899 = vmatpush1.bf16.msra.mxu0 0
        %900 = vmatprep.subr.bf16.mxu0 0
        %901 = vmatpush1.bf16.msra.mxu0 0
        %902 = vmatprep.subr.bf16.mxu0 0
        %903 = vmatpush1.bf16.msra.mxu0 0
        %904 = vmatprep.subr.bf16.mxu0 0
        %905 = vmatpush1.bf16.msra.mxu0 0
        %906 = vmatprep.subr.bf16.mxu0 0
        %907 = vmatpush1.bf16.msra.mxu0 0
        %908 = vmatprep.subr.bf16.mxu0 0
        %909 = vmatpush1.bf16.msra.mxu0 0
        %910 = vmatprep.mubr.bf16.mxu0 0
        %911 = vmatmul.mubr.bf16.gmra.mrb[0].mxu0 %v867
        %v912 = vpop.f32.mrb[0].mxu0
        %v913 = vadd.f32 %v824, %v912
        %v914 = vpop.f32.mrb[0].mxu0
        %v915 = vpop.f32.mrb[0].mxu0
        %v916 = vadd.f32 %v827, %v915
        %v917 = vpop.f32.mrb[0].mxu0
        %918 = vmatprep.mubr.bf16.mxu0 0
        %919 = vmatmul.mubr.bf16.gmra.mrb[0].mxu0 %v870
        %v920 = vpop.f32.mrb[0].mxu0
        %v921 = vadd.f32 %v832, %v920
        %v922 = vpop.f32.mrb[0].mxu0
        %v923 = vpop.f32.mrb[0].mxu0
        %v924 = vadd.f32 %v835, %v923
        %v925 = vpop.f32.mrb[0].mxu0
        %926 = vmatprep.mubr.bf16.mxu0 0
        %927 = vmatmul.mubr.bf16.gmra.mrb[0].mxu0 %v873
        %v928 = vpop.f32.mrb[0].mxu0
        %v929 = vadd.f32 %v840, %v928
        %v930 = vpop.f32.mrb[0].mxu0
        %v931 = vpop.f32.mrb[0].mxu0
        %v932 = vadd.f32 %v843, %v931
        %v933 = vpop.f32.mrb[0].mxu0
        %934 = vmatprep.mubr.bf16.mxu0 0
        %935 = vmatmul.mubr.bf16.gmra.mrb[0].mxu0 %v876
        %v936 = vpop.f32.mrb[0].mxu0
        %v937 = vadd.f32 %v848, %v936
        %v938 = vpop.f32.mrb[0].mxu0
        %v939 = vpop.f32.mrb[0].mxu0
        %v940 = vadd.f32 %v851, %v939
        %v941 = vpop.f32.mrb[0].mxu0
        %942 = vdwg.mxu0
        %v943 = vld [vmem:[%s8] sm:$0x1]
        %v945 = vlaneseq
        %v946 = vshrl.u32 %v945, 7
        %v947 = vsub.s32 0, %v946
        %v948 = vrot.slane %v943, %v947
        %v950 = vadd.f32 %v913, %v948
        %v951 = vadd.f32 %v916, %v948
        %v952 = vadd.f32 %v921, %v948
        %v953 = vadd.f32 %v924, %v948
        %v954 = vadd.f32 %v929, %v948
        %v955 = vadd.f32 %v932, %v948
        %v956 = vadd.f32 %v937, %v948
        %v957 = vadd.f32 %v940, %v948
        %v958 = vld [vmem:[%s6] sm:$0xf]
        %v959 = vld [vmem:[%s6 + $0x4] sm:$0xf]
        %v960 = vld [vmem:[%s6 + $0x8] sm:$0xf]
        %v961 = vld [vmem:[%s6 + $0xc] sm:$0xf]
        %v962 = vpack.c.bf16 %v731, %v731
        %v967 = vunpack.c.l.b16 %v958
        %v968 = vunpack.c.l.b16 %v959
        %v969 = vunpack.c.l.b16 %v960
        %v970 = vunpack.c.l.b16 %v961
        %v971 = vpack.c.b16 %v968, %v967
        %v972 = vpack.c.b16 %v970, %v969
        %v976 = vsel %vm776, %v962, 0
        %978 = vmatprep.subr.bf16.mxu0 0
        %979 = vmatpush1.bf16.msra.mxu0 %v971
        %980 = vmatprep.subr.bf16.mxu0 0
        %981 = vmatpush1.bf16.msra.mxu0 %v972
        %982 = vmatprep.subr.bf16.mxu0 0
        %983 = vmatpush1.bf16.msra.mxu0 0
        %984 = vmatprep.subr.bf16.mxu0 0
        %985 = vmatpush1.bf16.msra.mxu0 0
        %986 = vmatprep.subr.bf16.mxu0 0
        %987 = vmatpush1.bf16.msra.mxu0 0
        %988 = vmatprep.subr.bf16.mxu0 0
        %989 = vmatpush1.bf16.msra.mxu0 0
        %990 = vmatprep.subr.bf16.mxu0 0
        %991 = vmatpush1.bf16.msra.mxu0 0
        %992 = vmatprep.subr.bf16.mxu0 0
        %993 = vmatpush1.bf16.msra.mxu0 0
        %994 = vmatprep.subr.bf16.mxu0 0
        %995 = vmatpush1.bf16.msra.mxu0 0
        %996 = vmatprep.subr.bf16.mxu0 0
        %997 = vmatpush1.bf16.msra.mxu0 0
        %998 = vmatprep.subr.bf16.mxu0 0
        %999 = vmatpush1.bf16.msra.mxu0 0
        %1000 = vmatprep.subr.bf16.mxu0 0
        %1001 = vmatpush1.bf16.msra.mxu0 0
        %1002 = vmatprep.subr.bf16.mxu0 0
        %1003 = vmatpush1.bf16.msra.mxu0 0
        %1004 = vmatprep.subr.bf16.mxu0 0
        %1005 = vmatpush1.bf16.msra.mxu0 0
        %1006 = vmatprep.subr.bf16.mxu0 0
        %1007 = vmatpush1.bf16.msra.mxu0 0
        %1008 = vmatprep.subr.bf16.mxu0 0
        %1009 = vmatpush1.bf16.msra.mxu0 0
        %1010 = vmatprep.mubr.bf16.mxu0 0
        %1011 = vmatmul.mubr.bf16.gmra.mrb[0].mxu0 %v976
        %v1012 = vpop.f32.mrb[0].mxu0
        %v1013 = vadd.f32 0.0, %v1012
        %v1014 = vpop.f32.mrb[0].mxu0
        %v1015 = vpop.f32.mrb[0].mxu0
        %v1016 = vpop.f32.mrb[0].mxu0
        %1017 = vdwg.mxu0
        %v1019 = vcombine.high %v1013, %v1013
        %v1021 = vunpack.c.l.s4 1966171168
        %v1022 = vunpack.c.0.s8 %v1021
        %v1023 = vlaneseq
        %v1024 = vshrl.u32 %v1023, 7
        %v1025 = vsub.s32 %v1022, %v1024
        %v1026 = vrot.slane %v1013, %v1025
        %v1028 = vunpack.c.l.s4 1966171168
        %v1029 = vunpack.c.0.s8 %v1028
        %v1030 = vlaneseq
        %v1031 = vshrl.u32 %v1030, 7
        %v1032 = vsub.s32 %v1029, %v1031
        %v1033 = vrot.slane %v1019, %v1032
        %v1034 = vcombine.high %v1026, %v1026
        %v1035 = vcombine.high %v1033, %v1033
        %v1037 = vunpack.c.l.s4 1966171168
        %v1038 = vunpack.c.0.s8 %v1037
        %v1039 = vlaneseq
        %v1040 = vshrl.u32 %v1039, 7
        %v1041 = vsub.s32 %v1038, %v1040
        %v1042 = vrot.slane %v1026, %v1041
        %v1044 = vunpack.c.l.s4 1966171168
        %v1045 = vunpack.c.0.s8 %v1044
        %v1046 = vlaneseq
        %v1047 = vshrl.u32 %v1046, 7
        %v1048 = vsub.s32 %v1045, %v1047
        %v1049 = vrot.slane %v1033, %v1048
        %v1051 = vunpack.c.l.s4 1966171168
        %v1052 = vunpack.c.0.s8 %v1051
        %v1053 = vlaneseq
        %v1054 = vshrl.u32 %v1053, 7
        %v1055 = vsub.s32 %v1052, %v1054
        %v1056 = vrot.slane %v1034, %v1055
        %v1058 = vunpack.c.l.s4 1966171168
        %v1059 = vunpack.c.0.s8 %v1058
        %v1060 = vlaneseq
        %v1061 = vshrl.u32 %v1060, 7
        %v1062 = vsub.s32 %v1059, %v1061
        %v1063 = vrot.slane %v1035, %v1062
        %v1064 = vcombine.high %v1042, %v1042
        %v1065 = vcombine.high %v1049, %v1049
        %v1066 = vcombine.high %v1056, %v1056
        %v1067 = vcombine.high %v1063, %v1063
        %v1068 = vlaneseq
        %v1069 = vshrl.u32 %v1068, 7
        %v1070 = vsub.s32 0, %v1069
        %v1071 = vrot.slane %v1042, %v1070
        %v1072 = vlaneseq
        %v1073 = vshrl.u32 %v1072, 7
        %v1074 = vsub.s32 0, %v1073
        %v1075 = vrot.slane %v1056, %v1074
        %v1076 = vlaneseq
        %v1077 = vshrl.u32 %v1076, 7
        %v1078 = vsub.s32 0, %v1077
        %v1079 = vrot.slane %v1064, %v1078
        %v1080 = vlaneseq
        %v1081 = vshrl.u32 %v1080, 7
        %v1082 = vsub.s32 0, %v1081
        %v1083 = vrot.slane %v1066, %v1082
        %v1084 = vlaneseq
        %v1085 = vshrl.u32 %v1084, 7
        %v1086 = vsub.s32 0, %v1085
        %v1087 = vrot.slane %v1049, %v1086
        %v1088 = vlaneseq
        %v1089 = vshrl.u32 %v1088, 7
        %v1090 = vsub.s32 0, %v1089
        %v1091 = vrot.slane %v1063, %v1090
        %v1092 = vlaneseq
        %v1093 = vshrl.u32 %v1092, 7
        %v1094 = vsub.s32 0, %v1093
        %v1095 = vrot.slane %v1065, %v1094
        %v1096 = vlaneseq
        %v1097 = vshrl.u32 %v1096, 7
        %v1098 = vsub.s32 0, %v1097
        %v1099 = vrot.slane %v1067, %v1098
        %v1108 = vadd.f32 %v950, %v1071
        %v1109 = vadd.f32 %v951, %v1075
        %v1110 = vadd.f32 %v952, %v1079
        %v1111 = vadd.f32 %v953, %v1083
        %v1112 = vadd.f32 %v954, %v1087
        %v1113 = vadd.f32 %v955, %v1091
        %v1114 = vadd.f32 %v956, %v1095
        %v1115 = vadd.f32 %v957, %v1099
        %v1116 = vmax.f32 %v1108, 0.0
        %v1117 = vmax.f32 %v1109, 0.0
        %v1118 = vmax.f32 %v1110, 0.0
        %v1119 = vmax.f32 %v1111, 0.0
        %v1120 = vmax.f32 %v1112, 0.0
        %v1121 = vmax.f32 %v1113, 0.0
        %v1122 = vmax.f32 %v1114, 0.0
        %v1123 = vmax.f32 %v1115, 0.0
        %v1124 = vld [vmem:[%s9] sm:$0xf]
        %v1125 = vld [vmem:[%s9 + $0x4] sm:$0xf]
        %v1126 = vld [vmem:[%s9 + $0x8] sm:$0xf]
        %v1127 = vld [vmem:[%s9 + $0xc] sm:$0xf]
        %v1128 = vpack.c.bf16 %v1117, %v1116
        %v1129 = vpack.c.bf16 %v1119, %v1118
        %v1130 = vpack.c.bf16 %v1121, %v1120
        %v1131 = vpack.c.bf16 %v1123, %v1122
        %v1132 = vld [vmem:[%s10] sm:$0x1]
        %v1134 = vlaneseq
        %v1135 = vshrl.u32 %v1134, 7
        %v1136 = vsub.s32 0, %v1135
        %v1137 = vrot.slane %v1132, %v1136
        %v1143 = vunpack.c.l.b16 %v1124
        %v1144 = vunpack.c.l.b16 %v1125
        %v1145 = vunpack.c.l.b16 %v1126
        %v1146 = vunpack.c.l.b16 %v1127
        %v1147 = vpack.c.b16 %v1144, %v1143
        %v1148 = vpack.c.b16 %v1146, %v1145
        %v1152 = vsel %vm776, %v1128, 0
        %v1155 = vsel %vm776, %v1129, 0
        %v1158 = vsel %vm776, %v1130, 0
        %v1161 = vsel %vm776, %v1131, 0
        %1163 = vmatprep.subr.bf16.mxu0 0
        %1164 = vmatpush1.bf16.msra.mxu0 %v1147
        %1165 = vmatprep.subr.bf16.mxu0 0
        %1166 = vmatpush1.bf16.msra.mxu0 %v1148
        %1167 = vmatprep.subr.bf16.mxu0 0
        %1168 = vmatpush1.bf16.msra.mxu0 0
        %1169 = vmatprep.subr.bf16.mxu0 0
        %1170 = vmatpush1.bf16.msra.mxu0 0
        %1171 = vmatprep.subr.bf16.mxu0 0
        %1172 = vmatpush1.bf16.msra.mxu0 0
        %1173 = vmatprep.subr.bf16.mxu0 0
        %1174 = vmatpush1.bf16.msra.mxu0 0
        %1175 = vmatprep.subr.bf16.mxu0 0
        %1176 = vmatpush1.bf16.msra.mxu0 0
        %1177 = vmatprep.subr.bf16.mxu0 0
        %1178 = vmatpush1.bf16.msra.mxu0 0
        %1179 = vmatprep.subr.bf16.mxu0 0
        %1180 = vmatpush1.bf16.msra.mxu0 0
        %1181 = vmatprep.subr.bf16.mxu0 0
        %1182 = vmatpush1.bf16.msra.mxu0 0
        %1183 = vmatprep.subr.bf16.mxu0 0
        %1184 = vmatpush1.bf16.msra.mxu0 0
        %1185 = vmatprep.subr.bf16.mxu0 0
        %1186 = vmatpush1.bf16.msra.mxu0 0
        %1187 = vmatprep.subr.bf16.mxu0 0
        %1188 = vmatpush1.bf16.msra.mxu0 0
        %1189 = vmatprep.subr.bf16.mxu0 0
        %1190 = vmatpush1.bf16.msra.mxu0 0
        %1191 = vmatprep.subr.bf16.mxu0 0
        %1192 = vmatpush1.bf16.msra.mxu0 0
        %1193 = vmatprep.subr.bf16.mxu0 0
        %1194 = vmatpush1.bf16.msra.mxu0 0
        %1195 = vmatprep.mubr.bf16.mxu0 0
        %1196 = vmatmul.mubr.bf16.gmra.mrb[0].mxu0 %v1152
        %v1197 = vpop.f32.mrb[0].mxu0
        %v1198 = vadd.f32 %v1137, %v1197
        %v1199 = vpop.f32.mrb[0].mxu0
        %v1200 = vpop.f32.mrb[0].mxu0
        %v1201 = vadd.f32 %v1137, %v1200
        %v1202 = vpop.f32.mrb[0].mxu0
        %1203 = vmatprep.mubr.bf16.mxu0 0
        %1204 = vmatmul.mubr.bf16.gmra.mrb[0].mxu0 %v1155
        %v1205 = vpop.f32.mrb[0].mxu0
        %v1206 = vadd.f32 %v1137, %v1205
        %v1207 = vpop.f32.mrb[0].mxu0
        %v1208 = vpop.f32.mrb[0].mxu0
        %v1209 = vadd.f32 %v1137, %v1208
        %v1210 = vpop.f32.mrb[0].mxu0
        %1211 = vmatprep.mubr.bf16.mxu0 0
        %1212 = vmatmul.mubr.bf16.gmra.mrb[0].mxu0 %v1158
        %v1213 = vpop.f32.mrb[0].mxu0
        %v1214 = vadd.f32 %v1137, %v1213
        %v1215 = vpop.f32.mrb[0].mxu0
        %v1216 = vpop.f32.mrb[0].mxu0
        %v1217 = vadd.f32 %v1137, %v1216
        %v1218 = vpop.f32.mrb[0].mxu0
        %1219 = vmatprep.mubr.bf16.mxu0 0
        %1220 = vmatmul.mubr.bf16.gmra.mrb[0].mxu0 %v1161
        %v1221 = vpop.f32.mrb[0].mxu0
        %v1222 = vadd.f32 %v1137, %v1221
        %v1223 = vpop.f32.mrb[0].mxu0
        %v1224 = vpop.f32.mrb[0].mxu0
        %v1225 = vadd.f32 %v1137, %v1224
        %v1226 = vpop.f32.mrb[0].mxu0
        %1227 = vdwg.mxu0
        %v1228 = vmax.f32 %v1198, 0.0
        %v1229 = vmax.f32 %v1201, 0.0
        %v1230 = vmax.f32 %v1206, 0.0
        %v1231 = vmax.f32 %v1209, 0.0
        %v1232 = vmax.f32 %v1214, 0.0
        %v1233 = vmax.f32 %v1217, 0.0
        %v1234 = vmax.f32 %v1222, 0.0
        %v1235 = vmax.f32 %v1225, 0.0
        %v1236 = vld [vmem:[%s11] sm:$0xf]
        %v1237 = vld [vmem:[%s11 + $0x4] sm:$0xf]
        %v1238 = vld [vmem:[%s11 + $0x8] sm:$0xf]
        %v1239 = vld [vmem:[%s11 + $0xc] sm:$0xf]
        %v1240 = vpack.c.bf16 %v1229, %v1228
        %v1241 = vpack.c.bf16 %v1231, %v1230
        %v1242 = vpack.c.bf16 %v1233, %v1232
        %v1243 = vpack.c.bf16 %v1235, %v1234
        %v1244 = vld [vmem:[%s12] sm:$0x1]
        %v1246 = vlaneseq
        %v1247 = vshrl.u32 %v1246, 7
        %v1248 = vsub.s32 0, %v1247
        %v1249 = vrot.slane %v1244, %v1248
        %v1255 = vunpack.c.l.b16 %v1236
        %v1256 = vunpack.c.l.b16 %v1237
        %v1257 = vunpack.c.l.b16 %v1238
        %v1258 = vunpack.c.l.b16 %v1239
        %v1259 = vpack.c.b16 %v1256, %v1255
        %v1260 = vpack.c.b16 %v1258, %v1257
        %v1264 = vsel %vm776, %v1240, 0
        %v1267 = vsel %vm776, %v1241, 0
        %v1270 = vsel %vm776, %v1242, 0
        %v1273 = vsel %vm776, %v1243, 0
        %1275 = vmatprep.subr.bf16.mxu0 0
        %1276 = vmatpush1.bf16.msra.mxu0 %v1259
        %1277 = vmatprep.subr.bf16.mxu0 0
        %1278 = vmatpush1.bf16.msra.mxu0 %v1260
        %1279 = vmatprep.subr.bf16.mxu0 0
        %1280 = vmatpush1.bf16.msra.mxu0 0
        %1281 = vmatprep.subr.bf16.mxu0 0
        %1282 = vmatpush1.bf16.msra.mxu0 0
        %1283 = vmatprep.subr.bf16.mxu0 0
        %1284 = vmatpush1.bf16.msra.mxu0 0
        %1285 = vmatprep.subr.bf16.mxu0 0
        %1286 = vmatpush1.bf16.msra.mxu0 0
        %1287 = vmatprep.subr.bf16.mxu0 0
        %1288 = vmatpush1.bf16.msra.mxu0 0
        %1289 = vmatprep.subr.bf16.mxu0 0
        %1290 = vmatpush1.bf16.msra.mxu0 0
        %1291 = vmatprep.subr.bf16.mxu0 0
        %1292 = vmatpush1.bf16.msra.mxu0 0
        %1293 = vmatprep.subr.bf16.mxu0 0
        %1294 = vmatpush1.bf16.msra.mxu0 0
        %1295 = vmatprep.subr.bf16.mxu0 0
        %1296 = vmatpush1.bf16.msra.mxu0 0
        %1297 = vmatprep.subr.bf16.mxu0 0
        %1298 = vmatpush1.bf16.msra.mxu0 0
        %1299 = vmatprep.subr.bf16.mxu0 0
        %1300 = vmatpush1.bf16.msra.mxu0 0
        %1301 = vmatprep.subr.bf16.mxu0 0
        %1302 = vmatpush1.bf16.msra.mxu0 0
        %1303 = vmatprep.subr.bf16.mxu0 0
        %1304 = vmatpush1.bf16.msra.mxu0 0
        %1305 = vmatprep.subr.bf16.mxu0 0
        %1306 = vmatpush1.bf16.msra.mxu0 0
        %1307 = vmatprep.mubr.bf16.mxu0 0
        %1308 = vmatmul.mubr.bf16.gmra.mrb[0].mxu0 %v1264
        %v1309 = vpop.f32.mrb[0].mxu0
        %v1310 = vadd.f32 %v1249, %v1309
        %v1311 = vpop.f32.mrb[0].mxu0
        %v1312 = vpop.f32.mrb[0].mxu0
        %v1313 = vadd.f32 %v1249, %v1312
        %v1314 = vpop.f32.mrb[0].mxu0
        %1315 = vmatprep.mubr.bf16.mxu0 0
        %1316 = vmatmul.mubr.bf16.gmra.mrb[0].mxu0 %v1267
        %v1317 = vpop.f32.mrb[0].mxu0
        %v1318 = vadd.f32 %v1249, %v1317
        %v1319 = vpop.f32.mrb[0].mxu0
        %v1320 = vpop.f32.mrb[0].mxu0
        %v1321 = vadd.f32 %v1249, %v1320
        %v1322 = vpop.f32.mrb[0].mxu0
        %1323 = vmatprep.mubr.bf16.mxu0 0
        %1324 = vmatmul.mubr.bf16.gmra.mrb[0].mxu0 %v1270
        %v1325 = vpop.f32.mrb[0].mxu0
        %v1326 = vadd.f32 %v1249, %v1325
        %v1327 = vpop.f32.mrb[0].mxu0
        %v1328 = vpop.f32.mrb[0].mxu0
        %v1329 = vadd.f32 %v1249, %v1328
        %v1330 = vpop.f32.mrb[0].mxu0
        %1331 = vmatprep.mubr.bf16.mxu0 0
        %1332 = vmatmul.mubr.bf16.gmra.mrb[0].mxu0 %v1273
        %v1333 = vpop.f32.mrb[0].mxu0
        %v1334 = vadd.f32 %v1249, %v1333
        %v1335 = vpop.f32.mrb[0].mxu0
        %v1336 = vpop.f32.mrb[0].mxu0
        %v1337 = vadd.f32 %v1249, %v1336
        %v1338 = vpop.f32.mrb[0].mxu0
        %1339 = vdwg.mxu0
        %v1340 = vld [vmem:[%s725] sm:$0xff]
        %v1341 = vlaneseq
        %v1342 = vshrl.u32 %v1341, 7
        %v1343 = vsub.s32 0, %v1342
        %v1344 = vrot.slane %v1340, %v1343
        %1346 = vbcast.lane.b32.xlu0 %v1344, 256
        %v1347 = vpop.permute.xlu0 %1346
        %v1348 = vlaneseq
        %v1349 = vshrl.u32 %v1348, 7
        %v1350 = vsub.s32 1, %v1349
        %v1351 = vrot.slane %v1340, %v1350
        %1353 = vbcast.lane.b32.xlu0 %v1351, 256
        %v1354 = vpop.permute.xlu0 %1353
        %v1355 = vlaneseq
        %v1356 = vshrl.u32 %v1355, 7
        %v1357 = vsub.s32 2, %v1356
        %v1358 = vrot.slane %v1340, %v1357
        %1360 = vbcast.lane.b32.xlu0 %v1358, 256
        %v1361 = vpop.permute.xlu0 %1360
        %v1362 = vlaneseq
        %v1363 = vshrl.u32 %v1362, 7
        %v1364 = vsub.s32 3, %v1363
        %v1365 = vrot.slane %v1340, %v1364
        %1367 = vbcast.lane.b32.xlu0 %v1365, 256
        %v1368 = vpop.permute.xlu0 %1367
        %v1369 = vlaneseq
        %v1370 = vshrl.u32 %v1369, 7
        %v1371 = vsub.s32 4, %v1370
        %v1372 = vrot.slane %v1340, %v1371
        %1374 = vbcast.lane.b32.xlu0 %v1372, 256
        %v1375 = vpop.permute.xlu0 %1374
        %v1376 = vlaneseq
        %v1377 = vshrl.u32 %v1376, 7
        %v1378 = vsub.s32 5, %v1377
        %v1379 = vrot.slane %v1340, %v1378
        %1381 = vbcast.lane.b32.xlu0 %v1379, 256
        %v1382 = vpop.permute.xlu0 %1381
        %v1383 = vlaneseq
        %v1384 = vshrl.u32 %v1383, 7
        %v1385 = vsub.s32 6, %v1384
        %v1386 = vrot.slane %v1340, %v1385
        %1388 = vbcast.lane.b32.xlu0 %v1386, 256
        %v1389 = vpop.permute.xlu0 %1388
        %v1390 = vlaneseq
        %v1391 = vshrl.u32 %v1390, 7
        %v1392 = vsub.s32 7, %v1391
        %v1393 = vrot.slane %v1340, %v1392
        %1395 = vbcast.lane.b32.xlu0 %v1393, 256
        %v1396 = vpop.permute.xlu0 %1395
        %v1397 = vmul.f32 %v1310, %v1347
        %v1398 = vmul.f32 %v1313, %v1354
        %v1399 = vmul.f32 %v1318, %v1361
        %v1400 = vmul.f32 %v1321, %v1368
        %v1401 = vmul.f32 %v1326, %v1375
        %v1402 = vmul.f32 %v1329, %v1382
        %v1403 = vmul.f32 %v1334, %v1389
        %v1404 = vmul.f32 %v1337, %v1396
        %v1405 = vsel %vm776, %v1397, 0.0
        %v1406 = vrot.slane %v1405, 4
        %v1407 = vadd.f32 %v1405, %v1406
        %v1408 = vrot.slane %v1407, 2
        %v1409 = vadd.f32 %v1407, %v1408
        %v1410 = vrot.slane %v1409, 1
        %v1411 = vadd.f32 %v1409, %v1410
        %v1412 = vsel %vm776, %v1398, 0.0
        %v1413 = vrot.slane %v1412, 4
        %v1414 = vadd.f32 %v1412, %v1413
        %v1415 = vrot.slane %v1414, 2
        %v1416 = vadd.f32 %v1414, %v1415
        %v1417 = vrot.slane %v1416, 1
        %v1418 = vadd.f32 %v1416, %v1417
        %v1419 = vsel %vm776, %v1399, 0.0
        %v1420 = vrot.slane %v1419, 4
        %v1421 = vadd.f32 %v1419, %v1420
        %v1422 = vrot.slane %v1421, 2
        %v1423 = vadd.f32 %v1421, %v1422
        %v1424 = vrot.slane %v1423, 1
        %v1425 = vadd.f32 %v1423, %v1424
        %v1426 = vsel %vm776, %v1400, 0.0
        %v1427 = vrot.slane %v1426, 4
        %v1428 = vadd.f32 %v1426, %v1427
        %v1429 = vrot.slane %v1428, 2
        %v1430 = vadd.f32 %v1428, %v1429
        %v1431 = vrot.slane %v1430, 1
        %v1432 = vadd.f32 %v1430, %v1431
        %v1433 = vsel %vm776, %v1401, 0.0
        %v1434 = vrot.slane %v1433, 4
        %v1435 = vadd.f32 %v1433, %v1434
        %v1436 = vrot.slane %v1435, 2
        %v1437 = vadd.f32 %v1435, %v1436
        %v1438 = vrot.slane %v1437, 1
        %v1439 = vadd.f32 %v1437, %v1438
        %v1440 = vsel %vm776, %v1402, 0.0
        %v1441 = vrot.slane %v1440, 4
        %v1442 = vadd.f32 %v1440, %v1441
        %v1443 = vrot.slane %v1442, 2
        %v1444 = vadd.f32 %v1442, %v1443
        %v1445 = vrot.slane %v1444, 1
        %v1446 = vadd.f32 %v1444, %v1445
        %v1447 = vsel %vm776, %v1403, 0.0
        %v1448 = vrot.slane %v1447, 4
        %v1449 = vadd.f32 %v1447, %v1448
        %v1450 = vrot.slane %v1449, 2
        %v1451 = vadd.f32 %v1449, %v1450
        %v1452 = vrot.slane %v1451, 1
        %v1453 = vadd.f32 %v1451, %v1452
        %v1454 = vsel %vm776, %v1404, 0.0
        %v1455 = vrot.slane %v1454, 4
        %v1456 = vadd.f32 %v1454, %v1455
        %v1457 = vrot.slane %v1456, 2
        %v1458 = vadd.f32 %v1456, %v1457
        %v1459 = vrot.slane %v1458, 1
        %v1460 = vadd.f32 %v1458, %v1459
        %v1461 = vmul.f32 %v1411, 0.033333335
        %v1462 = vmul.f32 %v1418, 0.033333335
        %v1463 = vmul.f32 %v1425, 0.033333335
        %v1464 = vmul.f32 %v1432, 0.033333335
        %v1465 = vmul.f32 %v1439, 0.033333335
        %v1466 = vmul.f32 %v1446, 0.033333335
        %v1467 = vmul.f32 %v1453, 0.033333335
        %v1468 = vmul.f32 %v1460, 0.033333335
        %vm1477 = vcmask 1041409
        %v1478 = vsel %vm1477, %v1462, %v1461
        %vm1479 = vcmask 1042434
        %v1480 = vsel %vm1479, %v1463, %v1478
        %vm1481 = vcmask 1043459
        %v1482 = vsel %vm1481, %v1464, %v1480
        %vm1483 = vcmask 1044484
        %v1484 = vsel %vm1483, %v1465, %v1482
        %vm1485 = vcmask 1045509
        %v1486 = vsel %vm1485, %v1466, %v1484
        %vm1487 = vcmask 1046534
        %v1488 = vsel %vm1487, %v1467, %v1486
        %vm1489 = vcmask 1047559
        %v1490 = vsel %vm1489, %v1468, %v1488
        %v1492 = vadd.f32 %v731, %v1490
        %v1493 = vld [vmem:[%s13] sm:$0x1]
        %v1494 = vld [vmem:[%s14] sm:$0x1]
        %v1495 = vsel %vm776, %v1492, 0.0
        %1496 = vadd.xlane.f32.xlu0 %v1495
        %v1497 = vpop.xlane.xlu0 %1496
        %v1498 = vrcp.pop 32.0
        %v1499 = vmul.f32 %v1497, %v1498
        %v1500 = vsub.f32 %v1492, %v1499
        %v1501 = vmul.f32 %v1500, %v1500
        %v1502 = vsel %vm776, %v1501, 0.0
        %1503 = vadd.xlane.f32.xlu0 %v1502
        %v1504 = vpop.xlane.xlu0 %1503
        %v1505 = vmul.f32 %v1504, %v1498
        %v1506 = vadd.f32 %v1505, 1e-05
        %v1507 = vrsqrt.pop %v1506
        %v1508 = vmul.f32 %v1500, %v1507
        %v1510 = vlaneseq
        %v1511 = vshrl.u32 %v1510, 7
        %v1512 = vsub.s32 0, %v1511
        %v1513 = vrot.slane %v1493, %v1512
        %v1515 = vmul.f32 %v1508, %v1513
        %v1517 = vlaneseq
        %v1518 = vshrl.u32 %v1517, 7
        %v1519 = vsub.s32 0, %v1518
        %v1520 = vrot.slane %v1494, %v1519
        %v1522 = vadd.f32 %v1515, %v1520
        %v1523 = vld [vmem:[%s15] sm:$0xf]
        %v1524 = vld [vmem:[%s15 + $0x4] sm:$0xf]
        %v1525 = vld [vmem:[%s15 + $0x8] sm:$0xf]
        %v1526 = vld [vmem:[%s15 + $0xc] sm:$0xf]
        %v1527 = vpack.c.bf16 %v1522, %v1522
        %v1528 = vld [vmem:[%s16] sm:$0x1]
        %v1530 = vlaneseq
        %v1531 = vshrl.u32 %v1530, 7
        %v1532 = vsub.s32 0, %v1531
        %v1533 = vrot.slane %v1528, %v1532
        %v1539 = vunpack.c.l.b16 %v1523
        %v1540 = vunpack.c.l.b16 %v1524
        %v1541 = vunpack.c.l.b16 %v1525
        %v1542 = vunpack.c.l.b16 %v1526
        %v1543 = vpack.c.b16 %v1540, %v1539
        %v1544 = vpack.c.b16 %v1542, %v1541
        %v1548 = vsel %vm776, %v1527, 0
        %1550 = vmatprep.subr.bf16.mxu0 0
        %1551 = vmatpush1.bf16.msra.mxu0 %v1543
        %1552 = vmatprep.subr.bf16.mxu0 0
        %1553 = vmatpush1.bf16.msra.mxu0 %v1544
        %1554 = vmatprep.subr.bf16.mxu0 0
        %1555 = vmatpush1.bf16.msra.mxu0 0
        %1556 = vmatprep.subr.bf16.mxu0 0
        %1557 = vmatpush1.bf16.msra.mxu0 0
        %1558 = vmatprep.subr.bf16.mxu0 0
        %1559 = vmatpush1.bf16.msra.mxu0 0
        %1560 = vmatprep.subr.bf16.mxu0 0
        %1561 = vmatpush1.bf16.msra.mxu0 0
        %1562 = vmatprep.subr.bf16.mxu0 0
        %1563 = vmatpush1.bf16.msra.mxu0 0
        %1564 = vmatprep.subr.bf16.mxu0 0
        %1565 = vmatpush1.bf16.msra.mxu0 0
        %1566 = vmatprep.subr.bf16.mxu0 0
        %1567 = vmatpush1.bf16.msra.mxu0 0
        %1568 = vmatprep.subr.bf16.mxu0 0
        %1569 = vmatpush1.bf16.msra.mxu0 0
        %1570 = vmatprep.subr.bf16.mxu0 0
        %1571 = vmatpush1.bf16.msra.mxu0 0
        %1572 = vmatprep.subr.bf16.mxu0 0
        %1573 = vmatpush1.bf16.msra.mxu0 0
        %1574 = vmatprep.subr.bf16.mxu0 0
        %1575 = vmatpush1.bf16.msra.mxu0 0
        %1576 = vmatprep.subr.bf16.mxu0 0
        %1577 = vmatpush1.bf16.msra.mxu0 0
        %1578 = vmatprep.subr.bf16.mxu0 0
        %1579 = vmatpush1.bf16.msra.mxu0 0
        %1580 = vmatprep.subr.bf16.mxu0 0
        %1581 = vmatpush1.bf16.msra.mxu0 0
        %1582 = vmatprep.mubr.bf16.mxu0 0
        %1583 = vmatmul.mubr.bf16.gmra.mrb[0].mxu0 %v1548
        %v1584 = vpop.f32.mrb[0].mxu0
        %v1585 = vadd.f32 %v1533, %v1584
        %v1586 = vpop.f32.mrb[0].mxu0
        %v1587 = vpop.f32.mrb[0].mxu0
        %v1588 = vpop.f32.mrb[0].mxu0
        %1589 = vdwg.mxu0
        %v1590 = vmax.f32 %v1585, 0.0
        %v1591 = vld [vmem:[%s17] sm:$0xf]
        %v1592 = vld [vmem:[%s17 + $0x4] sm:$0xf]
        %v1593 = vld [vmem:[%s17 + $0x8] sm:$0xf]
        %v1594 = vld [vmem:[%s17 + $0xc] sm:$0xf]
        %v1595 = vld [vmem:[%s17 + $0x10] sm:$0xf]
        %v1596 = vld [vmem:[%s17 + $0x14] sm:$0xf]
        %v1597 = vld [vmem:[%s17 + $0x18] sm:$0xf]
        %v1598 = vld [vmem:[%s17 + $0x1c] sm:$0xf]
        %v1599 = vld [vmem:[%s17 + $0x20] sm:$0xf]
        %v1600 = vld [vmem:[%s17 + $0x24] sm:$0xf]
        %v1601 = vld [vmem:[%s17 + $0x28] sm:$0xf]
        %v1602 = vld [vmem:[%s17 + $0x2c] sm:$0xf]
        %v1603 = vld [vmem:[%s17 + $0x30] sm:$0xf]
        %v1604 = vld [vmem:[%s17 + $0x34] sm:$0xf]
        %v1605 = vld [vmem:[%s17 + $0x38] sm:$0xf]
        %v1606 = vld [vmem:[%s17 + $0x3c] sm:$0xf]
        %v1607 = vpack.c.bf16 %v1590, %v1590
        %v1608 = vld [vmem:[%s18] sm:$0x1]
        %v1610 = vlaneseq
        %v1611 = vshrl.u32 %v1610, 7
        %v1612 = vsub.s32 0, %v1611
        %v1613 = vrot.slane %v1608, %v1612
        %v1631 = vunpack.c.l.b16 %v1591
        %v1632 = vunpack.c.l.b16 %v1592
        %v1633 = vunpack.c.l.b16 %v1593
        %v1634 = vunpack.c.l.b16 %v1594
        %v1635 = vunpack.c.l.b16 %v1595
        %v1636 = vunpack.c.l.b16 %v1596
        %v1637 = vunpack.c.l.b16 %v1597
        %v1638 = vunpack.c.l.b16 %v1598
        %v1639 = vunpack.c.l.b16 %v1599
        %v1640 = vunpack.c.l.b16 %v1600
        %v1641 = vunpack.c.l.b16 %v1601
        %v1642 = vunpack.c.l.b16 %v1602
        %v1643 = vunpack.c.l.b16 %v1603
        %v1644 = vunpack.c.l.b16 %v1604
        %v1645 = vunpack.c.l.b16 %v1605
        %v1646 = vunpack.c.l.b16 %v1606
        %v1647 = vpack.c.b16 %v1632, %v1631
        %v1648 = vpack.c.b16 %v1634, %v1633
        %v1649 = vpack.c.b16 %v1636, %v1635
        %v1650 = vpack.c.b16 %v1638, %v1637
        %v1651 = vpack.c.b16 %v1640, %v1639
        %v1652 = vpack.c.b16 %v1642, %v1641
        %v1653 = vpack.c.b16 %v1644, %v1643
        %v1654 = vpack.c.b16 %v1646, %v1645
        %1663 = vmatprep.subr.bf16.mxu0 0
        %1664 = vmatpush1.bf16.msra.mxu0 %v1647
        %1665 = vmatprep.subr.bf16.mxu0 0
        %1666 = vmatpush1.bf16.msra.mxu0 %v1648
        %1667 = vmatprep.subr.bf16.mxu0 0
        %1668 = vmatpush1.bf16.msra.mxu0 %v1649
        %1669 = vmatprep.subr.bf16.mxu0 0
        %1670 = vmatpush1.bf16.msra.mxu0 %v1650
        %1671 = vmatprep.subr.bf16.mxu0 0
        %1672 = vmatpush1.bf16.msra.mxu0 %v1651
        %1673 = vmatprep.subr.bf16.mxu0 0
        %1674 = vmatpush1.bf16.msra.mxu0 %v1652
        %1675 = vmatprep.subr.bf16.mxu0 0
        %1676 = vmatpush1.bf16.msra.mxu0 %v1653
        %1677 = vmatprep.subr.bf16.mxu0 0
        %1678 = vmatpush1.bf16.msra.mxu0 %v1654
        %1679 = vmatprep.subr.bf16.mxu0 0
        %1680 = vmatpush1.bf16.msra.mxu0 0
        %1681 = vmatprep.subr.bf16.mxu0 0
        %1682 = vmatpush1.bf16.msra.mxu0 0
        %1683 = vmatprep.subr.bf16.mxu0 0
        %1684 = vmatpush1.bf16.msra.mxu0 0
        %1685 = vmatprep.subr.bf16.mxu0 0
        %1686 = vmatpush1.bf16.msra.mxu0 0
        %1687 = vmatprep.subr.bf16.mxu0 0
        %1688 = vmatpush1.bf16.msra.mxu0 0
        %1689 = vmatprep.subr.bf16.mxu0 0
        %1690 = vmatpush1.bf16.msra.mxu0 0
        %1691 = vmatprep.subr.bf16.mxu0 0
        %1692 = vmatpush1.bf16.msra.mxu0 0
        %1693 = vmatprep.subr.bf16.mxu0 0
        %1694 = vmatpush1.bf16.msra.mxu0 0
        %1695 = vmatprep.mubr.bf16.mxu0 0
        %1696 = vmatmul.mubr.bf16.gmra.mrb[0].mxu0 %v1607
        %v1697 = vpop.f32.mrb[0].mxu0
        %v1698 = vadd.f32 %v1613, %v1697
        %v1699 = vpop.f32.mrb[0].mxu0
        %v1700 = vpop.f32.mrb[0].mxu0
        %v1701 = vpop.f32.mrb[0].mxu0
        %1702 = vdwg.mxu0
        %v1703 = vadd.f32 %v1522, %v1698
        %v1704 = vld [vmem:[%s19] sm:$0x1]
        %v1705 = vld [vmem:[%s20] sm:$0x1]
        %v1706 = vsel %vm776, %v1703, 0.0
        %1707 = vadd.xlane.f32.xlu0 %v1706
        %v1708 = vpop.xlane.xlu0 %1707
        %v1709 = vmul.f32 %v1708, %v1498
        %v1710 = vsub.f32 %v1703, %v1709
        %v1711 = vmul.f32 %v1710, %v1710
        %v1712 = vsel %vm776, %v1711, 0.0
        %1713 = vadd.xlane.f32.xlu0 %v1712
        %v1714 = vpop.xlane.xlu0 %1713
        %v1715 = vmul.f32 %v1714, %v1498
        %v1716 = vadd.f32 %v1715, 1e-05
        %v1717 = vrsqrt.pop %v1716
        %v1718 = vmul.f32 %v1710, %v1717
        %v1720 = vlaneseq
        %v1721 = vshrl.u32 %v1720, 7
        %v1722 = vsub.s32 0, %v1721
        %v1723 = vrot.slane %v1704, %v1722
        %v1725 = vmul.f32 %v1718, %v1723
        %v1727 = vlaneseq
        %v1728 = vshrl.u32 %v1727, 7
        %v1729 = vsub.s32 0, %v1728
        %v1730 = vrot.slane %v1705, %v1729
        %v1732 = vadd.f32 %v1725, %v1730
        %v1733 = vld [vmem:[%s729] sm:$0xff]
        %1735 = vset.pattern.permute.xlu0 0
        %1736 = vperm.xlu0 %1735, %v1733
        %v1737 = vpop.permute.xlu0 %1736
        %v1739 = vmul.f32 %v1732, %v1737
        %1740 = vst.msk [vmem:[%s705] sm:$0xff] %vm776, %v1739
        %s1741 = sand.u32 %s509, 1
        %s1742 = scalar_lea.sflag [#allocation3], %s1741
        %s1743 = sand.u32 %s509, 1
        %s1744 = smul.addr %s1743, 8
        %s1745 = scalar_lea.vmem [#allocation2], %s1744
        // Predicated region
        $region105: #{pair_energies_forward.8} parent=103 // pred_check
          %p1746 = pneg %p519
        $region106: #{pair_energies_forward.8} parent=103 // pred_check_branch
          %1748 = sbr.rel (%p1746) target = $region108
        $region107: #{pair_energies_forward.8} parent=103 // pred_region
          %s1750 = ssub.s32 128, 128
          %1751 = vsyncadd %s1742, %s1750
          %s1752 = smul.addr %s35, 128
          %s1753 = scalar_lea.hbm %s21, %s1752
          %s1755 = sshll.u32 %s1745, 4
          %s1756 = int_to_ptr.vmem [resolvable:$true] %s1755
          %1758 = dma.vmem_to_hbm [thread:$0]  %s1756, 128, %s1753, %s1742
        $region108: #{pair_energies_forward.8} parent=103 // pred_fallthru
          _
      $region104: #{pair_energies_forward.8} parent=5 // pred_fallthru
        _
      %p1759 = scmp.le.s32.totalorder 2, %s30
      // Predicated region
      $region109: #{pair_energies_forward.8} parent=5 // pred_check
        %p1760 = pneg %p1759
      $region110: #{pair_energies_forward.8} parent=5 // pred_check_branch
        %1762 = sbr.rel (%p1760) target = $region112
      $region111: #{pair_energies_forward.8} parent=5 // pred_region
        %s1763 = ssub.s32 %s30, 2
        // Predicated region
        $region113: #{pair_energies_forward.8} parent=111 // pred_check
          %p1764 = pneg %p525
        $region114: #{pair_energies_forward.8} parent=111 // pred_check_branch
          %1766 = sbr.rel (%p1764) target = $region116
        $region115: #{pair_energies_forward.8} parent=111 // pred_region
          %s1767 = sand.u32 %s510, 1
          %s1768 = scalar_lea.sflag [#allocation3], %s1767
          %s1769 = sand.u32 %s510, 1
          %s1770 = smul.addr %s1769, 8
          %s1771 = scalar_lea.vmem [#allocation2], %s1770
          %1772 = dma.done %s1768, 128
        $region116: #{pair_energies_forward.8} parent=111 // pred_fallthru
          _
      $region112: #{pair_energies_forward.8} parent=5 // pred_fallthru
        _
    $region6: #{pair_energies_forward.8} parent=1 // loop_footer
      %s34 = sadd.s32 1, %s30
    $region7: #{pair_energies_forward.8} parent=1 // loop_footer_branch
      %29 = sbr.rel target = $region3
    $region8: #{pair_energies_forward.8} parent=1 // loop_exit
      _
    %1773 = vsyncpa [#allocation3], 1
    %s1774 = scalar_lea.sflag [#allocation3], 1
    %1775 = vsyncpa %s1774, 1

// kernel: pair_energies_forward.9
$region0: #{pair_energies_forward.9}
  #allocation0 [shape = 'u32[]', space=smem, size = 0x4, offset = 0x4, fixed_abs, tag = 'smem constant byte address 0x4 - core index']
  #allocation1 [shape = 'u32[144,128]{1,0:T(1,128)}', space=vmem, size = 0x12000, scoped, tag = 'internal scratch']
  %s0 = inlined_call_operand.vmem [shape: f32[16,8,32], index: 0, kind: input, shape index: {}]
  %s1 = inlined_call_operand.vmem [shape: f32[16,8], index: 1, kind: input, shape index: {}]
  %s2 = inlined_call_operand.vmem [shape: f32[32,400], index: 2, kind: input, shape index: {}]
  %s3 = inlined_call_operand.vmem [shape: f32[1,400], index: 3, kind: input, shape index: {}]
  %s4 = inlined_call_operand.vmem [shape: f32[8,400], index: 4, kind: input, shape index: {}]
  %s5 = inlined_call_operand.hbm [shape: f32[16,8,400], index: 5, kind: output, shape index: {}]
  %s6 = sld [smem:[#allocation0]]
  $region53: #{pair_energies_forward.9} parent=0
    _
  %s8 = ssub.s32 1, %s6
  %s9 = scalar_select 0, %s8, %s6
  $region1: #{pair_energies_forward.9} parent=0
    #allocation2 [shape = 'u8[262144]{0}', space=vmem, size = 0x40000, scoped, tag = 'output window, operand 0']
    #allocation3 [shape = 's32[2]{0}', space=sflag, size = 0x8, scoped, tag = 'scoped memory for pair_energies_forward.9']
    %10 = vsyncpa [#allocation3], 0
    %s11 = scalar_lea.sflag [#allocation3], 1
    %12 = vsyncpa %s11, 0
    loop: start=0, step=1, limit=4
    $region2: #{pair_energies_forward.9} parent=1 // loop_pre_header
      _
    $region3: #{pair_energies_forward.9} parent=1 // loop_header
      %s14 = sphi 0, %s18
      %p15 = scmp.ge.s32.totalorder %s14, 4
      %s24 = sphi 0, %s26
      %s27 = sphi 0, %s24
      %s28 = sphi 0, %s27
      %s44 = sphi 0, %s28
      %s50 = sphi 0, %s52
      %s53 = sphi 0, %s50
      %s54 = sphi 0, %s53
      %s70 = sphi 0, %s54
      %s74 = sphi 0, %s74
      %s76 = sphi 0, %s74
      %s77 = sphi 0, %s76
      %s91 = sphi 0, %s77
      %s95 = sphi 0, %s95
      %s97 = sphi 0, %s95
      %s98 = sphi 0, %s97
      %s112 = sphi 0, %s98
      %s116 = sphi 0, %s116
      %s118 = sphi 0, %s116
      %s119 = sphi 0, %s118
      %s133 = sphi 0, %s119
      %s139 = sphi 0, %s141
      %s142 = sphi 0, %s139
      %s143 = sphi 0, %s142
      %s159 = sphi 0, %s143
    $region4: #{pair_energies_forward.9} parent=1 // loop_header_branch
      %17 = sbr.rel (%p15) target = $region8
    $region5: #{pair_energies_forward.9} parent=1 // loop_body
      %s19 = ssub.s32 %s14, 1
      %s20 = ssub.s32 %s14, 2
      %s21 = sadd.s32 %s14, 1
      %s22 = ssub.s32 %s14, %s21
      %p23 = scmp.eq.s32.totalorder %s22, 0
      %s25 = sadd.s32 %s24, 1
      %s26 = scalar_select %p23, %s24, %s25
      %p29 = pneg %p23
      %p30 = scmp.eq.s32.totalorder %s14, 1
      %p31 = por %p29, %p30
      %p32 = scmp.ne.s32.totalorder %s24, %s27
      %p33 = scmp.eq.s32.totalorder %s14, 0
      %p34 = por %p32, %p33
      %p35 = scmp.ne.s32.totalorder %s24, %s27
      %p36 = scmp.eq.s32.totalorder %s19, 1
      %p37 = por %p35, %p36
      %p38 = scmp.ne.s32.totalorder %s27, %s28
      %p39 = scmp.eq.s32.totalorder %s19, 0
      %p40 = por %p38, %p39
      %p41 = scmp.ne.s32.totalorder %s27, %s28
      %p42 = scmp.eq.s32.totalorder %s20, 1
      %p43 = por %p41, %p42
      %p45 = scmp.ne.s32.totalorder %s28, %s44
      %p46 = scmp.eq.s32.totalorder %s20, 0
      %p47 = por %p45, %p46
      %s48 = ssub.s32 %s14, %s21
      %p49 = scmp.eq.s32.totalorder %s48, 0
      %s51 = sadd.s32 %s50, 1
      %s52 = scalar_select %p49, %s50, %s51
      %p55 = pneg %p49
      %p56 = scmp.eq.s32.totalorder %s14, 1
      %p57 = por %p55, %p56
      %p58 = scmp.ne.s32.totalorder %s50, %s53
      %p59 = scmp.eq.s32.totalorder %s14, 0
      %p60 = por %p58, %p59
      %p61 = scmp.ne.s32.totalorder %s50, %s53
      %p62 = scmp.eq.s32.totalorder %s19, 1
      %p63 = por %p61, %p62
      %p64 = scmp.ne.s32.totalorder %s53, %s54
      %p65 = scmp.eq.s32.totalorder %s19, 0
      %p66 = por %p64, %p65
      %p67 = scmp.ne.s32.totalorder %s53, %s54
      %p68 = scmp.eq.s32.totalorder %s20, 1
      %p69 = por %p67, %p68
      %p71 = scmp.ne.s32.totalorder %s54, %s70
      %p72 = scmp.eq.s32.totalorder %s20, 0
      %p73 = por %p71, %p72
      %s75 = sadd.s32 %s74, 1
      %p78 = scmp.eq.s32.totalorder %s14, 1
      %p79 = scmp.ne.s32.totalorder %s74, %s76
      %p80 = scmp.eq.s32.totalorder %s14, 0
      %p81 = por %p79, %p80
      %p82 = scmp.ne.s32.totalorder %s74, %s76
      %p83 = scmp.eq.s32.totalorder %s19, 1
      %p84 = por %p82, %p83
      %p85 = scmp.ne.s32.totalorder %s76, %s77
      %p86 = scmp.eq.s32.totalorder %s19, 0
      %p87 = por %p85, %p86
      %p88 = scmp.ne.s32.totalorder %s76, %s77
      %p89 = scmp.eq.s32.totalorder %s20, 1
      %p90 = por %p88, %p89
      %p92 = scmp.ne.s32.totalorder %s77, %s91
      %p93 = scmp.eq.s32.totalorder %s20, 0
      %p94 = por %p92, %p93
      %s96 = sadd.s32 %s95, 1
      %p99 = scmp.eq.s32.totalorder %s14, 1
      %p100 = scmp.ne.s32.totalorder %s95, %s97
      %p101 = scmp.eq.s32.totalorder %s14, 0
      %p102 = por %p100, %p101
      %p103 = scmp.ne.s32.totalorder %s95, %s97
      %p104 = scmp.eq.s32.totalorder %s19, 1
      %p105 = por %p103, %p104
      %p106 = scmp.ne.s32.totalorder %s97, %s98
      %p107 = scmp.eq.s32.totalorder %s19, 0
      %p108 = por %p106, %p107
      %p109 = scmp.ne.s32.totalorder %s97, %s98
      %p110 = scmp.eq.s32.totalorder %s20, 1
      %p111 = por %p109, %p110
      %p113 = scmp.ne.s32.totalorder %s98, %s112
      %p114 = scmp.eq.s32.totalorder %s20, 0
      %p115 = por %p113, %p114
      %s117 = sadd.s32 %s116, 1
      %p120 = scmp.eq.s32.totalorder %s14, 1
      %p121 = scmp.ne.s32.totalorder %s116, %s118
      %p122 = scmp.eq.s32.totalorder %s14, 0
      %p123 = por %p121, %p122
      %p124 = scmp.ne.s32.totalorder %s116, %s118
      %p125 = scmp.eq.s32.totalorder %s19, 1
      %p126 = por %p124, %p125
      %p127 = scmp.ne.s32.totalorder %s118, %s119
      %p128 = scmp.eq.s32.totalorder %s19, 0
      %p129 = por %p127, %p128
      %p130 = scmp.ne.s32.totalorder %s118, %s119
      %p131 = scmp.eq.s32.totalorder %s20, 1
      %p132 = por %p130, %p131
      %p134 = scmp.ne.s32.totalorder %s119, %s133
      %p135 = scmp.eq.s32.totalorder %s20, 0
      %p136 = por %p134, %p135
      %s137 = ssub.s32 %s14, %s21
      %p138 = scmp.eq.s32.totalorder %s137, 0
      %s140 = sadd.s32 %s139, 1
      %s141 = scalar_select %p138, %s139, %s140
      %p144 = pneg %p138
      %p145 = scmp.eq.s32.totalorder %s14, 1
      %p146 = por %p144, %p145
      %p147 = scmp.ne.s32.totalorder %s139, %s142
      %p148 = scmp.eq.s32.totalorder %s14, 0
      %p149 = por %p147, %p148
      %p150 = scmp.ne.s32.totalorder %s139, %s142
      %p151 = scmp.eq.s32.totalorder %s19, 1
      %p152 = por %p150, %p151
      %p153 = scmp.ne.s32.totalorder %s142, %s143
      %p154 = scmp.eq.s32.totalorder %s19, 0
      %p155 = por %p153, %p154
      %p156 = scmp.ne.s32.totalorder %s142, %s143
      %p157 = scmp.eq.s32.totalorder %s20, 1
      %p158 = por %p156, %p157
      %p160 = scmp.ne.s32.totalorder %s143, %s159
      %p161 = scmp.eq.s32.totalorder %s20, 0
      %p162 = por %p160, %p161
      %p163 = scmp.le.s32.totalorder 1, %s14
      %p164 = scmp.lt.s32.totalorder %s14, 3
      %p165 = pnand %p163, %p164
      %p166 = pneg %p165
      // Predicated region
      $region9: #{pair_energies_forward.9} parent=5 // pred_check
        _
      $region10: #{pair_energies_forward.9} parent=5 // pred_check_branch
        %168 = sbr.rel (%p165) target = $region12
      $region11: #{pair_energies_forward.9} parent=5 // pred_region
        %s169 = ssub.s32 %s14, 1
        // Predicated region
        $region13: #{pair_energies_forward.9} parent=11 // pred_check
          %p170 = pneg %p87
        $region14: #{pair_energies_forward.9} parent=11 // pred_check_branch
          %172 = sbr.rel (%p170) target = $region16
        $region15: #{pair_energies_forward.9} parent=11 // pred_region
          _
        $region16: #{pair_energies_forward.9} parent=11 // pred_fallthru
          _
        // Predicated region
        $region17: #{pair_energies_forward.9} parent=11 // pred_check
          %p173 = pneg %p108
        $region18: #{pair_energies_forward.9} parent=11 // pred_check_branch
          %175 = sbr.rel (%p173) target = $region20
        $region19: #{pair_energies_forward.9} parent=11 // pred_region
          _
        $region20: #{pair_energies_forward.9} parent=11 // pred_fallthru
          _
        // Predicated region
        $region21: #{pair_energies_forward.9} parent=11 // pred_check
          %p176 = pneg %p129
        $region22: #{pair_energies_forward.9} parent=11 // pred_check_branch
          %178 = sbr.rel (%p176) target = $region24
        $region23: #{pair_energies_forward.9} parent=11 // pred_region
          _
        $region24: #{pair_energies_forward.9} parent=11 // pred_fallthru
          _
      $region12: #{pair_energies_forward.9} parent=5 // pred_fallthru
        _
      %p179 = scmp.lt.s32.totalorder %s14, 2
      // Predicated region
      $region25: #{pair_energies_forward.9} parent=5 // pred_check
        %p180 = pneg %p179
      $region26: #{pair_energies_forward.9} parent=5 // pred_check_branch
        %182 = sbr.rel (%p180) target = $region28
      $region27: #{pair_energies_forward.9} parent=5 // pred_region
        // Predicated region
        $region29: #{pair_energies_forward.9} parent=27 // pred_check
          %p183 = pneg %p34
        $region30: #{pair_energies_forward.9} parent=27 // pred_check_branch
          %185 = sbr.rel (%p183) target = $region32
        $region31: #{pair_energies_forward.9} parent=27 // pred_region
          %s186 = smul.u32 8, %s14
          %p187 = scmp.lt.s32.totalorder %s186, 15
          %s188 = scalar_select %p187, %s186, 15
          %s189 = smul.addr %s188, 8
          %s190 = scalar_lea.vmem %s0, %s189
          %s191 = smul.u32 8, %s14
        $region32: #{pair_energies_forward.9} parent=27 // pred_fallthru
          _
        // Predicated region
        $region33: #{pair_energies_forward.9} parent=27 // pred_check
          %p192 = pneg %p60
        $region34: #{pair_energies_forward.9} parent=27 // pred_check_branch
          %194 = sbr.rel (%p192) target = $region36
        $region35: #{pair_energies_forward.9} parent=27 // pred_region
          %p195 = scmp.lt.s32.totalorder %s14, 1
          %s196 = scalar_select %p195, %s14, 1
          %s197 = smul.addr %s196, 8
          %s198 = scalar_lea.vmem %s1, %s197
        $region36: #{pair_energies_forward.9} parent=27 // pred_fallthru
          _
      $region28: #{pair_energies_forward.9} parent=5 // pred_fallthru
        _
      %p199 = scmp.le.s32.totalorder 1, %s14
      %p200 = scmp.lt.s32.totalorder %s14, 3
      %p201 = pnand %p199, %p200
      %p202 = pneg %p201
      // Predicated region
      $region37: #{pair_energies_forward.9} parent=5 // pred_check
        _
      $region38: #{pair_energies_forward.9} parent=5 // pred_check_branch
        %204 = sbr.rel (%p201) target = $region40
      $region39: #{pair_energies_forward.9} parent=5 // pred_region
        %s205 = ssub.s32 %s14, 1
        %s206 = smul.u32 8, %s19
        %p207 = scmp.lt.s32.totalorder %s206, 15
        %s208 = scalar_select %p207, %s206, 15
        %s209 = smul.addr %s208, 8
        %s210 = scalar_lea.vmem %s0, %s209
        %p211 = pneg %p40
        %p212 = pneg %p37
        %p213 = scmp.lt.s32.totalorder %s19, 1
        %s214 = scalar_select %p213, %s19, 1
        %s215 = smul.addr %s214, 8
        %s216 = scalar_lea.vmem %s1, %s215
        %p217 = pneg %p66
        %p218 = pneg %p63
        %p219 = pneg %p87
        %p220 = pneg %p84
        %p221 = pneg %p108
        %p222 = pneg %p105
        %p223 = pneg %p129
        %p224 = pneg %p126
        %p225 = pneg %p155
        %p226 = pneg %p152
        %s227 = sand.u32 %s142, 1
        %s228 = scalar_lea.sflag [#allocation3], %s227
        %s229 = sand.u32 %s142, 1
        %s230 = smul.addr %s229, 256
        %s231 = scalar_lea.vmem [#allocation2], %s230
        %s232 = smul.u32 8, %s19
        %p233 = scmp.lt.s32.totalorder %s232, 15
        %s234 = scalar_select %p233, %s232, 15
        %s235 = smul.addr %s234, 8
        %s236 = scalar_lea.vmem %s0, %s235
        %s237 = smul.u32 8, %s19
        %p238 = scmp.lt.s32.totalorder %s19, 1
        %s239 = scalar_select %p238, %s19, 1
        %s240 = smul.addr %s239, 8
        %s241 = scalar_lea.vmem %s1, %s240
        %s242 = smul.u32 8, %s19
        %v243 = vld [vmem:[%s236] sm:$0xff]
        %v244 = vld [vmem:[%s236 + $0x8] sm:$0xff]
        %v245 = vld [vmem:[%s236 + $0x10] sm:$0xff]
        %v246 = vld [vmem:[%s236 + $0x18] sm:$0xff]
        %v247 = vld [vmem:[%s236 + $0x20] sm:$0xff]
        %v248 = vld [vmem:[%s236 + $0x28] sm:$0xff]
        %v249 = vld [vmem:[%s236 + $0x30] sm:$0xff]
        %v250 = vld [vmem:[%s236 + $0x38] sm:$0xff]
        %v251 = vld [vmem:[%s2] sm:$0xff]
        %v252 = vld [vmem:[%s2 + $0x8] sm:$0xff]
        %v253 = vld [vmem:[%s2 + $0x10] sm:$0xff]
        %v254 = vld [vmem:[%s2 + $0x18] sm:$0xff]
        %v255 = vld [vmem:[%s2 + $0x20] sm:$0xff]
        %v256 = vld [vmem:[%s2 + $0x28] sm:$0xff]
        %v257 = vld [vmem:[%s2 + $0x30] sm:$0xff]
        %v258 = vld [vmem:[%s2 + $0x38] sm:$0xff]
        %v259 = vld [vmem:[%s2 + $0x40] sm:$0xff]
        %v260 = vld [vmem:[%s2 + $0x48] sm:$0xff]
        %v261 = vld [vmem:[%s2 + $0x50] sm:$0xff]
        %v262 = vld [vmem:[%s2 + $0x58] sm:$0xff]
        %v263 = vld [vmem:[%s2 + $0x60] sm:$0xff]
        %v264 = vld [vmem:[%s2 + $0x68] sm:$0xff]
        %v265 = vld [vmem:[%s2 + $0x70] sm:$0xff]
        %v266 = vld [vmem:[%s2 + $0x78] sm:$0xff]
        %vm267 = vcmask 261120
        %v269 = vsel %vm267, %v243, 0
        %v272 = vsel %vm267, %v244, 0
        %v275 = vsel %vm267, %v245, 0
        %v278 = vsel %vm267, %v246, 0
        %v281 = vsel %vm267, %v247, 0
        %v284 = vsel %vm267, %v248, 0
        %v287 = vsel %vm267, %v249, 0
        %v290 = vsel %vm267, %v250, 0
        %292 = vmatprep.subr.mxu0 %v252
        %293 = vmatpush1.msra.mxu0 %v251
        %294 = vmatprep.subr.mxu0 %v256
        %295 = vmatpush1.msra.mxu0 %v255
        %296 = vmatprep.subr.mxu0 %v260
        %297 = vmatpush1.msra.mxu0 %v259
        %298 = vmatprep.subr.mxu0 %v264
        %299 = vmatpush1.msra.mxu0 %v263
        %300 = vmatprep.subr.mxu0 0.0
        %301 = vmatpush1.msra.mxu0 0.0
        %302 = vmatprep.subr.mxu0 0.0
        %303 = vmatpush1.msra.mxu0 0.0
        %304 = vmatprep.subr.mxu0 0.0
        %305 = vmatpush1.msra.mxu0 0.0
        %306 = vmatprep.subr.mxu0 0.0
        %307 = vmatpush1.msra.mxu0 0.0
        %308 = vmatprep.subr.mxu0 0.0
        %309 = vmatpush1.msra.mxu0 0.0
        %310 = vmatprep.subr.mxu0 0.0
        %311 = vmatpush1.msra.mxu0 0.0
        %312 = vmatprep.subr.mxu0 0.0
        %313 = vmatpush1.msra.mxu0 0.0
        %314 = vmatprep.subr.mxu0 0.0
        %315 = vmatpush1.msra.mxu0 0.0
        %316 = vmatprep.subr.mxu0 0.0
        %317 = vmatpush1.msra.mxu0 0.0
        %318 = vmatprep.subr.mxu0 0.0
        %319 = vmatpush1.msra.mxu0 0.0
        %320 = vmatprep.subr.mxu0 0.0
        %321 = vmatpush1.msra.mxu0 0.0
        %322 = vmatprep.subr.mxu0 0.0
        %323 = vmatpush1.msra.mxu0 0.0
        %324 = vmatprep.subr.mxu0 0.0
        %325 = vmatpush1.msra.mxu0 0.0
        %326 = vmatprep.subr.mxu0 0.0
        %327 = vmatpush1.msra.mxu0 0.0
        %328 = vmatprep.subr.mxu0 0.0
        %329 = vmatpush1.msra.mxu0 0.0
        %330 = vmatprep.subr.mxu0 0.0
        %331 = vmatpush1.msra.mxu0 0.0
        %332 = vmatprep.subr.mxu0 0.0
        %333 = vmatpush1.msra.mxu0 0.0
        %334 = vmatprep.subr.mxu0 0.0
        %335 = vmatpush1.msra.mxu0 0.0
        %336 = vmatprep.subr.mxu0 0.0
        %337 = vmatpush1.msra.mxu0 0.0
        %338 = vmatprep.subr.mxu0 0.0
        %339 = vmatpush1.msra.mxu0 0.0
        %340 = vmatprep.subr.mxu0 0.0
        %341 = vmatpush1.msra.mxu0 0.0
        %342 = vmatprep.subr.mxu0 0.0
        %343 = vmatpush1.msra.mxu0 0.0
        %344 = vmatprep.subr.mxu0 0.0
        %345 = vmatpush1.msra.mxu0 0.0
        %346 = vmatprep.subr.mxu0 0.0
        %347 = vmatpush1.msra.mxu0 0.0
        %348 = vmatprep.subr.mxu0 0.0
        %349 = vmatpush1.msra.mxu0 0.0
        %350 = vmatprep.subr.mxu0 0.0
        %351 = vmatpush1.msra.mxu0 0.0
        %352 = vmatprep.subr.mxu0 0.0
        %353 = vmatpush1.msra.mxu0 0.0
        %354 = vmatprep.subr.mxu0 0.0
        %355 = vmatpush1.msra.mxu0 0.0
        %356 = vmatprep.mubr.f32.mxu0 0.0
        %357 = vmatmul.mubr.f32.gmra.mrb[0].mxu0 %v269
        %v358 = vpop.f32.mrb[0].mxu0
        %v359 = vadd.f32 0.0, %v358
        %v360 = vpop.f32.mrb[0].mxu0
        %v361 = vadd.f32 0.0, %v360
        %362 = vmatprep.mubr.f32.mxu0 0.0
        %363 = vmatmul.mubr.f32.gmra.mrb[0].mxu0 %v272
        %v364 = vpop.f32.mrb[0].mxu0
        %v365 = vadd.f32 0.0, %v364
        %v366 = vpop.f32.mrb[0].mxu0
        %v367 = vadd.f32 0.0, %v366
        %368 = vmatprep.mubr.f32.mxu0 0.0
        %369 = vmatmul.mubr.f32.gmra.mrb[0].mxu0 %v275
        %v370 = vpop.f32.mrb[0].mxu0
        %v371 = vadd.f32 0.0, %v370
        %v372 = vpop.f32.mrb[0].mxu0
        %v373 = vadd.f32 0.0, %v372
        %374 = vmatprep.mubr.f32.mxu0 0.0
        %375 = vmatmul.mubr.f32.gmra.mrb[0].mxu0 %v278
        %v376 = vpop.f32.mrb[0].mxu0
        %v377 = vadd.f32 0.0, %v376
        %v378 = vpop.f32.mrb[0].mxu0
        %v379 = vadd.f32 0.0, %v378
        %380 = vmatprep.mubr.f32.mxu0 0.0
        %381 = vmatmul.mubr.f32.gmra.mrb[0].mxu0 %v281
        %v382 = vpop.f32.mrb[0].mxu0
        %v383 = vadd.f32 0.0, %v382
        %v384 = vpop.f32.mrb[0].mxu0
        %v385 = vadd.f32 0.0, %v384
        %386 = vmatprep.mubr.f32.mxu0 0.0
        %387 = vmatmul.mubr.f32.gmra.mrb[0].mxu0 %v284
        %v388 = vpop.f32.mrb[0].mxu0
        %v389 = vadd.f32 0.0, %v388
        %v390 = vpop.f32.mrb[0].mxu0
        %v391 = vadd.f32 0.0, %v390
        %392 = vmatprep.mubr.f32.mxu0 0.0
        %393 = vmatmul.mubr.f32.gmra.mrb[0].mxu0 %v287
        %v394 = vpop.f32.mrb[0].mxu0
        %v395 = vadd.f32 0.0, %v394
        %v396 = vpop.f32.mrb[0].mxu0
        %v397 = vadd.f32 0.0, %v396
        %398 = vmatprep.mubr.f32.mxu0 0.0
        %399 = vmatmul.mubr.f32.gmra.mrb[0].mxu0 %v290
        %v400 = vpop.f32.mrb[0].mxu0
        %v401 = vadd.f32 0.0, %v400
        %v402 = vpop.f32.mrb[0].mxu0
        %v403 = vadd.f32 0.0, %v402
        %404 = vdwg.mxu0
        %405 = vmatprep.subr.mxu0 %v254
        %406 = vmatpush1.msra.mxu0 %v253
        %407 = vmatprep.subr.mxu0 %v258
        %408 = vmatpush1.msra.mxu0 %v257
        %409 = vmatprep.subr.mxu0 %v262
        %410 = vmatpush1.msra.mxu0 %v261
        %411 = vmatprep.subr.mxu0 %v266
        %412 = vmatpush1.msra.mxu0 %v265
        %413 = vmatprep.subr.mxu0 0.0
        %414 = vmatpush1.msra.mxu0 0.0
        %415 = vmatprep.subr.mxu0 0.0
        %416 = vmatpush1.msra.mxu0 0.0
        %417 = vmatprep.subr.mxu0 0.0
        %418 = vmatpush1.msra.mxu0 0.0
        %419 = vmatprep.subr.mxu0 0.0
        %420 = vmatpush1.msra.mxu0 0.0
        %421 = vmatprep.subr.mxu0 0.0
        %422 = vmatpush1.msra.mxu0 0.0
        %423 = vmatprep.subr.mxu0 0.0
        %424 = vmatpush1.msra.mxu0 0.0
        %425 = vmatprep.subr.mxu0 0.0
        %426 = vmatpush1.msra.mxu0 0.0
        %427 = vmatprep.subr.mxu0 0.0
        %428 = vmatpush1.msra.mxu0 0.0
        %429 = vmatprep.subr.mxu0 0.0
        %430 = vmatpush1.msra.mxu0 0.0
        %431 = vmatprep.subr.mxu0 0.0
        %432 = vmatpush1.msra.mxu0 0.0
        %433 = vmatprep.subr.mxu0 0.0
        %434 = vmatpush1.msra.mxu0 0.0
        %435 = vmatprep.subr.mxu0 0.0
        %436 = vmatpush1.msra.mxu0 0.0
        %437 = vmatprep.subr.mxu0 0.0
        %438 = vmatpush1.msra.mxu0 0.0
        %439 = vmatprep.subr.mxu0 0.0
        %440 = vmatpush1.msra.mxu0 0.0
        %441 = vmatprep.subr.mxu0 0.0
        %442 = vmatpush1.msra.mxu0 0.0
        %443 = vmatprep.subr.mxu0 0.0
        %444 = vmatpush1.msra.mxu0 0.0
        %445 = vmatprep.subr.mxu0 0.0
        %446 = vmatpush1.msra.mxu0 0.0
        %447 = vmatprep.subr.mxu0 0.0
        %448 = vmatpush1.msra.mxu0 0.0
        %449 = vmatprep.subr.mxu0 0.0
        %450 = vmatpush1.msra.mxu0 0.0
        %451 = vmatprep.subr.mxu0 0.0
        %452 = vmatpush1.msra.mxu0 0.0
        %453 = vmatprep.subr.mxu0 0.0
        %454 = vmatpush1.msra.mxu0 0.0
        %455 = vmatprep.subr.mxu0 0.0
        %456 = vmatpush1.msra.mxu0 0.0
        %457 = vmatprep.subr.mxu0 0.0
        %458 = vmatpush1.msra.mxu0 0.0
        %459 = vmatprep.subr.mxu0 0.0
        %460 = vmatpush1.msra.mxu0 0.0
        %461 = vmatprep.subr.mxu0 0.0
        %462 = vmatpush1.msra.mxu0 0.0
        %463 = vmatprep.subr.mxu0 0.0
        %464 = vmatpush1.msra.mxu0 0.0
        %465 = vmatprep.subr.mxu0 0.0
        %466 = vmatpush1.msra.mxu0 0.0
        %467 = vmatprep.subr.mxu0 0.0
        %468 = vmatpush1.msra.mxu0 0.0
        %469 = vmatprep.mubr.f32.mxu0 0.0
        %470 = vmatmul.mubr.f32.gmra.mrb[0].mxu0 %v269
        %v471 = vpop.f32.mrb[0].mxu0
        %v472 = vadd.f32 0.0, %v471
        %v473 = vpop.f32.mrb[0].mxu0
        %v474 = vadd.f32 0.0, %v473
        %475 = vmatprep.mubr.f32.mxu0 0.0
        %476 = vmatmul.mubr.f32.gmra.mrb[0].mxu0 %v272
        %v477 = vpop.f32.mrb[0].mxu0
        %v478 = vadd.f32 0.0, %v477
        %v479 = vpop.f32.mrb[0].mxu0
        %v480 = vadd.f32 0.0, %v479
        %481 = vmatprep.mubr.f32.mxu0 0.0
        %482 = vmatmul.mubr.f32.gmra.mrb[0].mxu0 %v275
        %v483 = vpop.f32.mrb[0].mxu0
        %v484 = vadd.f32 0.0, %v483
        %v485 = vpop.f32.mrb[0].mxu0
        %v486 = vadd.f32 0.0, %v485
        %487 = vmatprep.mubr.f32.mxu0 0.0
        %488 = vmatmul.mubr.f32.gmra.mrb[0].mxu0 %v278
        %v489 = vpop.f32.mrb[0].mxu0
        %v490 = vadd.f32 0.0, %v489
        %v491 = vpop.f32.mrb[0].mxu0
        %v492 = vadd.f32 0.0, %v491
        %493 = vmatprep.mubr.f32.mxu0 0.0
        %494 = vmatmul.mubr.f32.gmra.mrb[0].mxu0 %v281
        %v495 = vpop.f32.mrb[0].mxu0
        %v496 = vadd.f32 0.0, %v495
        %v497 = vpop.f32.mrb[0].mxu0
        %v498 = vadd.f32 0.0, %v497
        %499 = vmatprep.mubr.f32.mxu0 0.0
        %500 = vmatmul.mubr.f32.gmra.mrb[0].mxu0 %v284
        %v501 = vpop.f32.mrb[0].mxu0
        %v502 = vadd.f32 0.0, %v501
        %v503 = vpop.f32.mrb[0].mxu0
        %v504 = vadd.f32 0.0, %v503
        %505 = vmatprep.mubr.f32.mxu0 0.0
        %506 = vmatmul.mubr.f32.gmra.mrb[0].mxu0 %v287
        %v507 = vpop.f32.mrb[0].mxu0
        %v508 = vadd.f32 0.0, %v507
        %v509 = vpop.f32.mrb[0].mxu0
        %v510 = vadd.f32 0.0, %v509
        %511 = vmatprep.mubr.f32.mxu0 0.0
        %512 = vmatmul.mubr.f32.gmra.mrb[0].mxu0 %v290
        %v513 = vpop.f32.mrb[0].mxu0
        %v514 = vadd.f32 0.0, %v513
        %v515 = vpop.f32.mrb[0].mxu0
        %v516 = vadd.f32 0.0, %v515
        %517 = vdwg.mxu0
        %v518 = vld [vmem:[%s241] sm:$0xff]
        %v519 = vlaneseq
        %v520 = vshrl.u32 %v519, 7
        %v521 = vsub.s32 0, %v520
        %v522 = vrot.slane %v518, %v521
        %524 = vbcast.lane.b32.xlu0 %v522, 256
        %v525 = vpop.permute.xlu0 %524
        %v526 = vlaneseq
        %v527 = vshrl.u32 %v526, 7
        %v528 = vsub.s32 1, %v527
        %v529 = vrot.slane %v518, %v528
        %531 = vbcast.lane.b32.xlu0 %v529, 256
        %v532 = vpop.permute.xlu0 %531
        %v533 = vlaneseq
        %v534 = vshrl.u32 %v533, 7
        %v535 = vsub.s32 2, %v534
        %v536 = vrot.slane %v518, %v535
        %538 = vbcast.lane.b32.xlu0 %v536, 256
        %v539 = vpop.permute.xlu0 %538
        %v540 = vlaneseq
        %v541 = vshrl.u32 %v540, 7
        %v542 = vsub.s32 3, %v541
        %v543 = vrot.slane %v518, %v542
        %545 = vbcast.lane.b32.xlu0 %v543, 256
        %v546 = vpop.permute.xlu0 %545
        %v547 = vlaneseq
        %v548 = vshrl.u32 %v547, 7
        %v549 = vsub.s32 4, %v548
        %v550 = vrot.slane %v518, %v549
        %552 = vbcast.lane.b32.xlu0 %v550, 256
        %v553 = vpop.permute.xlu0 %552
        %v554 = vlaneseq
        %v555 = vshrl.u32 %v554, 7
        %v556 = vsub.s32 5, %v555
        %v557 = vrot.slane %v518, %v556
        %559 = vbcast.lane.b32.xlu0 %v557, 256
        %v560 = vpop.permute.xlu0 %559
        %v561 = vlaneseq
        %v562 = vshrl.u32 %v561, 7
        %v563 = vsub.s32 6, %v562
        %v564 = vrot.slane %v518, %v563
        %566 = vbcast.lane.b32.xlu0 %v564, 256
        %v567 = vpop.permute.xlu0 %566
        %v568 = vlaneseq
        %v569 = vshrl.u32 %v568, 7
        %v570 = vsub.s32 7, %v569
        %v571 = vrot.slane %v518, %v570
        %573 = vbcast.lane.b32.xlu0 %v571, 256
        %v574 = vpop.permute.xlu0 %573
        %v575 = vld [vmem:[%s3] sm:$0xf]
        %v577 = vlaneseq
        %v578 = vshrl.u32 %v577, 7
        %v579 = vsub.s32 0, %v578
        %v580 = vrot.slane %v575, %v579
        %v581 = vlaneseq
        %v582 = vshrl.u32 %v581, 7
        %v583 = vsub.s32 1, %v582
        %v584 = vrot.slane %v575, %v583
        %v585 = vlaneseq
        %v586 = vshrl.u32 %v585, 7
        %v587 = vsub.s32 2, %v586
        %v588 = vrot.slane %v575, %v587
        %v589 = vlaneseq
        %v590 = vshrl.u32 %v589, 7
        %v591 = vsub.s32 3, %v590
        %v592 = vrot.slane %v575, %v591
        %v597 = vmul.f32 %v525, %v580
        %v598 = vmul.f32 %v525, %v584
        %v599 = vmul.f32 %v525, %v588
        %v600 = vmul.f32 %v525, %v592
        %v601 = vmul.f32 %v532, %v580
        %v602 = vmul.f32 %v532, %v584
        %v603 = vmul.f32 %v532, %v588
        %v604 = vmul.f32 %v532, %v592
        %v605 = vmul.f32 %v539, %v580
        %v606 = vmul.f32 %v539, %v584
        %v607 = vmul.f32 %v539, %v588
        %v608 = vmul.f32 %v539, %v592
        %v609 = vmul.f32 %v546, %v580
        %v610 = vmul.f32 %v546, %v584
        %v611 = vmul.f32 %v546, %v588
        %v612 = vmul.f32 %v546, %v592
        %v613 = vmul.f32 %v553, %v580
        %v614 = vmul.f32 %v553, %v584
        %v615 = vmul.f32 %v553, %v588
        %v616 = vmul.f32 %v553, %v592
        %v617 = vmul.f32 %v560, %v580
        %v618 = vmul.f32 %v560, %v584
        %v619 = vmul.f32 %v560, %v588
        %v620 = vmul.f32 %v560, %v592
        %v621 = vmul.f32 %v567, %v580
        %v622 = vmul.f32 %v567, %v584
        %v623 = vmul.f32 %v567, %v588
        %v624 = vmul.f32 %v567, %v592
        %v625 = vmul.f32 %v574, %v580
        %v626 = vmul.f32 %v574, %v584
        %v627 = vmul.f32 %v574, %v588
        %v628 = vmul.f32 %v574, %v592
        %v629 = vadd.f32 %v359, %v597
        %v630 = vadd.f32 %v361, %v598
        %v631 = vadd.f32 %v472, %v599
        %v632 = vadd.f32 %v474, %v600
        %v633 = vadd.f32 %v365, %v601
        %v634 = vadd.f32 %v367, %v602
        %v635 = vadd.f32 %v478, %v603
        %v636 = vadd.f32 %v480, %v604
        %v637 = vadd.f32 %v371, %v605
        %v638 = vadd.f32 %v373, %v606
        %v639 = vadd.f32 %v484, %v607
        %v640 = vadd.f32 %v486, %v608
        %v641 = vadd.f32 %v377, %v609
        %v642 = vadd.f32 %v379, %v610
        %v643 = vadd.f32 %v490, %v611
        %v644 = vadd.f32 %v492, %v612
        %v645 = vadd.f32 %v383, %v613
        %v646 = vadd.f32 %v385, %v614
        %v647 = vadd.f32 %v496, %v615
        %v648 = vadd.f32 %v498, %v616
        %v649 = vadd.f32 %v389, %v617
        %v650 = vadd.f32 %v391, %v618
        %v651 = vadd.f32 %v502, %v619
        %v652 = vadd.f32 %v504, %v620
        %v653 = vadd.f32 %v395, %v621
        %v654 = vadd.f32 %v397, %v622
        %v655 = vadd.f32 %v508, %v623
        %v656 = vadd.f32 %v510, %v624
        %v657 = vadd.f32 %v401, %v625
        %v658 = vadd.f32 %v403, %v626
        %v659 = vadd.f32 %v514, %v627
        %v660 = vadd.f32 %v516, %v628
        %v661 = vld [vmem:[%s4] sm:$0xff]
        %v662 = vld [vmem:[%s4 + $0x8] sm:$0xff]
        %v663 = vld [vmem:[%s4 + $0x10] sm:$0xff]
        %v664 = vld [vmem:[%s4 + $0x18] sm:$0xff]
        %v665 = vmul.f32 %v629, %v661
        %v666 = vmul.f32 %v630, %v662
        %v667 = vmul.f32 %v631, %v663
        %v668 = vmul.f32 %v632, %v664
        %v669 = vmul.f32 %v633, %v661
        %v670 = vmul.f32 %v634, %v662
        %v671 = vmul.f32 %v635, %v663
        %v672 = vmul.f32 %v636, %v664
        %v673 = vmul.f32 %v637, %v661
        %v674 = vmul.f32 %v638, %v662
        %v675 = vmul.f32 %v639, %v663
        %v676 = vmul.f32 %v640, %v664
        %v677 = vmul.f32 %v641, %v661
        %v678 = vmul.f32 %v642, %v662
        %v679 = vmul.f32 %v643, %v663
        %v680 = vmul.f32 %v644, %v664
        %v681 = vmul.f32 %v645, %v661
        %v682 = vmul.f32 %v646, %v662
        %v683 = vmul.f32 %v647, %v663
        %v684 = vmul.f32 %v648, %v664
        %v685 = vmul.f32 %v649, %v661
        %v686 = vmul.f32 %v650, %v662
        %v687 = vmul.f32 %v651, %v663
        %v688 = vmul.f32 %v652, %v664
        %v689 = vmul.f32 %v653, %v661
        %v690 = vmul.f32 %v654, %v662
        %v691 = vmul.f32 %v655, %v663
        %v692 = vmul.f32 %v656, %v664
        %v693 = vmul.f32 %v657, %v661
        %v694 = vmul.f32 %v658, %v662
        %v695 = vmul.f32 %v659, %v663
        %v696 = vmul.f32 %v660, %v664
        %697 = vst [vmem:[%s231] sm:$0xff] %v665
        %698 = vst [vmem:[%s231 + $0x8] sm:$0xff] %v666
        %699 = vst [vmem:[%s231 + $0x10] sm:$0xff] %v667
        %vm700 = vcmask 130048
        %701 = vst.msk [vmem:[%s231 + $0x18] sm:$0xff] %vm700, %v668
        %702 = vst [vmem:[%s231 + $0x20] sm:$0xff] %v669
        %703 = vst [vmem:[%s231 + $0x28] sm:$0xff] %v670
        %704 = vst [vmem:[%s231 + $0x30] sm:$0xff] %v671
        %705 = vst.msk [vmem:[%s231 + $0x38] sm:$0xff] %vm700, %v672
        %706 = vst [vmem:[%s231 + $0x40] sm:$0xff] %v673
        %707 = vst [vmem:[%s231 + $0x48] sm:$0xff] %v674
        %708 = vst [vmem:[%s231 + $0x50] sm:$0xff] %v675
        %709 = vst.msk [vmem:[%s231 + $0x58] sm:$0xff] %vm700, %v676
        %710 = vst [vmem:[%s231 + $0x60] sm:$0xff] %v677
        %711 = vst [vmem:[%s231 + $0x68] sm:$0xff] %v678
        %712 = vst [vmem:[%s231 + $0x70] sm:$0xff] %v679
        %713 = vst.msk [vmem:[%s231 + $0x78] sm:$0xff] %vm700, %v680
        %714 = vst [vmem:[%s231 + $0x80] sm:$0xff] %v681
        %715 = vst [vmem:[%s231 + $0x88] sm:$0xff] %v682
        %716 = vst [vmem:[%s231 + $0x90] sm:$0xff] %v683
        %717 = vst.msk [vmem:[%s231 + $0x98] sm:$0xff] %vm700, %v684
        %718 = vst [vmem:[%s231 + $0xa0] sm:$0xff] %v685
        %719 = vst [vmem:[%s231 + $0xa8] sm:$0xff] %v686
        %720 = vst [vmem:[%s231 + $0xb0] sm:$0xff] %v687
        %721 = vst.msk [vmem:[%s231 + $0xb8] sm:$0xff] %vm700, %v688
        %722 = vst [vmem:[%s231 + $0xc0] sm:$0xff] %v689
        %723 = vst [vmem:[%s231 + $0xc8] sm:$0xff] %v690
        %724 = vst [vmem:[%s231 + $0xd0] sm:$0xff] %v691
        %725 = vst.msk [vmem:[%s231 + $0xd8] sm:$0xff] %vm700, %v692
        %726 = vst [vmem:[%s231 + $0xe0] sm:$0xff] %v693
        %727 = vst [vmem:[%s231 + $0xe8] sm:$0xff] %v694
        %728 = vst [vmem:[%s231 + $0xf0] sm:$0xff] %v695
        %729 = vst.msk [vmem:[%s231 + $0xf8] sm:$0xff] %vm700, %v696
        %s730 = sand.u32 %s142, 1
        %s731 = scalar_lea.sflag [#allocation3], %s730
        %s732 = sand.u32 %s142, 1
        %s733 = smul.addr %s732, 256
        %s734 = scalar_lea.vmem [#allocation2], %s733
        // Predicated region
        $region41: #{pair_energies_forward.9} parent=39 // pred_check
          %p735 = pneg %p152
        $region42: #{pair_energies_forward.9} parent=39 // pred_check_branch
          %737 = sbr.rel (%p735) target = $region44
        $region43: #{pair_energies_forward.9} parent=39 // pred_region
          %s738 = smul.u32 8, %s19
          %s740 = ssub.s32 4096, 4096
          %741 = vsyncadd %s731, %s740
          %s742 = smul.addr %s738, 4
          %s743 = smul.addr %s742, 128
          %s744 = scalar_lea.hbm %s5, %s743
          %s745 = sshll.u32 %s734, 4
          %s746 = int_to_ptr.vmem [resolvable:$true] %s745
          %751 = dma.vmem_to_hbm [thread:$0]  %s746, 4096, %s744, %s731, 512, 512, 32
        $region44: #{pair_energies_forward.9} parent=39 // pred_fallthru
          _
      $region40: #{pair_energies_forward.9} parent=5 // pred_fallthru
        _
      %p752 = scmp.le.s32.totalorder 2, %s14
      // Predicated region
      $region45: #{pair_energies_forward.9} parent=5 // pred_check
        %p753 = pneg %p752
      $region46: #{pair_energies_forward.9} parent=5 // pred_check_branch
        %755 = sbr.rel (%p753) target = $region48
      $region47: #{pair_energies_forward.9} parent=5 // pred_region
        %s756 = ssub.s32 %s14, 2
        // Predicated region
        $region49: #{pair_energies_forward.9} parent=47 // pred_check
          %p757 = pneg %p158
        $region50: #{pair_energies_forward.9} parent=47 // pred_check_branch
          %759 = sbr.rel (%p757) target = $region52
        $region51: #{pair_energies_forward.9} parent=47 // pred_region
          %s760 = sand.u32 %s143, 1
          %s761 = scalar_lea.sflag [#allocation3], %s760
          %s762 = sand.u32 %s143, 1
          %s763 = smul.addr %s762, 256
          %s764 = scalar_lea.vmem [#allocation2], %s763
          %765 = dma.done %s761, 4096
        $region52: #{pair_energies_forward.9} parent=47 // pred_fallthru
          _
      $region48: #{pair_energies_forward.9} parent=5 // pred_fallthru
        _
    $region6: #{pair_energies_forward.9} parent=1 // loop_footer
      %s18 = sadd.s32 1, %s14
    $region7: #{pair_energies_forward.9} parent=1 // loop_footer_branch
      %13 = sbr.rel target = $region3
    $region8: #{pair_energies_forward.9} parent=1 // loop_exit
      _
    %766 = vsyncpa [#allocation3], 1
    %s767 = scalar_lea.sflag [#allocation3], 1
    %768 = vsyncpa %s767, 1

</llo_original>
